<compile_context>
chip_gen: v7x
topology: tpu7x:2x2x1
jax: 0.10.0
libtpu: 0.0.40
codegen_flags: <defaults>
</compile_context>

<pallas_src>
import functools

import jax
import jax.numpy as jnp
from jax import lax
from jax.experimental import pallas as pl
from jax.experimental.pallas import tpu as pltpu

GN_GROUPS = 32
GN_EPS = 1e-5
_SLACK = 8          # spare flattened rows at each end of a conv input tile


def _compiler_params(semantics, block_bytes):
    limit = int(min(100 * 2 ** 20, max(16 * 2 ** 20, 2 * block_bytes + 4 * 2 ** 20)))
    return pltpu.CompilerParams(dimension_semantics=semantics,
                                vmem_limit_bytes=limit)


# ----------------------------------------------------------------------------
# Fused Conv3x3 (no bias) + GroupNorm(32) + ReLU, tiled over rows of H*W
# ----------------------------------------------------------------------------
def _conv_gn_relu_kernel(x_ref, mask_ref, w_ref, gb_ref, gmat_ref, o_ref,
                         acc_ref, stats_ref, *, H, W, TH):
    # x_ref    : (1, 1, LBUF, Cin) bf16  one row-tile of the H-padded, row-flattened
    #            input with _SLACK spare rows front/back; LBUF = (TH+2)*W + 2*_SLACK
    # mask_ref : (LBUF, 2) bf16          column masks for the x-1 / x+1 taps
    # w_ref    : (9, Cin, Cout) bf16     3x3 weights, tap-major (k = 3*dy + dx)
    # gb_ref   : (2, Cout) f32           [gamma; beta]
    # gmat_ref : (Cout, Cout) f32        same-group indicator matrix
    # o_ref    : (1, H*W, Cout) bf16     full image, resident across the tile axis
    # acc_ref  : (TH*W, Cout) f32        conv accumulator for the current tile
    # stats_ref: (2, Cout) f32           running [sum; sum-of-squares] per channel
    t = pl.program_id(1)
    T = H // TH
    THW = TH * W
    E = _SLACK
    LW = (TH + 2) * W

    @pl.when(t == 0)
    def _init():
        stats_ref[...] = jnp.zeros_like(stats_ref)

    xblk = x_ref[0, 0]                                          # (LBUF, Cin) bf16
    # dx-shifted, boundary-masked sources; the shift is applied once so that all
    # nine tap slices below are sublane-aligned (offsets dy*W).
    s_prev = (xblk * mask_ref[:, 0:1])[E - 1:E - 1 + LW, :]     # reads column x-1
    s_mid = xblk[E:E + LW, :]                                   # reads column x
    s_next = (xblk * mask_ref[:, 1:2])[E + 1:E + 1 + LW, :]     # reads column x+1
    srcs = (s_prev, s_mid, s_next)

    # TODO(synk): for small Cin (first layer), concatenate the 3 dx taps along the
    # lane axis (K = 3*Cin) to raise MXU lane/depth utilisation.
    first = True
    for dy in range(3):
        for dx in range(3):
            patch = srcs[dx][dy * W:dy * W + THW, :]
            contrib = jnp.dot(patch, w_ref[3 * dy + dx],
                              preferred_element_type=jnp.float32)
            if first:
                acc_ref[...] = contrib
                first = False
            else:
                acc_ref[...] += contrib

    acc = acc_ref[...]
    # GroupNorm partial statistics in f32 (single-pass sums are OK here: the conv
    # output is ~zero-mean, and the sums come from the f32 accumulator).
    stats_ref[0:1, :] += jnp.sum(acc, axis=0, keepdims=True)
    stats_ref[1:2, :] += jnp.sum(acc * acc, axis=0, keepdims=True)

    row0 = t * THW
    if THW % 8 == 0:
        row0 = pl.multiple_of(row0, 8)
    o_ref[0, pl.ds(row0, THW), :] = acc.astype(o_ref.dtype)

    @pl.when(t == T - 1)
    def _epilogue():
        cout = o_ref.shape[-1]
        cnt = float(H * W * (cout // GN_GROUPS))
        # per-channel group sums via one stacked (2,C)@(C,C) indicator matmul
        gsum = jnp.dot(stats_ref[...], gmat_ref[...],
                       preferred_element_type=jnp.float32)
        mean = gsum[0:1, :] / cnt
        var = gsum[1:2, :] / cnt - mean * mean
        inv = lax.rsqrt(var + GN_EPS)
        scale = gb_ref[0:1, :] * inv                  # gamma / std
        shift = gb_ref[1:2, :] - mean * scale         # beta - mean * gamma / std

        def _norm_tile(i, carry):
            r0 = i * THW
            if THW % 8 == 0:
                r0 = pl.multiple_of(r0, 8)
            blk = o_ref[0, pl.ds(r0, THW), :].astype(jnp.float32)
            o_ref[0, pl.ds(r0, THW), :] = jnp.maximum(
                blk * scale + shift, 0.0).astype(o_ref.dtype)
            return carry

        lax.fori_loop(0, T, _norm_tile, 0)


def conv_gn_relu(x, w, gamma, beta):
    """x: (N,H,W,Cin) NHWC; w: (3,3,Cin,Cout) HWIO f32; returns (N,H,W,Cout) bf16."""
    N, H, W, Cin = x.shape
    Cout = w.shape[-1]
    assert Cout % GN_GROUPS == 0

    TH = H
    while TH % 2 == 0 and TH * W > 4096:        # <= ~4K spatial rows per grid step
        TH //= 2
    T = H // TH
    THW = TH * W
    E = _SLACK
    LBUF = (TH + 2) * W + 2 * E

    xb = x.astype(jnp.bfloat16).reshape(N, H * W, Cin)
    xb = jnp.pad(xb, ((0, 0), (W + E, W + E), (0, 0)))   # H zero-padding + slack
    rows = jnp.arange(T)[:, None] * THW + jnp.arange(LBUF)[None, :]
    xt = jnp.take(xb, rows, axis=1)                      # (N, T, LBUF, Cin)

    qq = jnp.arange(LBUF)
    m_prev = ((qq - E) % W != W - 1)     # kill source column W-1 for the x-1 tap
    m_next = ((qq - E) % W != 0)         # kill source column 0   for the x+1 tap
    masks = jnp.stack([m_prev, m_next], axis=1).astype(jnp.bfloat16)

    wt = w.reshape(9, Cin, Cout).astype(jnp.bfloat16)
    gb = jnp.stack([gamma, beta], axis=0).astype(jnp.float32)       # (2, Cout)
    gid = jnp.arange(Cout) // (Cout // GN_GROUPS)
    gmat = (gid[:, None] == gid[None, :]).astype(jnp.float32)       # (Cout, Cout)

    block_bytes = (LBUF * Cin * 2 + LBUF * 2 * 2 + 9 * Cin * Cout * 2
                   + (2 + Cout) * Cout * 4 + H * W * Cout * 2
                   + THW * Cout * 4 + 2 * Cout * 4)

    out = pl.pallas_call(
        functools.partial(_conv_gn_relu_kernel, H=H, W=W, TH=TH),
        out_shape=jax.ShapeDtypeStruct((N, H * W, Cout), jnp.bfloat16),
        grid_spec=pltpu.PrefetchScalarGridSpec(
            num_scalar_prefetch=0,
            grid=(N, T),
            in_specs=[
                pl.BlockSpec((1, 1, LBUF, Cin), lambda n, t: (n, t, 0, 0)),
                pl.BlockSpec((LBUF, 2), lambda n, t: (0, 0)),
                pl.BlockSpec((9, Cin, Cout), lambda n, t: (0, 0, 0)),
                pl.BlockSpec((2, Cout), lambda n, t: (0, 0)),
                pl.BlockSpec((Cout, Cout), lambda n, t: (0, 0)),
            ],
            out_specs=pl.BlockSpec((1, H * W, Cout), lambda n, t: (n, 0, 0)),
            scratch_shapes=[pltpu.VMEM((THW, Cout), jnp.float32),
                            pltpu.VMEM((2, Cout), jnp.float32)],
        ),
        compiler_params=_compiler_params(("parallel", "arbitrary"), block_bytes),
    )(xt, masks, wt, gb, gmat)
    return out.reshape(N, H, W, Cout)


# ----------------------------------------------------------------------------
# Bilinear x2 upsample (align_corners=True), separable, no XLA transposes
# ----------------------------------------------------------------------------
def _interp_matrix(out_size, in_size):
    """1-D linear interpolation matrix, align_corners=True semantics (f32)."""
    src = (jnp.arange(out_size, dtype=jnp.float32) * (in_size - 1)
           / max(out_size - 1, 1))
    i0 = jnp.clip(jnp.floor(src).astype(jnp.int32), 0, in_size - 1)
    i1 = jnp.minimum(i0 + 1, in_size - 1)
    w1 = src - i0.astype(jnp.float32)
    rows = jnp.arange(out_size)
    A = jnp.zeros((out_size, in_size), jnp.float32)
    return A.at[rows, i0].add(1.0 - w1).at[rows, i1].add(w1)


def _upsample_h_kernel(a_ref, x_ref, o_ref):
    # a_ref: (2H, H); x_ref: (1, H, TL); o_ref: (1, 2H, TL)
    o_ref[0] = jnp.dot(a_ref[...], x_ref[0],
                       preferred_element_type=jnp.float32).astype(o_ref.dtype)


def _upsample_w_kernel(a_ref, x_ref, o_ref, *, n_rows):
    # a_ref: (2W, W); x_ref: (1, TI, W, C); o_ref: (1, TI, 2W, C)
    def body(r, carry):
        o_ref[0, r] = jnp.dot(a_ref[...], x_ref[0, r],
                              preferred_element_type=jnp.float32).astype(o_ref.dtype)
        return carry
    lax.fori_loop(0, n_rows, body, 0)


def bilinear_upsample_x2(x):
    """x: (N,H,W,C) bf16 -> (N,2H,2W,C) bf16 (scale=2, bilinear, align_corners=True)."""
    N, H, W, C = x.shape
    Ho, Wo = 2 * H, 2 * W
    ah = _interp_matrix(Ho, H).astype(jnp.bfloat16)
    aw = _interp_matrix(Wo, W).astype(jnp.bfloat16)

    # H direction: (2H,H) @ (H, W*C), lane-tiled.
    L = W * C
    TL = L
    while TL % 2 == 0 and TL > 8192:
        TL //= 2
    xr = x.reshape(N, H, L)
    hb = (Ho * H + H * TL + Ho * TL) * 2
    t = pl.pallas_call(
        _upsample_h_kernel,
        out_shape=jax.ShapeDtypeStruct((N, Ho, L), jnp.bfloat16),
        grid_spec=pltpu.PrefetchScalarGridSpec(
            num_scalar_prefetch=0,
            grid=(N, L // TL),
            in_specs=[pl.BlockSpec((Ho, H), lambda n, l: (0, 0)),
                      pl.BlockSpec((1, H, TL), lambda n, l: (n, 0, l))],
            out_specs=pl.BlockSpec((1, Ho, TL), lambda n, l: (n, 0, l)),
        ),
        compiler_params=_compiler_params(("parallel", "parallel"), hb),
    )(ah, xr)

    # W direction on the SAME buffer viewed as (N, 2H, W, C): per-row (2W,W)@(W,C).
    TI = Ho
    while TI % 2 == 0 and TI * W * C > (1 << 18):
        TI //= 2
    tr = t.reshape(N, Ho, W, C)
    wb = (Wo * W + TI * W * C + TI * Wo * C) * 2
    out = pl.pallas_call(
        functools.partial(_upsample_w_kernel, n_rows=TI),
        out_shape=jax.ShapeDtypeStruct((N, Ho, Wo, C), jnp.bfloat16),
        grid_spec=pltpu.PrefetchScalarGridSpec(
            num_scalar_prefetch=0,
            grid=(N, Ho // TI),
            in_specs=[pl.BlockSpec((Wo, W), lambda n, r: (0, 0)),
                      pl.BlockSpec((1, TI, W, C), lambda n, r: (n, r, 0, 0))],
            out_specs=pl.BlockSpec((1, TI, Wo, C), lambda n, r: (n, r, 0, 0)),
        ),
        compiler_params=_compiler_params(("parallel", "parallel"), wb),
    )(aw, tr)
    # TODO(synk): on v5e the dense interp matmul could be replaced by a 2-tap VPU
    # lerp (the interpolation matrices are 2-sparse per row).
    return out


# ----------------------------------------------------------------------------
# SegmentationBlock
# ----------------------------------------------------------------------------
class SegmentationBlockPallas:
    def __init__(self, in_channels, out_channels, n_upsamples=0, *, key):
        specs = [(in_channels, out_channels, bool(n_upsamples))]
        for _ in range(1, n_upsamples):
            specs.append((out_channels, out_channels, True))
        self.params = []
        for i, (cin, cout, up) in enumerate(specs):
            kw, kg, kb = jax.random.split(jax.random.fold_in(key, i), 3)
            w = jax.random.normal(kw, (3, 3, cin, cout), jnp.float32) / jnp.sqrt(9.0 * cin)
            gamma = 1.0 + 0.1 * jax.random.normal(kg, (cout,), jnp.float32)
            beta = 0.1 * jax.random.normal(kb, (cout,), jnp.float32)
            self.params.append((w, gamma, beta, up))

    def __call__(self, x_nchw):
        x = jnp.transpose(x_nchw, (0, 2, 3, 1)).astype(jnp.bfloat16)   # NCHW -> NHWC
        for w, gamma, beta, up in self.params:
            x = conv_gn_relu(x, w, gamma, beta)
            if up:
                x = bilinear_upsample_x2(x)
        return jnp.transpose(x, (0, 3, 1, 2)).astype(jnp.float32)      # NHWC -> NCHW


# ----------------------------------------------------------------------------
# Pure-JAX f32 reference (same math, no Pallas) for the correctness check
# ----------------------------------------------------------------------------
def ref_forward(x_nchw, params):
    x = jnp.transpose(x_nchw, (0, 2, 3, 1))
    for w, gamma, beta, up in params:
        y = lax.conv_general_dilated(
            x, w, (1, 1), ((1, 1), (1, 1)),
            dimension_numbers=('NHWC', 'HWIO', 'NHWC'),
            precision=lax.Precision.HIGHEST)
        N, H, W, C = y.shape
        g = C // GN_GROUPS
        yr = y.reshape(N, H, W, GN_GROUPS, g)
        mean = yr.mean(axis=(1, 2, 4), keepdims=True)
        var = yr.var(axis=(1, 2, 4), keepdims=True)
        yn = (yr - mean) / jnp.sqrt(var + GN_EPS)
        y = yn.reshape(N, H, W, C) * gamma + beta
        x = jnp.maximum(y, 0.0)
        if up:
            Ah = _interp_matrix(2 * H, H)
            Aw = _interp_matrix(2 * W, W)
            x = jnp.einsum('oi,nijc,pj->nopc', Ah, x, Aw,
                           precision=lax.Precision.HIGHEST)
    return jnp.transpose(x, (0, 3, 1, 2))


if __name__ == "__main__":
    key = jax.random.PRNGKey(0)
    kx, kp = jax.random.split(key)

    N, Cin, Cout, H, W, n_up = 2, 16, 32, 16, 16, 2   # Cout multiple of 32 (GroupNorm)
    x = jax.random.normal(kx, (N, Cin, H, W), jnp.float32)          # NCHW like PyTorch

    model = SegmentationBlockPallas(Cin, Cout, n_upsamples=n_up, key=kp)
    out = jax.block_until_ready(model(x))
    assert out.shape == (N, Cout, H * (2 ** n_up), W * (2 ** n_up)), out.shape

    ref = jax.block_until_ready(ref_forward(x, model.params))
    max_err = float(jnp.max(jnp.abs(out - ref)))
    scale = float(jnp.max(jnp.abs(ref)))
    # bf16 matmuls / bf16 inter-layer activations => tolerance scaled accordingly
    assert max_err < 0.05 * scale + 0.05, f"max abs error {max_err} (ref scale {scale})"

    print("KERNEL_OK")
</pallas_src>

<mosaic_0001>
module attributes {stable_mosaic.version = 11 : i64} {
  func.func @_conv_gn_relu_kernel(%arg0: i32, %arg1: i32, %arg2: memref<1x1x304x16xbf16, #tpu.memory_space<vmem>>, %arg3: memref<304x2xbf16, #tpu.memory_space<vmem>>, %arg4: memref<9x16x32xbf16, #tpu.memory_space<vmem>>, %arg5: memref<2x32xf32, #tpu.memory_space<vmem>>, %arg6: memref<32x32xf32, #tpu.memory_space<vmem>>, %arg7: memref<1x256x32xbf16, #tpu.memory_space<vmem>>, %arg8: memref<256x32xf32, #tpu.memory_space<vmem>>, %arg9: memref<2x32xf32, #tpu.memory_space<vmem>>) attributes {dimension_semantics = [#tpu.dimension_semantics<parallel>, #tpu.dimension_semantics<arbitrary>], iteration_bounds = array<i64: 2, 1>, scalar_prefetch = 0 : i64, scratch_operands = 2 : i64, tpu.core_type = #tpu.core_type<tc>, window_params = [{transform_indices = @transform_0, window_bounds = array<i64: 1, 1, 304, 16>}, {pipeline_mode = #tpu.pipeline_mode<synchronous>, transform_indices = @transform_1, window_bounds = array<i64: 304, 2>}, {pipeline_mode = #tpu.pipeline_mode<synchronous>, transform_indices = @transform_2, window_bounds = array<i64: 9, 16, 32>}, {pipeline_mode = #tpu.pipeline_mode<synchronous>, transform_indices = @transform_3, window_bounds = array<i64: 2, 32>}, {pipeline_mode = #tpu.pipeline_mode<synchronous>, transform_indices = @transform_4, window_bounds = array<i64: 32, 32>}, {transform_indices = @transform_5, window_bounds = array<i64: 1, 256, 32>}]} {
    %c0_i32 = arith.constant 0 : i32
    %0 = arith.cmpi eq, %arg1, %c0_i32 : i32
    %1 = arith.extui %0 : i1 to i32
    %c0_i32_0 = arith.constant 0 : i32
    %2 = arith.cmpi ne, %1, %c0_i32_0 : i32
    scf.if %2 {
      %cst_85 = arith.constant 0.000000e+00 : f32
      %97 = vector.broadcast %cst_85 : f32 to vector<2x32xf32>
      %c0_86 = arith.constant 0 : index
      %c0_87 = arith.constant 0 : index
      %98 = vector.load %arg9[%c0_86, %c0_87] : memref<2x32xf32, #tpu.memory_space<vmem>>, vector<2x32xf32>
      tpu.vector_store %arg9[%c0_86, %c0_87], %97 {strides = array<i32>} : memref<2x32xf32, #tpu.memory_space<vmem>>, vector<2x32xf32>,
    } else {
    }
    %c0 = arith.constant 0 : index
    %c0_1 = arith.constant 0 : index
    %c0_2 = arith.constant 0 : index
    %c0_3 = arith.constant 0 : index
    %3 = vector.load %arg2[%c0, %c0_1, %c0_2, %c0_3] : memref<1x1x304x16xbf16, #tpu.memory_space<vmem>>, vector<1x1x304x16xbf16>
    %4 = vector.shape_cast %3 : vector<1x1x304x16xbf16> to vector<304x16xbf16>
    %c0_4 = arith.constant 0 : index
    %c0_5 = arith.constant 0 : index
    %5 = vector.load %arg3[%c0_4, %c0_5] : memref<304x2xbf16, #tpu.memory_space<vmem>>, vector<304x1xbf16>
    %6 = vector.broadcast %5 : vector<304x1xbf16> to vector<304x16xbf16>
    %7 = arith.mulf %4, %6 : vector<304x16xbf16>
    %8 = vector.extract_strided_slice %7 {offsets = [7, 0], sizes = [288, 16], strides = [1, 1]} : vector<304x16xbf16> to vector<288x16xbf16>
    %9 = vector.extract_strided_slice %4 {offsets = [8, 0], sizes = [288, 16], strides = [1, 1]} : vector<304x16xbf16> to vector<288x16xbf16>
    %c0_6 = arith.constant 0 : index
    %c1 = arith.constant 1 : index
    %10 = vector.load %arg3[%c0_6, %c1] : memref<304x2xbf16, #tpu.memory_space<vmem>>, vector<304x1xbf16>
    %11 = vector.broadcast %10 : vector<304x1xbf16> to vector<304x16xbf16>
    %12 = arith.mulf %4, %11 : vector<304x16xbf16>
    %13 = vector.extract_strided_slice %12 {offsets = [9, 0], sizes = [288, 16], strides = [1, 1]} : vector<304x16xbf16> to vector<288x16xbf16>
    %14 = vector.extract_strided_slice %8 {offsets = [0, 0], sizes = [256, 16], strides = [1, 1]} : vector<288x16xbf16> to vector<256x16xbf16>
    %c0_7 = arith.constant 0 : index
    %c0_8 = arith.constant 0 : index
    %c0_9 = arith.constant 0 : index
    %15 = vector.load %arg4[%c0_7, %c0_8, %c0_9] : memref<9x16x32xbf16, #tpu.memory_space<vmem>>, vector<1x16x32xbf16>
    %16 = vector.shape_cast %15 : vector<1x16x32xbf16> to vector<16x32xbf16>
    %cst = arith.constant dense<0.000000e+00> : vector<256x32xf32>
    %17 = tpu.matmul %14, %16, %cst {dimension_numbers = #tpu.dot_dimension_numbers<[1], [0], [0], [1], [0, 0, 1, 1], [], []>} : vector<256x16xbf16>, vector<16x32xbf16>, vector<256x32xf32> -> vector<256x32xf32>
    %c0_10 = arith.constant 0 : index
    %c0_11 = arith.constant 0 : index
    %18 = vector.load %arg8[%c0_10, %c0_11] : memref<256x32xf32, #tpu.memory_space<vmem>>, vector<256x32xf32>
    tpu.vector_store %arg8[%c0_10, %c0_11], %17 {strides = array<i32>} : memref<256x32xf32, #tpu.memory_space<vmem>>, vector<256x32xf32>,
    %19 = vector.extract_strided_slice %9 {offsets = [0, 0], sizes = [256, 16], strides = [1, 1]} : vector<288x16xbf16> to vector<256x16xbf16>
    %c1_12 = arith.constant 1 : index
    %c0_13 = arith.constant 0 : index
    %c0_14 = arith.constant 0 : index
    %20 = vector.load %arg4[%c1_12, %c0_13, %c0_14] : memref<9x16x32xbf16, #tpu.memory_space<vmem>>, vector<1x16x32xbf16>
    %21 = vector.shape_cast %20 : vector<1x16x32xbf16> to vector<16x32xbf16>
    %cst_15 = arith.constant dense<0.000000e+00> : vector<256x32xf32>
    %22 = tpu.matmul %19, %21, %cst_15 {dimension_numbers = #tpu.dot_dimension_numbers<[1], [0], [0], [1], [0, 0, 1, 1], [], []>} : vector<256x16xbf16>, vector<16x32xbf16>, vector<256x32xf32> -> vector<256x32xf32>
    %c0_16 = arith.constant 0 : index
    %c0_17 = arith.constant 0 : index
    %23 = vector.load %arg8[%c0_16, %c0_17] : memref<256x32xf32, #tpu.memory_space<vmem>>, vector<256x32xf32>
    %24 = arith.addf %23, %22 : vector<256x32xf32>
    %c0_18 = arith.constant 0 : index
    %c0_19 = arith.constant 0 : index
    %25 = vector.load %arg8[%c0_18, %c0_19] : memref<256x32xf32, #tpu.memory_space<vmem>>, vector<256x32xf32>
    tpu.vector_store %arg8[%c0_18, %c0_19], %24 {strides = array<i32>} : memref<256x32xf32, #tpu.memory_space<vmem>>, vector<256x32xf32>,
    %26 = vector.extract_strided_slice %13 {offsets = [0, 0], sizes = [256, 16], strides = [1, 1]} : vector<288x16xbf16> to vector<256x16xbf16>
    %c2 = arith.constant 2 : index
    %c0_20 = arith.constant 0 : index
    %c0_21 = arith.constant 0 : index
    %27 = vector.load %arg4[%c2, %c0_20, %c0_21] : memref<9x16x32xbf16, #tpu.memory_space<vmem>>, vector<1x16x32xbf16>
    %28 = vector.shape_cast %27 : vector<1x16x32xbf16> to vector<16x32xbf16>
    %cst_22 = arith.constant dense<0.000000e+00> : vector<256x32xf32>
    %29 = tpu.matmul %26, %28, %cst_22 {dimension_numbers = #tpu.dot_dimension_numbers<[1], [0], [0], [1], [0, 0, 1, 1], [], []>} : vector<256x16xbf16>, vector<16x32xbf16>, vector<256x32xf32> -> vector<256x32xf32>
    %c0_23 = arith.constant 0 : index
    %c0_24 = arith.constant 0 : index
    %30 = vector.load %arg8[%c0_23, %c0_24] : memref<256x32xf32, #tpu.memory_space<vmem>>, vector<256x32xf32>
    %31 = arith.addf %30, %29 : vector<256x32xf32>
    %c0_25 = arith.constant 0 : index
    %c0_26 = arith.constant 0 : index
    %32 = vector.load %arg8[%c0_25, %c0_26] : memref<256x32xf32, #tpu.memory_space<vmem>>, vector<256x32xf32>
    tpu.vector_store %arg8[%c0_25, %c0_26], %31 {strides = array<i32>} : memref<256x32xf32, #tpu.memory_space<vmem>>, vector<256x32xf32>,
    %33 = vector.extract_strided_slice %8 {offsets = [16, 0], sizes = [256, 16], strides = [1, 1]} : vector<288x16xbf16> to vector<256x16xbf16>
    %c3 = arith.constant 3 : index
    %c0_27 = arith.constant 0 : index
    %c0_28 = arith.constant 0 : index
    %34 = vector.load %arg4[%c3, %c0_27, %c0_28] : memref<9x16x32xbf16, #tpu.memory_space<vmem>>, vector<1x16x32xbf16>
    %35 = vector.shape_cast %34 : vector<1x16x32xbf16> to vector<16x32xbf16>
    %cst_29 = arith.constant dense<0.000000e+00> : vector<256x32xf32>
    %36 = tpu.matmul %33, %35, %cst_29 {dimension_numbers = #tpu.dot_dimension_numbers<[1], [0], [0], [1], [0, 0, 1, 1], [], []>} : vector<256x16xbf16>, vector<16x32xbf16>, vector<256x32xf32> -> vector<256x32xf32>
    %c0_30 = arith.constant 0 : index
    %c0_31 = arith.constant 0 : index
    %37 = vector.load %arg8[%c0_30, %c0_31] : memref<256x32xf32, #tpu.memory_space<vmem>>, vector<256x32xf32>
    %38 = arith.addf %37, %36 : vector<256x32xf32>
    %c0_32 = arith.constant 0 : index
    %c0_33 = arith.constant 0 : index
    %39 = vector.load %arg8[%c0_32, %c0_33] : memref<256x32xf32, #tpu.memory_space<vmem>>, vector<256x32xf32>
    tpu.vector_store %arg8[%c0_32, %c0_33], %38 {strides = array<i32>} : memref<256x32xf32, #tpu.memory_space<vmem>>, vector<256x32xf32>,
    %40 = vector.extract_strided_slice %9 {offsets = [16, 0], sizes = [256, 16], strides = [1, 1]} : vector<288x16xbf16> to vector<256x16xbf16>
    %c4 = arith.constant 4 : index
    %c0_34 = arith.constant 0 : index
    %c0_35 = arith.constant 0 : index
    %41 = vector.load %arg4[%c4, %c0_34, %c0_35] : memref<9x16x32xbf16, #tpu.memory_space<vmem>>, vector<1x16x32xbf16>
    %42 = vector.shape_cast %41 : vector<1x16x32xbf16> to vector<16x32xbf16>
    %cst_36 = arith.constant dense<0.000000e+00> : vector<256x32xf32>
    %43 = tpu.matmul %40, %42, %cst_36 {dimension_numbers = #tpu.dot_dimension_numbers<[1], [0], [0], [1], [0, 0, 1, 1], [], []>} : vector<256x16xbf16>, vector<16x32xbf16>, vector<256x32xf32> -> vector<256x32xf32>
    %c0_37 = arith.constant 0 : index
    %c0_38 = arith.constant 0 : index
    %44 = vector.load %arg8[%c0_37, %c0_38] : memref<256x32xf32, #tpu.memory_space<vmem>>, vector<256x32xf32>
    %45 = arith.addf %44, %43 : vector<256x32xf32>
    %c0_39 = arith.constant 0 : index
    %c0_40 = arith.constant 0 : index
    %46 = vector.load %arg8[%c0_39, %c0_40] : memref<256x32xf32, #tpu.memory_space<vmem>>, vector<256x32xf32>
    tpu.vector_store %arg8[%c0_39, %c0_40], %45 {strides = array<i32>} : memref<256x32xf32, #tpu.memory_space<vmem>>, vector<256x32xf32>,
    %47 = vector.extract_strided_slice %13 {offsets = [16, 0], sizes = [256, 16], strides = [1, 1]} : vector<288x16xbf16> to vector<256x16xbf16>
    %c5 = arith.constant 5 : index
    %c0_41 = arith.constant 0 : index
    %c0_42 = arith.constant 0 : index
    %48 = vector.load %arg4[%c5, %c0_41, %c0_42] : memref<9x16x32xbf16, #tpu.memory_space<vmem>>, vector<1x16x32xbf16>
    %49 = vector.shape_cast %48 : vector<1x16x32xbf16> to vector<16x32xbf16>
    %cst_43 = arith.constant dense<0.000000e+00> : vector<256x32xf32>
    %50 = tpu.matmul %47, %49, %cst_43 {dimension_numbers = #tpu.dot_dimension_numbers<[1], [0], [0], [1], [0, 0, 1, 1], [], []>} : vector<256x16xbf16>, vector<16x32xbf16>, vector<256x32xf32> -> vector<256x32xf32>
    %c0_44 = arith.constant 0 : index
    %c0_45 = arith.constant 0 : index
    %51 = vector.load %arg8[%c0_44, %c0_45] : memref<256x32xf32, #tpu.memory_space<vmem>>, vector<256x32xf32>
    %52 = arith.addf %51, %50 : vector<256x32xf32>
    %c0_46 = arith.constant 0 : index
    %c0_47 = arith.constant 0 : index
    %53 = vector.load %arg8[%c0_46, %c0_47] : memref<256x32xf32, #tpu.memory_space<vmem>>, vector<256x32xf32>
    tpu.vector_store %arg8[%c0_46, %c0_47], %52 {strides = array<i32>} : memref<256x32xf32, #tpu.memory_space<vmem>>, vector<256x32xf32>,
    %54 = vector.extract_strided_slice %8 {offsets = [32, 0], sizes = [256, 16], strides = [1, 1]} : vector<288x16xbf16> to vector<256x16xbf16>
    %c6 = arith.constant 6 : index
    %c0_48 = arith.constant 0 : index
    %c0_49 = arith.constant 0 : index
    %55 = vector.load %arg4[%c6, %c0_48, %c0_49] : memref<9x16x32xbf16, #tpu.memory_space<vmem>>, vector<1x16x32xbf16>
    %56 = vector.shape_cast %55 : vector<1x16x32xbf16> to vector<16x32xbf16>
    %cst_50 = arith.constant dense<0.000000e+00> : vector<256x32xf32>
    %57 = tpu.matmul %54, %56, %cst_50 {dimension_numbers = #tpu.dot_dimension_numbers<[1], [0], [0], [1], [0, 0, 1, 1], [], []>} : vector<256x16xbf16>, vector<16x32xbf16>, vector<256x32xf32> -> vector<256x32xf32>
    %c0_51 = arith.constant 0 : index
    %c0_52 = arith.constant 0 : index
    %58 = vector.load %arg8[%c0_51, %c0_52] : memref<256x32xf32, #tpu.memory_space<vmem>>, vector<256x32xf32>
    %59 = arith.addf %58, %57 : vector<256x32xf32>
    %c0_53 = arith.constant 0 : index
    %c0_54 = arith.constant 0 : index
    %60 = vector.load %arg8[%c0_53, %c0_54] : memref<256x32xf32, #tpu.memory_space<vmem>>, vector<256x32xf32>
    tpu.vector_store %arg8[%c0_53, %c0_54], %59 {strides = array<i32>} : memref<256x32xf32, #tpu.memory_space<vmem>>, vector<256x32xf32>,
    %61 = vector.extract_strided_slice %9 {offsets = [32, 0], sizes = [256, 16], strides = [1, 1]} : vector<288x16xbf16> to vector<256x16xbf16>
    %c7 = arith.constant 7 : index
    %c0_55 = arith.constant 0 : index
    %c0_56 = arith.constant 0 : index
    %62 = vector.load %arg4[%c7, %c0_55, %c0_56] : memref<9x16x32xbf16, #tpu.memory_space<vmem>>, vector<1x16x32xbf16>
    %63 = vector.shape_cast %62 : vector<1x16x32xbf16> to vector<16x32xbf16>
    %cst_57 = arith.constant dense<0.000000e+00> : vector<256x32xf32>
    %64 = tpu.matmul %61, %63, %cst_57 {dimension_numbers = #tpu.dot_dimension_numbers<[1], [0], [0], [1], [0, 0, 1, 1], [], []>} : vector<256x16xbf16>, vector<16x32xbf16>, vector<256x32xf32> -> vector<256x32xf32>
    %c0_58 = arith.constant 0 : index
    %c0_59 = arith.constant 0 : index
    %65 = vector.load %arg8[%c0_58, %c0_59] : memref<256x32xf32, #tpu.memory_space<vmem>>, vector<256x32xf32>
    %66 = arith.addf %65, %64 : vector<256x32xf32>
    %c0_60 = arith.constant 0 : index
    %c0_61 = arith.constant 0 : index
    %67 = vector.load %arg8[%c0_60, %c0_61] : memref<256x32xf32, #tpu.memory_space<vmem>>, vector<256x32xf32>
    tpu.vector_store %arg8[%c0_60, %c0_61], %66 {strides = array<i32>} : memref<256x32xf32, #tpu.memory_space<vmem>>, vector<256x32xf32>,
    %68 = vector.extract_strided_slice %13 {offsets = [32, 0], sizes = [256, 16], strides = [1, 1]} : vector<288x16xbf16> to vector<256x16xbf16>
    %c8 = arith.constant 8 : index
    %c0_62 = arith.constant 0 : index
    %c0_63 = arith.constant 0 : index
    %69 = vector.load %arg4[%c8, %c0_62, %c0_63] : memref<9x16x32xbf16, #tpu.memory_space<vmem>>, vector<1x16x32xbf16>
    %70 = vector.shape_cast %69 : vector<1x16x32xbf16> to vector<16x32xbf16>
    %cst_64 = arith.constant dense<0.000000e+00> : vector<256x32xf32>
    %71 = tpu.matmul %68, %70, %cst_64 {dimension_numbers = #tpu.dot_dimension_numbers<[1], [0], [0], [1], [0, 0, 1, 1], [], []>} : vector<256x16xbf16>, vector<16x32xbf16>, vector<256x32xf32> -> vector<256x32xf32>
    %c0_65 = arith.constant 0 : index
    %c0_66 = arith.constant 0 : index
    %72 = vector.load %arg8[%c0_65, %c0_66] : memref<256x32xf32, #tpu.memory_space<vmem>>, vector<256x32xf32>
    %73 = arith.addf %72, %71 : vector<256x32xf32>
    %c0_67 = arith.constant 0 : index
    %c0_68 = arith.constant 0 : index
    %74 = vector.load %arg8[%c0_67, %c0_68] : memref<256x32xf32, #tpu.memory_space<vmem>>, vector<256x32xf32>
    tpu.vector_store %arg8[%c0_67, %c0_68], %73 {strides = array<i32>} : memref<256x32xf32, #tpu.memory_space<vmem>>, vector<256x32xf32>,
    %c0_69 = arith.constant 0 : index
    %c0_70 = arith.constant 0 : index
    %75 = vector.load %arg8[%c0_69, %c0_70] : memref<256x32xf32, #tpu.memory_space<vmem>>, vector<256x32xf32>
    %c0_71 = arith.constant 0 : index
    %c0_72 = arith.constant 0 : index
    %76 = vector.load %arg9[%c0_71, %c0_72] : memref<2x32xf32, #tpu.memory_space<vmem>>, vector<1x32xf32>
    %cst_73 = arith.constant dense<0.000000e+00> : vector<32xf32>
    %77 = vector.multi_reduction <add>, %75, %cst_73 [0] : vector<256x32xf32> to vector<32xf32>
    %78 = vector.shape_cast %77 : vector<32xf32> to vector<1x32xf32>
    %79 = arith.addf %76, %78 : vector<1x32xf32>
    %c0_74 = arith.constant 0 : index
    %c0_75 = arith.constant 0 : index
    %80 = vector.load %arg9[%c0_74, %c0_75] : memref<2x32xf32, #tpu.memory_space<vmem>>, vector<1x32xf32>
    tpu.vector_store %arg9[%c0_74, %c0_75], %79 {strides = array<i32>} : memref<2x32xf32, #tpu.memory_space<vmem>>, vector<1x32xf32>,
    %c1_76 = arith.constant 1 : index
    %c0_77 = arith.constant 0 : index
    %81 = vector.load %arg9[%c1_76, %c0_77] : memref<2x32xf32, #tpu.memory_space<vmem>>, vector<1x32xf32>
    %82 = arith.mulf %75, %75 : vector<256x32xf32>
    %cst_78 = arith.constant dense<0.000000e+00> : vector<32xf32>
    %83 = vector.multi_reduction <add>, %82, %cst_78 [0] : vector<256x32xf32> to vector<32xf32>
    %84 = vector.shape_cast %83 : vector<32xf32> to vector<1x32xf32>
    %85 = arith.addf %81, %84 : vector<1x32xf32>
    %c1_79 = arith.constant 1 : index
    %c0_80 = arith.constant 0 : index
    %86 = vector.load %arg9[%c1_79, %c0_80] : memref<2x32xf32, #tpu.memory_space<vmem>>, vector<1x32xf32>
    tpu.vector_store %arg9[%c1_79, %c0_80], %85 {strides = array<i32>} : memref<2x32xf32, #tpu.memory_space<vmem>>, vector<1x32xf32>,
    %c256_i32 = arith.constant 256 : i32
    %87 = arith.muli %arg1, %c256_i32 : i32
    %88 = tpu.assume_multiple %87, 8 : i32
    %89 = arith.truncf %75 : vector<256x32xf32> to vector<256x32xbf16>
    %c0_81 = arith.constant 0 : index
    %90 = arith.index_cast %88 : i32 to index
    %c0_82 = arith.constant 0 : index
    %91 = vector.load %arg7[%c0_81, %90, %c0_82] : memref<1x256x32xbf16, #tpu.memory_space<vmem>>, vector<1x256x32xbf16>
    %92 = vector.shape_cast %91 : vector<1x256x32xbf16> to vector<256x32xbf16>
    %93 = vector.shape_cast %89 : vector<256x32xbf16> to vector<1x256x32xbf16>
    tpu.vector_store %arg7[%c0_81, %90, %c0_82], %93 {strides = array<i32>} : memref<1x256x32xbf16, #tpu.memory_space<vmem>>, vector<1x256x32xbf16>,
    %c0_i32_83 = arith.constant 0 : i32
    %94 = arith.cmpi eq, %arg1, %c0_i32_83 : i32
    %95 = arith.extui %94 : i1 to i32
    %c0_i32_84 = arith.constant 0 : i32
    %96 = arith.cmpi ne, %95, %c0_i32_84 : i32
    scf.if %96 {
      %c0_85 = arith.constant 0 : index
      %c0_86 = arith.constant 0 : index
      %97 = vector.load %arg9[%c0_85, %c0_86] : memref<2x32xf32, #tpu.memory_space<vmem>>, vector<2x32xf32>
      %c0_87 = arith.constant 0 : index
      %c0_88 = arith.constant 0 : index
      %98 = vector.load %arg6[%c0_87, %c0_88] : memref<32x32xf32, #tpu.memory_space<vmem>>, vector<32x32xf32>
      %cst_89 = arith.constant dense<0.000000e+00> : vector<2x32xf32>
      %99 = tpu.matmul %97, %98, %cst_89 {dimension_numbers = #tpu.dot_dimension_numbers<[1], [0], [0], [1], [0, 0, 1, 1], [], []>} : vector<2x32xf32>, vector<32x32xf32>, vector<2x32xf32> -> vector<2x32xf32>
      %100 = vector.extract_strided_slice %99 {offsets = [0, 0], sizes = [1, 32], strides = [1, 1]} : vector<2x32xf32> to vector<1x32xf32>
      %cst_90 = arith.constant 2.560000e+02 : f32
      %101 = vector.broadcast %cst_90 : f32 to vector<1x32xf32>
      %102 = arith.divf %100, %101 : vector<1x32xf32>
      %103 = vector.extract_strided_slice %99 {offsets = [1, 0], sizes = [1, 32], strides = [1, 1]} : vector<2x32xf32> to vector<1x32xf32>
      %cst_91 = arith.constant 2.560000e+02 : f32
      %104 = vector.broadcast %cst_91 : f32 to vector<1x32xf32>
      %105 = arith.divf %103, %104 : vector<1x32xf32>
      %106 = arith.mulf %102, %102 : vector<1x32xf32>
      %107 = arith.subf %105, %106 : vector<1x32xf32>
      %cst_92 = arith.constant 9.99999974E-6 : f32
      %108 = vector.broadcast %cst_92 : f32 to vector<1x32xf32>
      %109 = arith.addf %107, %108 : vector<1x32xf32>
      %110 = math.rsqrt %109 : vector<1x32xf32>
      %c0_93 = arith.constant 0 : index
      %c0_94 = arith.constant 0 : index
      %111 = vector.load %arg5[%c0_93, %c0_94] : memref<2x32xf32, #tpu.memory_space<vmem>>, vector<1x32xf32>
      %112 = arith.mulf %111, %110 : vector<1x32xf32>
      %c1_95 = arith.constant 1 : index
      %c0_96 = arith.constant 0 : index
      %113 = vector.load %arg5[%c1_95, %c0_96] : memref<2x32xf32, #tpu.memory_space<vmem>>, vector<1x32xf32>
      %114 = arith.mulf %102, %112 : vector<1x32xf32>
      %115 = arith.subf %113, %114 : vector<1x32xf32>
      %c0_i32_97 = arith.constant 0 : i32
      %c256_i32_98 = arith.constant 256 : i32
      %116 = arith.muli %c0_i32_97, %c256_i32_98 : i32
      %117 = tpu.assume_multiple %116, 8 : i32
      %c0_99 = arith.constant 0 : index
      %118 = arith.index_cast %117 : i32 to index
      %c0_100 = arith.constant 0 : index
      %119 = vector.load %arg7[%c0_99, %118, %c0_100] : memref<1x256x32xbf16, #tpu.memory_space<vmem>>, vector<1x256x32xbf16>
      %120 = vector.shape_cast %119 : vector<1x256x32xbf16> to vector<256x32xbf16>
      %121 = arith.extf %120 : vector<256x32xbf16> to vector<256x32xf32>
      %122 = vector.broadcast %112 : vector<1x32xf32> to vector<256x32xf32>
      %123 = arith.mulf %121, %122 : vector<256x32xf32>
      %124 = vector.broadcast %115 : vector<1x32xf32> to vector<256x32xf32>
      %125 = arith.addf %123, %124 : vector<256x32xf32>
      %cst_101 = arith.constant 0.000000e+00 : f32
      %126 = vector.broadcast %cst_101 : f32 to vector<256x32xf32>
      %127 = arith.maximumf %125, %126 : vector<256x32xf32>
      %128 = arith.truncf %127 : vector<256x32xf32> to vector<256x32xbf16>
      %c0_102 = arith.constant 0 : index
      %129 = arith.index_cast %117 : i32 to index
      %c0_103 = arith.constant 0 : index
      %130 = vector.load %arg7[%c0_102, %129, %c0_103] : memref<1x256x32xbf16, #tpu.memory_space<vmem>>, vector<1x256x32xbf16>
      %131 = vector.shape_cast %130 : vector<1x256x32xbf16> to vector<256x32xbf16>
      %132 = vector.shape_cast %128 : vector<256x32xbf16> to vector<1x256x32xbf16>
      tpu.vector_store %arg7[%c0_102, %129, %c0_103], %132 {strides = array<i32>} : memref<1x256x32xbf16, #tpu.memory_space<vmem>>, vector<1x256x32xbf16>,
      %c1_i32 = arith.constant 1 : i32
    } else {
    }
    return
  }
  func.func @transform_0(%arg0: i32, %arg1: i32) -> (i32, i32, i32, i32) {
    %c0_i32 = arith.constant 0 : i32
    %c0_i32_0 = arith.constant 0 : i32
    %c0_i32_1 = arith.constant 0 : i32
    return %arg0, %arg1, %c0_i32, %c0_i32_0 : i32, i32, i32, i32
  }
  func.func @transform_1(%arg0: i32, %arg1: i32) -> (i32, i32) {
    %c0_i32 = arith.constant 0 : i32
    %c0_i32_0 = arith.constant 0 : i32
    %c0_i32_1 = arith.constant 0 : i32
    return %c0_i32, %c0_i32_0 : i32, i32
  }
  func.func @transform_2(%arg0: i32, %arg1: i32) -> (i32, i32, i32) {
    %c0_i32 = arith.constant 0 : i32
    %c0_i32_0 = arith.constant 0 : i32
    %c0_i32_1 = arith.constant 0 : i32
    %c0_i32_2 = arith.constant 0 : i32
    return %c0_i32, %c0_i32_0, %c0_i32_1 : i32, i32, i32
  }
  func.func @transform_3(%arg0: i32, %arg1: i32) -> (i32, i32) {
    %c0_i32 = arith.constant 0 : i32
    %c0_i32_0 = arith.constant 0 : i32
    %c0_i32_1 = arith.constant 0 : i32
    return %c0_i32, %c0_i32_0 : i32, i32
  }
  func.func @transform_4(%arg0: i32, %arg1: i32) -> (i32, i32) {
    %c0_i32 = arith.constant 0 : i32
    %c0_i32_0 = arith.constant 0 : i32
    %c0_i32_1 = arith.constant 0 : i32
    return %c0_i32, %c0_i32_0 : i32, i32
  }
  func.func @transform_5(%arg0: i32, %arg1: i32) -> (i32, i32, i32) {
    %c0_i32 = arith.constant 0 : i32
    %c0_i32_0 = arith.constant 0 : i32
    %c0_i32_1 = arith.constant 0 : i32
    return %arg0, %c0_i32, %c0_i32_0 : i32, i32, i32
  }
}

</mosaic_0001>

<llo_original>
// kernel: tpu_custom_call.1
$region0: #{tpu_custom_call.1}
  #allocation0 [shape = 'u32[]', space=smem, size = 0x4, offset = 0x4, fixed_abs, tag = 'smem constant byte address 0x4 - core index']
  #allocation1 [shape = 'u32[144,128]{1,0:T(1,128)}', space=vmem, size = 0x12000, scoped, tag = 'internal scratch']
  #allocation2 [shape = 'f32[256,32]{1,0:T(8,128)}', space=vmem, size = 0x20000, scoped, tag = 'scratch operand']
  #allocation3 [shape = 'f32[2,32]{1,0:T(2,128)}', space=vmem, size = 0x400, scoped, tag = 'scratch operand']
  %s0 = inlined_call_operand.vmem [shape: bf16[2,1,304,16], index: 0, kind: input, shape index: {}]
  %s1 = inlined_call_operand.vmem [shape: bf16[304,2], index: 1, kind: input, shape index: {}]
  %s2 = inlined_call_operand.vmem [shape: bf16[9,16,32], index: 2, kind: input, shape index: {}]
  %s3 = inlined_call_operand.vmem [shape: f32[2,32], index: 3, kind: input, shape index: {}]
  %s4 = inlined_call_operand.vmem [shape: f32[32,32], index: 4, kind: input, shape index: {}]
  %s5 = inlined_call_operand.vmem [shape: bf16[2,256,32], index: 5, kind: output, shape index: {}]
  %s6 = sld [smem:[#allocation0]]
  $region61: #{tpu_custom_call.1} parent=0
    _
  %s8 = ssub.s32 1, %s6
  %s9 = scalar_select 0, %s8, %s6
  loop: start=0, step=1, limit=4
  $region2: #{tpu_custom_call.1} parent=0 // loop_pre_header
    _
  $region3: #{tpu_custom_call.1} parent=0 // loop_header
    %s11 = sphi 0, %s15
    %p12 = scmp.ge.s32.totalorder %s11, 4
    %s18 = sphi 0, %s30
    %s19 = sphi 0, %s26
    %s20 = sphi 0, %s18
    %s21 = sphi 0, %s19
    %s22 = sphi 0, %s20
    %s23 = sphi 0, %s21
    %s35 = sphi 0, %s37
    %s38 = sphi 0, %s35
    %s39 = sphi 0, %s38
    %s55 = sphi 0, %s39
    %s59 = sphi 0, %s59
    %s61 = sphi 0, %s59
    %s62 = sphi 0, %s61
    %s76 = sphi 0, %s62
    %s80 = sphi 0, %s80
    %s82 = sphi 0, %s80
    %s83 = sphi 0, %s82
    %s97 = sphi 0, %s83
    %s101 = sphi 0, %s101
    %s103 = sphi 0, %s101
    %s104 = sphi 0, %s103
    %s118 = sphi 0, %s104
    %s122 = sphi 0, %s122
    %s124 = sphi 0, %s122
    %s125 = sphi 0, %s124
    %s139 = sphi 0, %s125
    %s145 = sphi 0, %s147
    %s148 = sphi 0, %s145
    %s149 = sphi 0, %s148
    %s165 = sphi 0, %s149
  $region4: #{tpu_custom_call.1} parent=0 // loop_header_branch
    %14 = sbr.rel (%p12) target = $region8
  $region5: #{tpu_custom_call.1} parent=0 // loop_body
    %s16 = ssub.s32 %s11, 1
    %s17 = ssub.s32 %s11, 2
    %s24 = sadd.s32 1, %s19
    %p25 = scmp.ge.s32.totalorder %s24, 1
    %s26 = scalar_select %p25, 0, %s24
    %s27 = sadd.s32 1, %s18
    %s28 = scalar_select %p25, %s27, %s18
    %p29 = scmp.ge.s32.totalorder %s28, 2
    %s30 = scalar_select %p29, 0, %s28
    %s31 = ssub.s32 %s18, %s30
    %s32 = ssub.s32 %s19, %s26
    %s33 = sor.u32 %s31, %s32
    %p34 = scmp.eq.s32.totalorder %s33, 0
    %s36 = sadd.s32 %s35, 1
    %s37 = scalar_select %p34, %s35, %s36
    %p40 = pneg %p34
    %p41 = scmp.eq.s32.totalorder %s11, 1
    %p42 = por %p40, %p41
    %p43 = scmp.ne.s32.totalorder %s35, %s38
    %p44 = scmp.eq.s32.totalorder %s11, 0
    %p45 = por %p43, %p44
    %p46 = scmp.ne.s32.totalorder %s35, %s38
    %p47 = scmp.eq.s32.totalorder %s16, 1
    %p48 = por %p46, %p47
    %p49 = scmp.ne.s32.totalorder %s38, %s39
    %p50 = scmp.eq.s32.totalorder %s16, 0
    %p51 = por %p49, %p50
    %p52 = scmp.ne.s32.totalorder %s38, %s39
    %p53 = scmp.eq.s32.totalorder %s17, 1
    %p54 = por %p52, %p53
    %p56 = scmp.ne.s32.totalorder %s39, %s55
    %p57 = scmp.eq.s32.totalorder %s17, 0
    %p58 = por %p56, %p57
    %s60 = sadd.s32 %s59, 1
    %p63 = scmp.eq.s32.totalorder %s11, 1
    %p64 = scmp.ne.s32.totalorder %s59, %s61
    %p65 = scmp.eq.s32.totalorder %s11, 0
    %p66 = por %p64, %p65
    %p67 = scmp.ne.s32.totalorder %s59, %s61
    %p68 = scmp.eq.s32.totalorder %s16, 1
    %p69 = por %p67, %p68
    %p70 = scmp.ne.s32.totalorder %s61, %s62
    %p71 = scmp.eq.s32.totalorder %s16, 0
    %p72 = por %p70, %p71
    %p73 = scmp.ne.s32.totalorder %s61, %s62
    %p74 = scmp.eq.s32.totalorder %s17, 1
    %p75 = por %p73, %p74
    %p77 = scmp.ne.s32.totalorder %s62, %s76
    %p78 = scmp.eq.s32.totalorder %s17, 0
    %p79 = por %p77, %p78
    %s81 = sadd.s32 %s80, 1
    %p84 = scmp.eq.s32.totalorder %s11, 1
    %p85 = scmp.ne.s32.totalorder %s80, %s82
    %p86 = scmp.eq.s32.totalorder %s11, 0
    %p87 = por %p85, %p86
    %p88 = scmp.ne.s32.totalorder %s80, %s82
    %p89 = scmp.eq.s32.totalorder %s16, 1
    %p90 = por %p88, %p89
    %p91 = scmp.ne.s32.totalorder %s82, %s83
    %p92 = scmp.eq.s32.totalorder %s16, 0
    %p93 = por %p91, %p92
    %p94 = scmp.ne.s32.totalorder %s82, %s83
    %p95 = scmp.eq.s32.totalorder %s17, 1
    %p96 = por %p94, %p95
    %p98 = scmp.ne.s32.totalorder %s83, %s97
    %p99 = scmp.eq.s32.totalorder %s17, 0
    %p100 = por %p98, %p99
    %s102 = sadd.s32 %s101, 1
    %p105 = scmp.eq.s32.totalorder %s11, 1
    %p106 = scmp.ne.s32.totalorder %s101, %s103
    %p107 = scmp.eq.s32.totalorder %s11, 0
    %p108 = por %p106, %p107
    %p109 = scmp.ne.s32.totalorder %s101, %s103
    %p110 = scmp.eq.s32.totalorder %s16, 1
    %p111 = por %p109, %p110
    %p112 = scmp.ne.s32.totalorder %s103, %s104
    %p113 = scmp.eq.s32.totalorder %s16, 0
    %p114 = por %p112, %p113
    %p115 = scmp.ne.s32.totalorder %s103, %s104
    %p116 = scmp.eq.s32.totalorder %s17, 1
    %p117 = por %p115, %p116
    %p119 = scmp.ne.s32.totalorder %s104, %s118
    %p120 = scmp.eq.s32.totalorder %s17, 0
    %p121 = por %p119, %p120
    %s123 = sadd.s32 %s122, 1
    %p126 = scmp.eq.s32.totalorder %s11, 1
    %p127 = scmp.ne.s32.totalorder %s122, %s124
    %p128 = scmp.eq.s32.totalorder %s11, 0
    %p129 = por %p127, %p128
    %p130 = scmp.ne.s32.totalorder %s122, %s124
    %p131 = scmp.eq.s32.totalorder %s16, 1
    %p132 = por %p130, %p131
    %p133 = scmp.ne.s32.totalorder %s124, %s125
    %p134 = scmp.eq.s32.totalorder %s16, 0
    %p135 = por %p133, %p134
    %p136 = scmp.ne.s32.totalorder %s124, %s125
    %p137 = scmp.eq.s32.totalorder %s17, 1
    %p138 = por %p136, %p137
    %p140 = scmp.ne.s32.totalorder %s125, %s139
    %p141 = scmp.eq.s32.totalorder %s17, 0
    %p142 = por %p140, %p141
    %s143 = ssub.s32 %s18, %s30
    %p144 = scmp.eq.s32.totalorder %s143, 0
    %s146 = sadd.s32 %s145, 1
    %s147 = scalar_select %p144, %s145, %s146
    %p150 = pneg %p144
    %p151 = scmp.eq.s32.totalorder %s11, 1
    %p152 = por %p150, %p151
    %p153 = scmp.ne.s32.totalorder %s145, %s148
    %p154 = scmp.eq.s32.totalorder %s11, 0
    %p155 = por %p153, %p154
    %p156 = scmp.ne.s32.totalorder %s145, %s148
    %p157 = scmp.eq.s32.totalorder %s16, 1
    %p158 = por %p156, %p157
    %p159 = scmp.ne.s32.totalorder %s148, %s149
    %p160 = scmp.eq.s32.totalorder %s16, 0
    %p161 = por %p159, %p160
    %p162 = scmp.ne.s32.totalorder %s148, %s149
    %p163 = scmp.eq.s32.totalorder %s17, 1
    %p164 = por %p162, %p163
    %p166 = scmp.ne.s32.totalorder %s149, %s165
    %p167 = scmp.eq.s32.totalorder %s17, 0
    %p168 = por %p166, %p167
    %p169 = scmp.le.s32.totalorder 1, %s11
    %p170 = scmp.lt.s32.totalorder %s11, 3
    %p171 = pnand %p169, %p170
    %p172 = pneg %p171
    // Predicated region
    $region9: #{tpu_custom_call.1} parent=5 // pred_check
      _
    $region10: #{tpu_custom_call.1} parent=5 // pred_check_branch
      %174 = sbr.rel (%p171) target = $region12
    $region11: #{tpu_custom_call.1} parent=5 // pred_region
      %s175 = ssub.s32 %s11, 1
      // Predicated region
      $region13: #{tpu_custom_call.1} parent=11 // pred_check
        %p176 = pneg %p72
      $region14: #{tpu_custom_call.1} parent=11 // pred_check_branch
        %178 = sbr.rel (%p176) target = $region16
      $region15: #{tpu_custom_call.1} parent=11 // pred_region
        _
      $region16: #{tpu_custom_call.1} parent=11 // pred_fallthru
        _
      // Predicated region
      $region17: #{tpu_custom_call.1} parent=11 // pred_check
        %p179 = pneg %p93
      $region18: #{tpu_custom_call.1} parent=11 // pred_check_branch
        %181 = sbr.rel (%p179) target = $region20
      $region19: #{tpu_custom_call.1} parent=11 // pred_region
        _
      $region20: #{tpu_custom_call.1} parent=11 // pred_fallthru
        _
      // Predicated region
      $region21: #{tpu_custom_call.1} parent=11 // pred_check
        %p182 = pneg %p114
      $region22: #{tpu_custom_call.1} parent=11 // pred_check_branch
        %184 = sbr.rel (%p182) target = $region24
      $region23: #{tpu_custom_call.1} parent=11 // pred_region
        _
      $region24: #{tpu_custom_call.1} parent=11 // pred_fallthru
        _
      // Predicated region
      $region25: #{tpu_custom_call.1} parent=11 // pred_check
        %p185 = pneg %p135
      $region26: #{tpu_custom_call.1} parent=11 // pred_check_branch
        %187 = sbr.rel (%p185) target = $region28
      $region27: #{tpu_custom_call.1} parent=11 // pred_region
        _
      $region28: #{tpu_custom_call.1} parent=11 // pred_fallthru
        _
    $region12: #{tpu_custom_call.1} parent=5 // pred_fallthru
      _
    %p188 = scmp.lt.s32.totalorder %s11, 2
    // Predicated region
    $region29: #{tpu_custom_call.1} parent=5 // pred_check
      %p189 = pneg %p188
    $region30: #{tpu_custom_call.1} parent=5 // pred_check_branch
      %191 = sbr.rel (%p189) target = $region32
    $region31: #{tpu_custom_call.1} parent=5 // pred_region
      // Predicated region
      $region33: #{tpu_custom_call.1} parent=31 // pred_check
        %p192 = pneg %p45
      $region34: #{tpu_custom_call.1} parent=31 // pred_check_branch
        %194 = sbr.rel (%p192) target = $region36
      $region35: #{tpu_custom_call.1} parent=31 // pred_region
        %p195 = scmp.lt.s32.totalorder %s18, 1
        %s196 = scalar_select %p195, %s18, 1
        %p197 = scmp.lt.s32.totalorder %s19, 0
        %s198 = scalar_select %p197, %s19, 0
        %s199 = smul.addr %s198, 38
        %s200 = smul.addr %s196, 38
        %s201 = sadd.s32 %s199, %s200
        %s202 = smul.addr %s201, 4
        %s203 = scalar_lea.vmem %s0, %s202
      $region36: #{tpu_custom_call.1} parent=31 // pred_fallthru
        _
    $region32: #{tpu_custom_call.1} parent=5 // pred_fallthru
      _
    %p204 = scmp.le.s32.totalorder 1, %s11
    %p205 = scmp.lt.s32.totalorder %s11, 3
    %p206 = pnand %p204, %p205
    %p207 = pneg %p206
    // Predicated region
    $region37: #{tpu_custom_call.1} parent=5 // pred_check
      _
    $region38: #{tpu_custom_call.1} parent=5 // pred_check_branch
      %209 = sbr.rel (%p206) target = $region40
    $region39: #{tpu_custom_call.1} parent=5 // pred_region
      %s210 = ssub.s32 %s11, 1
      %p211 = scmp.lt.s32.totalorder %s20, 1
      %s212 = scalar_select %p211, %s20, 1
      %p213 = scmp.lt.s32.totalorder %s21, 0
      %s214 = scalar_select %p213, %s21, 0
      %s215 = smul.addr %s214, 38
      %s216 = smul.addr %s212, 38
      %s217 = sadd.s32 %s215, %s216
      %s218 = smul.addr %s217, 4
      %s219 = scalar_lea.vmem %s0, %s218
      %p220 = pneg %p51
      %p221 = pneg %p48
      %p222 = pneg %p72
      %p223 = pneg %p69
      %p224 = pneg %p93
      %p225 = pneg %p90
      %p226 = pneg %p114
      %p227 = pneg %p111
      %p228 = pneg %p135
      %p229 = pneg %p132
      %p230 = pneg %p161
      %p231 = pneg %p158
      %p232 = scmp.lt.s32.totalorder %s20, 1
      %s233 = scalar_select %p232, %s20, 1
      %s234 = smul.addr %s233, 32
      %s235 = smul.addr %s234, 4
      %s236 = scalar_lea.vmem %s5, %s235
      %p237 = scmp.lt.s32.totalorder %s20, 1
      %s238 = scalar_select %p237, %s20, 1
      %p239 = scmp.lt.s32.totalorder %s21, 0
      %s240 = scalar_select %p239, %s21, 0
      %s241 = smul.addr %s240, 38
      %s242 = smul.addr %s238, 38
      %s243 = sadd.s32 %s241, %s242
      %s244 = smul.addr %s243, 4
      %s245 = scalar_lea.vmem %s0, %s244
      %p246 = scmp.lt.s32.totalorder %s20, 1
      %s247 = scalar_select %p246, %s20, 1
      %s248 = smul.addr %s247, 32
      %s249 = smul.addr %s248, 4
      %s250 = scalar_lea.vmem %s5, %s249
      %p252 = scmp.eq.s32.totalorder %s21, 0
      // Predicated region
      $region41: #{tpu_custom_call.1} parent=39 // pred_check
        %p253 = pneg %p252
      $region42: #{tpu_custom_call.1} parent=39 // pred_check_branch
        %255 = sbr.rel (%p253) target = $region44
      $region43: #{tpu_custom_call.1} parent=39 // pred_region
        %vm256 = vcmask 254976
        %257 = vst.msk [vmem:[#allocation3] sm:$0x3] %vm256, 0.0
      $region44: #{tpu_custom_call.1} parent=39 // pred_fallthru
        _
      %v258 = vld [vmem:[%s245] sm:$0xf]
      %v259 = vld [vmem:[%s245 + $0x4] sm:$0xf]
      %v260 = vld [vmem:[%s245 + $0x8] sm:$0xf]
      %v261 = vld [vmem:[%s245 + $0xc] sm:$0xf]
      %v262 = vld [vmem:[%s245 + $0x10] sm:$0xf]
      %v263 = vld [vmem:[%s245 + $0x14] sm:$0xf]
      %v264 = vld [vmem:[%s245 + $0x18] sm:$0xf]
      %v265 = vld [vmem:[%s245 + $0x1c] sm:$0xf]
      %v266 = vld [vmem:[%s245 + $0x20] sm:$0xf]
      %v267 = vld [vmem:[%s245 + $0x24] sm:$0xf]
      %v268 = vld [vmem:[%s245 + $0x28] sm:$0xf]
      %v269 = vld [vmem:[%s245 + $0x2c] sm:$0xf]
      %v270 = vld [vmem:[%s245 + $0x30] sm:$0xf]
      %v271 = vld [vmem:[%s245 + $0x34] sm:$0xf]
      %v272 = vld [vmem:[%s245 + $0x38] sm:$0xf]
      %v273 = vld [vmem:[%s245 + $0x3c] sm:$0xf]
      %v274 = vld [vmem:[%s245 + $0x40] sm:$0xf]
      %v275 = vld [vmem:[%s245 + $0x44] sm:$0xf]
      %v276 = vld [vmem:[%s245 + $0x48] sm:$0xf]
      %v277 = vld [vmem:[%s245 + $0x4c] sm:$0xf]
      %v278 = vld [vmem:[%s245 + $0x50] sm:$0xf]
      %v279 = vld [vmem:[%s245 + $0x54] sm:$0xf]
      %v280 = vld [vmem:[%s245 + $0x58] sm:$0xf]
      %v281 = vld [vmem:[%s245 + $0x5c] sm:$0xf]
      %v282 = vld [vmem:[%s245 + $0x60] sm:$0xf]
      %v283 = vld [vmem:[%s245 + $0x64] sm:$0xf]
      %v284 = vld [vmem:[%s245 + $0x68] sm:$0xf]
      %v285 = vld [vmem:[%s245 + $0x6c] sm:$0xf]
      %v286 = vld [vmem:[%s245 + $0x70] sm:$0xf]
      %v287 = vld [vmem:[%s245 + $0x74] sm:$0xf]
      %v288 = vld [vmem:[%s245 + $0x78] sm:$0xf]
      %v289 = vld [vmem:[%s245 + $0x7c] sm:$0xf]
      %v290 = vld [vmem:[%s245 + $0x80] sm:$0xf]
      %v291 = vld [vmem:[%s245 + $0x84] sm:$0xf]
      %v292 = vld [vmem:[%s245 + $0x88] sm:$0xf]
      %v293 = vld [vmem:[%s245 + $0x8c] sm:$0xf]
      %v294 = vld [vmem:[%s245 + $0x90] sm:$0xf]
      %v295 = vld [vmem:[%s245 + $0x94] sm:$0xf]
      %v296 = vld [vmem:[%s1] sm:$0xf]
      %v297 = vld [vmem:[%s1 + $0x4] sm:$0xf]
      %v298 = vld [vmem:[%s1 + $0x8] sm:$0xf]
      %v299 = vld [vmem:[%s1 + $0xc] sm:$0xf]
      %v300 = vld [vmem:[%s1 + $0x10] sm:$0xf]
      %v301 = vld [vmem:[%s1 + $0x14] sm:$0xf]
      %v302 = vld [vmem:[%s1 + $0x18] sm:$0xf]
      %v303 = vld [vmem:[%s1 + $0x1c] sm:$0xf]
      %v304 = vld [vmem:[%s1 + $0x20] sm:$0xf]
      %v305 = vld [vmem:[%s1 + $0x24] sm:$0xf]
      %v306 = vld [vmem:[%s1 + $0x28] sm:$0xf]
      %v307 = vld [vmem:[%s1 + $0x2c] sm:$0xf]
      %v308 = vld [vmem:[%s1 + $0x30] sm:$0xf]
      %v309 = vld [vmem:[%s1 + $0x34] sm:$0xf]
      %v310 = vld [vmem:[%s1 + $0x38] sm:$0xf]
      %v311 = vld [vmem:[%s1 + $0x3c] sm:$0xf]
      %v312 = vld [vmem:[%s1 + $0x40] sm:$0xf]
      %v313 = vld [vmem:[%s1 + $0x44] sm:$0xf]
      %v314 = vld [vmem:[%s1 + $0x48] sm:$0xf]
      %v315 = vld [vmem:[%s1 + $0x4c] sm:$0xf]
      %v316 = vld [vmem:[%s1 + $0x50] sm:$0xf]
      %v317 = vld [vmem:[%s1 + $0x54] sm:$0xf]
      %v318 = vld [vmem:[%s1 + $0x58] sm:$0xf]
      %v319 = vld [vmem:[%s1 + $0x5c] sm:$0xf]
      %v320 = vld [vmem:[%s1 + $0x60] sm:$0xf]
      %v321 = vld [vmem:[%s1 + $0x64] sm:$0xf]
      %v322 = vld [vmem:[%s1 + $0x68] sm:$0xf]
      %v323 = vld [vmem:[%s1 + $0x6c] sm:$0xf]
      %v324 = vld [vmem:[%s1 + $0x70] sm:$0xf]
      %v325 = vld [vmem:[%s1 + $0x74] sm:$0xf]
      %v326 = vld [vmem:[%s1 + $0x78] sm:$0xf]
      %v327 = vld [vmem:[%s1 + $0x7c] sm:$0xf]
      %v328 = vld [vmem:[%s1 + $0x80] sm:$0xf]
      %v329 = vld [vmem:[%s1 + $0x84] sm:$0xf]
      %v330 = vld [vmem:[%s1 + $0x88] sm:$0xf]
      %v331 = vld [vmem:[%s1 + $0x8c] sm:$0xf]
      %v332 = vld [vmem:[%s1 + $0x90] sm:$0xf]
      %334 = vset.pattern.permute.xlu0 0
      %335 = vperm.xlu0 %334, %v296
      %v336 = vpop.permute.xlu0 %335
      %v339 = vunpack.c.l.s4 839922192
      %v340 = vunpack.c.0.s8 %v339
      %v341 = vlaneseq
      %v342 = vshrl.u32 %v341, 7
      %v343 = vsub.s32 %v340, %v342
      %v344 = vrot.slane %v336, %v343
      %346 = vset.pattern.permute.xlu0 0
      %347 = vperm.xlu0 %346, %v297
      %v348 = vpop.permute.xlu0 %347
      %v351 = vunpack.c.l.s4 839922192
      %v352 = vunpack.c.0.s8 %v351
      %v353 = vlaneseq
      %v354 = vshrl.u32 %v353, 7
      %v355 = vsub.s32 %v352, %v354
      %v356 = vrot.slane %v348, %v355
      %358 = vset.pattern.permute.xlu0 0
      %359 = vperm.xlu0 %358, %v298
      %v360 = vpop.permute.xlu0 %359
      %v363 = vunpack.c.l.s4 839922192
      %v364 = vunpack.c.0.s8 %v363
      %v365 = vlaneseq
      %v366 = vshrl.u32 %v365, 7
      %v367 = vsub.s32 %v364, %v366
      %v368 = vrot.slane %v360, %v367
      %370 = vset.pattern.permute.xlu0 0
      %371 = vperm.xlu0 %370, %v299
      %v372 = vpop.permute.xlu0 %371
      %v375 = vunpack.c.l.s4 839922192
      %v376 = vunpack.c.0.s8 %v375
      %v377 = vlaneseq
      %v378 = vshrl.u32 %v377, 7
      %v379 = vsub.s32 %v376, %v378
      %v380 = vrot.slane %v372, %v379
      %382 = vset.pattern.permute.xlu0 0
      %383 = vperm.xlu0 %382, %v300
      %v384 = vpop.permute.xlu0 %383
      %v387 = vunpack.c.l.s4 839922192
      %v388 = vunpack.c.0.s8 %v387
      %v389 = vlaneseq
      %v390 = vshrl.u32 %v389, 7
      %v391 = vsub.s32 %v388, %v390
      %v392 = vrot.slane %v384, %v391
      %394 = vset.pattern.permute.xlu0 0
      %395 = vperm.xlu0 %394, %v301
      %v396 = vpop.permute.xlu0 %395
      %v399 = vunpack.c.l.s4 839922192
      %v400 = vunpack.c.0.s8 %v399
      %v401 = vlaneseq
      %v402 = vshrl.u32 %v401, 7
      %v403 = vsub.s32 %v400, %v402
      %v404 = vrot.slane %v396, %v403
      %406 = vset.pattern.permute.xlu0 0
      %407 = vperm.xlu0 %406, %v302
      %v408 = vpop.permute.xlu0 %407
      %v411 = vunpack.c.l.s4 839922192
      %v412 = vunpack.c.0.s8 %v411
      %v413 = vlaneseq
      %v414 = vshrl.u32 %v413, 7
      %v415 = vsub.s32 %v412, %v414
      %v416 = vrot.slane %v408, %v415
      %418 = vset.pattern.permute.xlu0 0
      %419 = vperm.xlu0 %418, %v303
      %v420 = vpop.permute.xlu0 %419
      %v423 = vunpack.c.l.s4 839922192
      %v424 = vunpack.c.0.s8 %v423
      %v425 = vlaneseq
      %v426 = vshrl.u32 %v425, 7
      %v427 = vsub.s32 %v424, %v426
      %v428 = vrot.slane %v420, %v427
      %430 = vset.pattern.permute.xlu0 0
      %431 = vperm.xlu0 %430, %v304
      %v432 = vpop.permute.xlu0 %431
      %v435 = vunpack.c.l.s4 839922192
      %v436 = vunpack.c.0.s8 %v435
      %v437 = vlaneseq
      %v438 = vshrl.u32 %v437, 7
      %v439 = vsub.s32 %v436, %v438
      %v440 = vrot.slane %v432, %v439
      %442 = vset.pattern.permute.xlu0 0
      %443 = vperm.xlu0 %442, %v305
      %v444 = vpop.permute.xlu0 %443
      %v447 = vunpack.c.l.s4 839922192
      %v448 = vunpack.c.0.s8 %v447
      %v449 = vlaneseq
      %v450 = vshrl.u32 %v449, 7
      %v451 = vsub.s32 %v448, %v450
      %v452 = vrot.slane %v444, %v451
      %454 = vset.pattern.permute.xlu0 0
      %455 = vperm.xlu0 %454, %v306
      %v456 = vpop.permute.xlu0 %455
      %v459 = vunpack.c.l.s4 839922192
      %v460 = vunpack.c.0.s8 %v459
      %v461 = vlaneseq
      %v462 = vshrl.u32 %v461, 7
      %v463 = vsub.s32 %v460, %v462
      %v464 = vrot.slane %v456, %v463
      %466 = vset.pattern.permute.xlu0 0
      %467 = vperm.xlu0 %466, %v307
      %v468 = vpop.permute.xlu0 %467
      %v471 = vunpack.c.l.s4 839922192
      %v472 = vunpack.c.0.s8 %v471
      %v473 = vlaneseq
      %v474 = vshrl.u32 %v473, 7
      %v475 = vsub.s32 %v472, %v474
      %v476 = vrot.slane %v468, %v475
      %478 = vset.pattern.permute.xlu0 0
      %479 = vperm.xlu0 %478, %v308
      %v480 = vpop.permute.xlu0 %479
      %v483 = vunpack.c.l.s4 839922192
      %v484 = vunpack.c.0.s8 %v483
      %v485 = vlaneseq
      %v486 = vshrl.u32 %v485, 7
      %v487 = vsub.s32 %v484, %v486
      %v488 = vrot.slane %v480, %v487
      %490 = vset.pattern.permute.xlu0 0
      %491 = vperm.xlu0 %490, %v309
      %v492 = vpop.permute.xlu0 %491
      %v495 = vunpack.c.l.s4 839922192
      %v496 = vunpack.c.0.s8 %v495
      %v497 = vlaneseq
      %v498 = vshrl.u32 %v497, 7
      %v499 = vsub.s32 %v496, %v498
      %v500 = vrot.slane %v492, %v499
      %502 = vset.pattern.permute.xlu0 0
      %503 = vperm.xlu0 %502, %v310
      %v504 = vpop.permute.xlu0 %503
      %v507 = vunpack.c.l.s4 839922192
      %v508 = vunpack.c.0.s8 %v507
      %v509 = vlaneseq
      %v510 = vshrl.u32 %v509, 7
      %v511 = vsub.s32 %v508, %v510
      %v512 = vrot.slane %v504, %v511
      %514 = vset.pattern.permute.xlu0 0
      %515 = vperm.xlu0 %514, %v311
      %v516 = vpop.permute.xlu0 %515
      %v519 = vunpack.c.l.s4 839922192
      %v520 = vunpack.c.0.s8 %v519
      %v521 = vlaneseq
      %v522 = vshrl.u32 %v521, 7
      %v523 = vsub.s32 %v520, %v522
      %v524 = vrot.slane %v516, %v523
      %526 = vset.pattern.permute.xlu0 0
      %527 = vperm.xlu0 %526, %v312
      %v528 = vpop.permute.xlu0 %527
      %v531 = vunpack.c.l.s4 839922192
      %v532 = vunpack.c.0.s8 %v531
      %v533 = vlaneseq
      %v534 = vshrl.u32 %v533, 7
      %v535 = vsub.s32 %v532, %v534
      %v536 = vrot.slane %v528, %v535
      %538 = vset.pattern.permute.xlu0 0
      %539 = vperm.xlu0 %538, %v313
      %v540 = vpop.permute.xlu0 %539
      %v543 = vunpack.c.l.s4 839922192
      %v544 = vunpack.c.0.s8 %v543
      %v545 = vlaneseq
      %v546 = vshrl.u32 %v545, 7
      %v547 = vsub.s32 %v544, %v546
      %v548 = vrot.slane %v540, %v547
      %550 = vset.pattern.permute.xlu0 0
      %551 = vperm.xlu0 %550, %v314
      %v552 = vpop.permute.xlu0 %551
      %v555 = vunpack.c.l.s4 839922192
      %v556 = vunpack.c.0.s8 %v555
      %v557 = vlaneseq
      %v558 = vshrl.u32 %v557, 7
      %v559 = vsub.s32 %v556, %v558
      %v560 = vrot.slane %v552, %v559
      %562 = vset.pattern.permute.xlu0 0
      %563 = vperm.xlu0 %562, %v315
      %v564 = vpop.permute.xlu0 %563
      %v567 = vunpack.c.l.s4 839922192
      %v568 = vunpack.c.0.s8 %v567
      %v569 = vlaneseq
      %v570 = vshrl.u32 %v569, 7
      %v571 = vsub.s32 %v568, %v570
      %v572 = vrot.slane %v564, %v571
      %574 = vset.pattern.permute.xlu0 0
      %575 = vperm.xlu0 %574, %v316
      %v576 = vpop.permute.xlu0 %575
      %v579 = vunpack.c.l.s4 839922192
      %v580 = vunpack.c.0.s8 %v579
      %v581 = vlaneseq
      %v582 = vshrl.u32 %v581, 7
      %v583 = vsub.s32 %v580, %v582
      %v584 = vrot.slane %v576, %v583
      %586 = vset.pattern.permute.xlu0 0
      %587 = vperm.xlu0 %586, %v317
      %v588 = vpop.permute.xlu0 %587
      %v591 = vunpack.c.l.s4 839922192
      %v592 = vunpack.c.0.s8 %v591
      %v593 = vlaneseq
      %v594 = vshrl.u32 %v593, 7
      %v595 = vsub.s32 %v592, %v594
      %v596 = vrot.slane %v588, %v595
      %598 = vset.pattern.permute.xlu0 0
      %599 = vperm.xlu0 %598, %v318
      %v600 = vpop.permute.xlu0 %599
      %v603 = vunpack.c.l.s4 839922192
      %v604 = vunpack.c.0.s8 %v603
      %v605 = vlaneseq
      %v606 = vshrl.u32 %v605, 7
      %v607 = vsub.s32 %v604, %v606
      %v608 = vrot.slane %v600, %v607
      %610 = vset.pattern.permute.xlu0 0
      %611 = vperm.xlu0 %610, %v319
      %v612 = vpop.permute.xlu0 %611
      %v615 = vunpack.c.l.s4 839922192
      %v616 = vunpack.c.0.s8 %v615
      %v617 = vlaneseq
      %v618 = vshrl.u32 %v617, 7
      %v619 = vsub.s32 %v616, %v618
      %v620 = vrot.slane %v612, %v619
      %622 = vset.pattern.permute.xlu0 0
      %623 = vperm.xlu0 %622, %v320
      %v624 = vpop.permute.xlu0 %623
      %v627 = vunpack.c.l.s4 839922192
      %v628 = vunpack.c.0.s8 %v627
      %v629 = vlaneseq
      %v630 = vshrl.u32 %v629, 7
      %v631 = vsub.s32 %v628, %v630
      %v632 = vrot.slane %v624, %v631
      %634 = vset.pattern.permute.xlu0 0
      %635 = vperm.xlu0 %634, %v321
      %v636 = vpop.permute.xlu0 %635
      %v639 = vunpack.c.l.s4 839922192
      %v640 = vunpack.c.0.s8 %v639
      %v641 = vlaneseq
      %v642 = vshrl.u32 %v641, 7
      %v643 = vsub.s32 %v640, %v642
      %v644 = vrot.slane %v636, %v643
      %646 = vset.pattern.permute.xlu0 0
      %647 = vperm.xlu0 %646, %v322
      %v648 = vpop.permute.xlu0 %647
      %v651 = vunpack.c.l.s4 839922192
      %v652 = vunpack.c.0.s8 %v651
      %v653 = vlaneseq
      %v654 = vshrl.u32 %v653, 7
      %v655 = vsub.s32 %v652, %v654
      %v656 = vrot.slane %v648, %v655
      %658 = vset.pattern.permute.xlu0 0
      %659 = vperm.xlu0 %658, %v323
      %v660 = vpop.permute.xlu0 %659
      %v663 = vunpack.c.l.s4 839922192
      %v664 = vunpack.c.0.s8 %v663
      %v665 = vlaneseq
      %v666 = vshrl.u32 %v665, 7
      %v667 = vsub.s32 %v664, %v666
      %v668 = vrot.slane %v660, %v667
      %670 = vset.pattern.permute.xlu0 0
      %671 = vperm.xlu0 %670, %v324
      %v672 = vpop.permute.xlu0 %671
      %v675 = vunpack.c.l.s4 839922192
      %v676 = vunpack.c.0.s8 %v675
      %v677 = vlaneseq
      %v678 = vshrl.u32 %v677, 7
      %v679 = vsub.s32 %v676, %v678
      %v680 = vrot.slane %v672, %v679
      %682 = vset.pattern.permute.xlu0 0
      %683 = vperm.xlu0 %682, %v325
      %v684 = vpop.permute.xlu0 %683
      %v687 = vunpack.c.l.s4 839922192
      %v688 = vunpack.c.0.s8 %v687
      %v689 = vlaneseq
      %v690 = vshrl.u32 %v689, 7
      %v691 = vsub.s32 %v688, %v690
      %v692 = vrot.slane %v684, %v691
      %694 = vset.pattern.permute.xlu0 0
      %695 = vperm.xlu0 %694, %v326
      %v696 = vpop.permute.xlu0 %695
      %v699 = vunpack.c.l.s4 839922192
      %v700 = vunpack.c.0.s8 %v699
      %v701 = vlaneseq
      %v702 = vshrl.u32 %v701, 7
      %v703 = vsub.s32 %v700, %v702
      %v704 = vrot.slane %v696, %v703
      %706 = vset.pattern.permute.xlu0 0
      %707 = vperm.xlu0 %706, %v327
      %v708 = vpop.permute.xlu0 %707
      %v711 = vunpack.c.l.s4 839922192
      %v712 = vunpack.c.0.s8 %v711
      %v713 = vlaneseq
      %v714 = vshrl.u32 %v713, 7
      %v715 = vsub.s32 %v712, %v714
      %v716 = vrot.slane %v708, %v715
      %718 = vset.pattern.permute.xlu0 0
      %719 = vperm.xlu0 %718, %v328
      %v720 = vpop.permute.xlu0 %719
      %v723 = vunpack.c.l.s4 839922192
      %v724 = vunpack.c.0.s8 %v723
      %v725 = vlaneseq
      %v726 = vshrl.u32 %v725, 7
      %v727 = vsub.s32 %v724, %v726
      %v728 = vrot.slane %v720, %v727
      %730 = vset.pattern.permute.xlu0 0
      %731 = vperm.xlu0 %730, %v329
      %v732 = vpop.permute.xlu0 %731
      %v735 = vunpack.c.l.s4 839922192
      %v736 = vunpack.c.0.s8 %v735
      %v737 = vlaneseq
      %v738 = vshrl.u32 %v737, 7
      %v739 = vsub.s32 %v736, %v738
      %v740 = vrot.slane %v732, %v739
      %742 = vset.pattern.permute.xlu0 0
      %743 = vperm.xlu0 %742, %v330
      %v744 = vpop.permute.xlu0 %743
      %v747 = vunpack.c.l.s4 839922192
      %v748 = vunpack.c.0.s8 %v747
      %v749 = vlaneseq
      %v750 = vshrl.u32 %v749, 7
      %v751 = vsub.s32 %v748, %v750
      %v752 = vrot.slane %v744, %v751
      %754 = vset.pattern.permute.xlu0 0
      %755 = vperm.xlu0 %754, %v331
      %v756 = vpop.permute.xlu0 %755
      %v759 = vunpack.c.l.s4 839922192
      %v760 = vunpack.c.0.s8 %v759
      %v761 = vlaneseq
      %v762 = vshrl.u32 %v761, 7
      %v763 = vsub.s32 %v760, %v762
      %v764 = vrot.slane %v756, %v763
      %766 = vset.pattern.permute.xlu0 0
      %767 = vperm.xlu0 %766, %v332
      %v768 = vpop.permute.xlu0 %767
      %v771 = vunpack.c.l.s4 839922192
      %v772 = vunpack.c.0.s8 %v771
      %v773 = vlaneseq
      %v774 = vshrl.u32 %v773, 7
      %v775 = vsub.s32 %v772, %v774
      %v776 = vrot.slane %v768, %v775
      %v777 = vmul.bf16 %v258, %v344
      %v778 = vmul.bf16 %v259, %v356
      %v779 = vmul.bf16 %v260, %v368
      %v780 = vmul.bf16 %v261, %v380
      %v781 = vmul.bf16 %v262, %v392
      %v782 = vmul.bf16 %v263, %v404
      %v783 = vmul.bf16 %v264, %v416
      %v784 = vmul.bf16 %v265, %v428
      %v785 = vmul.bf16 %v266, %v440
      %v786 = vmul.bf16 %v267, %v452
      %v787 = vmul.bf16 %v268, %v464
      %v788 = vmul.bf16 %v269, %v476
      %v789 = vmul.bf16 %v270, %v488
      %v790 = vmul.bf16 %v271, %v500
      %v791 = vmul.bf16 %v272, %v512
      %v792 = vmul.bf16 %v273, %v524
      %v793 = vmul.bf16 %v274, %v536
      %v794 = vmul.bf16 %v275, %v548
      %v795 = vmul.bf16 %v276, %v560
      %v796 = vmul.bf16 %v277, %v572
      %v797 = vmul.bf16 %v278, %v584
      %v798 = vmul.bf16 %v279, %v596
      %v799 = vmul.bf16 %v280, %v608
      %v800 = vmul.bf16 %v281, %v620
      %v801 = vmul.bf16 %v282, %v632
      %v802 = vmul.bf16 %v283, %v644
      %v803 = vmul.bf16 %v284, %v656
      %v804 = vmul.bf16 %v285, %v668
      %v805 = vmul.bf16 %v286, %v680
      %v806 = vmul.bf16 %v287, %v692
      %v807 = vmul.bf16 %v288, %v704
      %v808 = vmul.bf16 %v289, %v716
      %v809 = vmul.bf16 %v290, %v728
      %v810 = vmul.bf16 %v291, %v740
      %v811 = vmul.bf16 %v292, %v752
      %v812 = vmul.bf16 %v293, %v764
      %v813 = vmul.bf16 %v294, %v776
      %v814 = vld [vmem:[%s1 + $0x94] sm:$0xf]
      %815 = vset.pattern.permute.xlu0 1
      %816 = vperm.xlu0 %815, %v297
      %v817 = vpop.permute.xlu0 %816
      %v820 = vunpack.c.l.s4 839922192
      %v821 = vunpack.c.0.s8 %v820
      %v822 = vlaneseq
      %v823 = vshrl.u32 %v822, 7
      %v824 = vsub.s32 %v821, %v823
      %v825 = vrot.slane %v817, %v824
      %826 = vset.pattern.permute.xlu0 1
      %827 = vperm.xlu0 %826, %v298
      %v828 = vpop.permute.xlu0 %827
      %v831 = vunpack.c.l.s4 839922192
      %v832 = vunpack.c.0.s8 %v831
      %v833 = vlaneseq
      %v834 = vshrl.u32 %v833, 7
      %v835 = vsub.s32 %v832, %v834
      %v836 = vrot.slane %v828, %v835
      %837 = vset.pattern.permute.xlu0 1
      %838 = vperm.xlu0 %837, %v299
      %v839 = vpop.permute.xlu0 %838
      %v842 = vunpack.c.l.s4 839922192
      %v843 = vunpack.c.0.s8 %v842
      %v844 = vlaneseq
      %v845 = vshrl.u32 %v844, 7
      %v846 = vsub.s32 %v843, %v845
      %v847 = vrot.slane %v839, %v846
      %848 = vset.pattern.permute.xlu0 1
      %849 = vperm.xlu0 %848, %v300
      %v850 = vpop.permute.xlu0 %849
      %v853 = vunpack.c.l.s4 839922192
      %v854 = vunpack.c.0.s8 %v853
      %v855 = vlaneseq
      %v856 = vshrl.u32 %v855, 7
      %v857 = vsub.s32 %v854, %v856
      %v858 = vrot.slane %v850, %v857
      %859 = vset.pattern.permute.xlu0 1
      %860 = vperm.xlu0 %859, %v301
      %v861 = vpop.permute.xlu0 %860
      %v864 = vunpack.c.l.s4 839922192
      %v865 = vunpack.c.0.s8 %v864
      %v866 = vlaneseq
      %v867 = vshrl.u32 %v866, 7
      %v868 = vsub.s32 %v865, %v867
      %v869 = vrot.slane %v861, %v868
      %870 = vset.pattern.permute.xlu0 1
      %871 = vperm.xlu0 %870, %v302
      %v872 = vpop.permute.xlu0 %871
      %v875 = vunpack.c.l.s4 839922192
      %v876 = vunpack.c.0.s8 %v875
      %v877 = vlaneseq
      %v878 = vshrl.u32 %v877, 7
      %v879 = vsub.s32 %v876, %v878
      %v880 = vrot.slane %v872, %v879
      %881 = vset.pattern.permute.xlu0 1
      %882 = vperm.xlu0 %881, %v303
      %v883 = vpop.permute.xlu0 %882
      %v886 = vunpack.c.l.s4 839922192
      %v887 = vunpack.c.0.s8 %v886
      %v888 = vlaneseq
      %v889 = vshrl.u32 %v888, 7
      %v890 = vsub.s32 %v887, %v889
      %v891 = vrot.slane %v883, %v890
      %892 = vset.pattern.permute.xlu0 1
      %893 = vperm.xlu0 %892, %v304
      %v894 = vpop.permute.xlu0 %893
      %v897 = vunpack.c.l.s4 839922192
      %v898 = vunpack.c.0.s8 %v897
      %v899 = vlaneseq
      %v900 = vshrl.u32 %v899, 7
      %v901 = vsub.s32 %v898, %v900
      %v902 = vrot.slane %v894, %v901
      %903 = vset.pattern.permute.xlu0 1
      %904 = vperm.xlu0 %903, %v305
      %v905 = vpop.permute.xlu0 %904
      %v908 = vunpack.c.l.s4 839922192
      %v909 = vunpack.c.0.s8 %v908
      %v910 = vlaneseq
      %v911 = vshrl.u32 %v910, 7
      %v912 = vsub.s32 %v909, %v911
      %v913 = vrot.slane %v905, %v912
      %914 = vset.pattern.permute.xlu0 1
      %915 = vperm.xlu0 %914, %v306
      %v916 = vpop.permute.xlu0 %915
      %v919 = vunpack.c.l.s4 839922192
      %v920 = vunpack.c.0.s8 %v919
      %v921 = vlaneseq
      %v922 = vshrl.u32 %v921, 7
      %v923 = vsub.s32 %v920, %v922
      %v924 = vrot.slane %v916, %v923
      %925 = vset.pattern.permute.xlu0 1
      %926 = vperm.xlu0 %925, %v307
      %v927 = vpop.permute.xlu0 %926
      %v930 = vunpack.c.l.s4 839922192
      %v931 = vunpack.c.0.s8 %v930
      %v932 = vlaneseq
      %v933 = vshrl.u32 %v932, 7
      %v934 = vsub.s32 %v931, %v933
      %v935 = vrot.slane %v927, %v934
      %936 = vset.pattern.permute.xlu0 1
      %937 = vperm.xlu0 %936, %v308
      %v938 = vpop.permute.xlu0 %937
      %v941 = vunpack.c.l.s4 839922192
      %v942 = vunpack.c.0.s8 %v941
      %v943 = vlaneseq
      %v944 = vshrl.u32 %v943, 7
      %v945 = vsub.s32 %v942, %v944
      %v946 = vrot.slane %v938, %v945
      %947 = vset.pattern.permute.xlu0 1
      %948 = vperm.xlu0 %947, %v309
      %v949 = vpop.permute.xlu0 %948
      %v952 = vunpack.c.l.s4 839922192
      %v953 = vunpack.c.0.s8 %v952
      %v954 = vlaneseq
      %v955 = vshrl.u32 %v954, 7
      %v956 = vsub.s32 %v953, %v955
      %v957 = vrot.slane %v949, %v956
      %958 = vset.pattern.permute.xlu0 1
      %959 = vperm.xlu0 %958, %v310
      %v960 = vpop.permute.xlu0 %959
      %v963 = vunpack.c.l.s4 839922192
      %v964 = vunpack.c.0.s8 %v963
      %v965 = vlaneseq
      %v966 = vshrl.u32 %v965, 7
      %v967 = vsub.s32 %v964, %v966
      %v968 = vrot.slane %v960, %v967
      %969 = vset.pattern.permute.xlu0 1
      %970 = vperm.xlu0 %969, %v311
      %v971 = vpop.permute.xlu0 %970
      %v974 = vunpack.c.l.s4 839922192
      %v975 = vunpack.c.0.s8 %v974
      %v976 = vlaneseq
      %v977 = vshrl.u32 %v976, 7
      %v978 = vsub.s32 %v975, %v977
      %v979 = vrot.slane %v971, %v978
      %980 = vset.pattern.permute.xlu0 1
      %981 = vperm.xlu0 %980, %v312
      %v982 = vpop.permute.xlu0 %981
      %v985 = vunpack.c.l.s4 839922192
      %v986 = vunpack.c.0.s8 %v985
      %v987 = vlaneseq
      %v988 = vshrl.u32 %v987, 7
      %v989 = vsub.s32 %v986, %v988
      %v990 = vrot.slane %v982, %v989
      %991 = vset.pattern.permute.xlu0 1
      %992 = vperm.xlu0 %991, %v313
      %v993 = vpop.permute.xlu0 %992
      %v996 = vunpack.c.l.s4 839922192
      %v997 = vunpack.c.0.s8 %v996
      %v998 = vlaneseq
      %v999 = vshrl.u32 %v998, 7
      %v1000 = vsub.s32 %v997, %v999
      %v1001 = vrot.slane %v993, %v1000
      %1002 = vset.pattern.permute.xlu0 1
      %1003 = vperm.xlu0 %1002, %v314
      %v1004 = vpop.permute.xlu0 %1003
      %v1007 = vunpack.c.l.s4 839922192
      %v1008 = vunpack.c.0.s8 %v1007
      %v1009 = vlaneseq
      %v1010 = vshrl.u32 %v1009, 7
      %v1011 = vsub.s32 %v1008, %v1010
      %v1012 = vrot.slane %v1004, %v1011
      %1013 = vset.pattern.permute.xlu0 1
      %1014 = vperm.xlu0 %1013, %v315
      %v1015 = vpop.permute.xlu0 %1014
      %v1018 = vunpack.c.l.s4 839922192
      %v1019 = vunpack.c.0.s8 %v1018
      %v1020 = vlaneseq
      %v1021 = vshrl.u32 %v1020, 7
      %v1022 = vsub.s32 %v1019, %v1021
      %v1023 = vrot.slane %v1015, %v1022
      %1024 = vset.pattern.permute.xlu0 1
      %1025 = vperm.xlu0 %1024, %v316
      %v1026 = vpop.permute.xlu0 %1025
      %v1029 = vunpack.c.l.s4 839922192
      %v1030 = vunpack.c.0.s8 %v1029
      %v1031 = vlaneseq
      %v1032 = vshrl.u32 %v1031, 7
      %v1033 = vsub.s32 %v1030, %v1032
      %v1034 = vrot.slane %v1026, %v1033
      %1035 = vset.pattern.permute.xlu0 1
      %1036 = vperm.xlu0 %1035, %v317
      %v1037 = vpop.permute.xlu0 %1036
      %v1040 = vunpack.c.l.s4 839922192
      %v1041 = vunpack.c.0.s8 %v1040
      %v1042 = vlaneseq
      %v1043 = vshrl.u32 %v1042, 7
      %v1044 = vsub.s32 %v1041, %v1043
      %v1045 = vrot.slane %v1037, %v1044
      %1046 = vset.pattern.permute.xlu0 1
      %1047 = vperm.xlu0 %1046, %v318
      %v1048 = vpop.permute.xlu0 %1047
      %v1051 = vunpack.c.l.s4 839922192
      %v1052 = vunpack.c.0.s8 %v1051
      %v1053 = vlaneseq
      %v1054 = vshrl.u32 %v1053, 7
      %v1055 = vsub.s32 %v1052, %v1054
      %v1056 = vrot.slane %v1048, %v1055
      %1057 = vset.pattern.permute.xlu0 1
      %1058 = vperm.xlu0 %1057, %v319
      %v1059 = vpop.permute.xlu0 %1058
      %v1062 = vunpack.c.l.s4 839922192
      %v1063 = vunpack.c.0.s8 %v1062
      %v1064 = vlaneseq
      %v1065 = vshrl.u32 %v1064, 7
      %v1066 = vsub.s32 %v1063, %v1065
      %v1067 = vrot.slane %v1059, %v1066
      %1068 = vset.pattern.permute.xlu0 1
      %1069 = vperm.xlu0 %1068, %v320
      %v1070 = vpop.permute.xlu0 %1069
      %v1073 = vunpack.c.l.s4 839922192
      %v1074 = vunpack.c.0.s8 %v1073
      %v1075 = vlaneseq
      %v1076 = vshrl.u32 %v1075, 7
      %v1077 = vsub.s32 %v1074, %v1076
      %v1078 = vrot.slane %v1070, %v1077
      %1079 = vset.pattern.permute.xlu0 1
      %1080 = vperm.xlu0 %1079, %v321
      %v1081 = vpop.permute.xlu0 %1080
      %v1084 = vunpack.c.l.s4 839922192
      %v1085 = vunpack.c.0.s8 %v1084
      %v1086 = vlaneseq
      %v1087 = vshrl.u32 %v1086, 7
      %v1088 = vsub.s32 %v1085, %v1087
      %v1089 = vrot.slane %v1081, %v1088
      %1090 = vset.pattern.permute.xlu0 1
      %1091 = vperm.xlu0 %1090, %v322
      %v1092 = vpop.permute.xlu0 %1091
      %v1095 = vunpack.c.l.s4 839922192
      %v1096 = vunpack.c.0.s8 %v1095
      %v1097 = vlaneseq
      %v1098 = vshrl.u32 %v1097, 7
      %v1099 = vsub.s32 %v1096, %v1098
      %v1100 = vrot.slane %v1092, %v1099
      %1101 = vset.pattern.permute.xlu0 1
      %1102 = vperm.xlu0 %1101, %v323
      %v1103 = vpop.permute.xlu0 %1102
      %v1106 = vunpack.c.l.s4 839922192
      %v1107 = vunpack.c.0.s8 %v1106
      %v1108 = vlaneseq
      %v1109 = vshrl.u32 %v1108, 7
      %v1110 = vsub.s32 %v1107, %v1109
      %v1111 = vrot.slane %v1103, %v1110
      %1112 = vset.pattern.permute.xlu0 1
      %1113 = vperm.xlu0 %1112, %v324
      %v1114 = vpop.permute.xlu0 %1113
      %v1117 = vunpack.c.l.s4 839922192
      %v1118 = vunpack.c.0.s8 %v1117
      %v1119 = vlaneseq
      %v1120 = vshrl.u32 %v1119, 7
      %v1121 = vsub.s32 %v1118, %v1120
      %v1122 = vrot.slane %v1114, %v1121
      %1123 = vset.pattern.permute.xlu0 1
      %1124 = vperm.xlu0 %1123, %v325
      %v1125 = vpop.permute.xlu0 %1124
      %v1128 = vunpack.c.l.s4 839922192
      %v1129 = vunpack.c.0.s8 %v1128
      %v1130 = vlaneseq
      %v1131 = vshrl.u32 %v1130, 7
      %v1132 = vsub.s32 %v1129, %v1131
      %v1133 = vrot.slane %v1125, %v1132
      %1134 = vset.pattern.permute.xlu0 1
      %1135 = vperm.xlu0 %1134, %v326
      %v1136 = vpop.permute.xlu0 %1135
      %v1139 = vunpack.c.l.s4 839922192
      %v1140 = vunpack.c.0.s8 %v1139
      %v1141 = vlaneseq
      %v1142 = vshrl.u32 %v1141, 7
      %v1143 = vsub.s32 %v1140, %v1142
      %v1144 = vrot.slane %v1136, %v1143
      %1145 = vset.pattern.permute.xlu0 1
      %1146 = vperm.xlu0 %1145, %v327
      %v1147 = vpop.permute.xlu0 %1146
      %v1150 = vunpack.c.l.s4 839922192
      %v1151 = vunpack.c.0.s8 %v1150
      %v1152 = vlaneseq
      %v1153 = vshrl.u32 %v1152, 7
      %v1154 = vsub.s32 %v1151, %v1153
      %v1155 = vrot.slane %v1147, %v1154
      %1156 = vset.pattern.permute.xlu0 1
      %1157 = vperm.xlu0 %1156, %v328
      %v1158 = vpop.permute.xlu0 %1157
      %v1161 = vunpack.c.l.s4 839922192
      %v1162 = vunpack.c.0.s8 %v1161
      %v1163 = vlaneseq
      %v1164 = vshrl.u32 %v1163, 7
      %v1165 = vsub.s32 %v1162, %v1164
      %v1166 = vrot.slane %v1158, %v1165
      %1167 = vset.pattern.permute.xlu0 1
      %1168 = vperm.xlu0 %1167, %v329
      %v1169 = vpop.permute.xlu0 %1168
      %v1172 = vunpack.c.l.s4 839922192
      %v1173 = vunpack.c.0.s8 %v1172
      %v1174 = vlaneseq
      %v1175 = vshrl.u32 %v1174, 7
      %v1176 = vsub.s32 %v1173, %v1175
      %v1177 = vrot.slane %v1169, %v1176
      %1178 = vset.pattern.permute.xlu0 1
      %1179 = vperm.xlu0 %1178, %v330
      %v1180 = vpop.permute.xlu0 %1179
      %v1183 = vunpack.c.l.s4 839922192
      %v1184 = vunpack.c.0.s8 %v1183
      %v1185 = vlaneseq
      %v1186 = vshrl.u32 %v1185, 7
      %v1187 = vsub.s32 %v1184, %v1186
      %v1188 = vrot.slane %v1180, %v1187
      %1189 = vset.pattern.permute.xlu0 1
      %1190 = vperm.xlu0 %1189, %v331
      %v1191 = vpop.permute.xlu0 %1190
      %v1194 = vunpack.c.l.s4 839922192
      %v1195 = vunpack.c.0.s8 %v1194
      %v1196 = vlaneseq
      %v1197 = vshrl.u32 %v1196, 7
      %v1198 = vsub.s32 %v1195, %v1197
      %v1199 = vrot.slane %v1191, %v1198
      %1200 = vset.pattern.permute.xlu0 1
      %1201 = vperm.xlu0 %1200, %v332
      %v1202 = vpop.permute.xlu0 %1201
      %v1205 = vunpack.c.l.s4 839922192
      %v1206 = vunpack.c.0.s8 %v1205
      %v1207 = vlaneseq
      %v1208 = vshrl.u32 %v1207, 7
      %v1209 = vsub.s32 %v1206, %v1208
      %v1210 = vrot.slane %v1202, %v1209
      %1212 = vset.pattern.permute.xlu0 1
      %1213 = vperm.xlu0 %1212, %v814
      %v1214 = vpop.permute.xlu0 %1213
      %v1217 = vunpack.c.l.s4 839922192
      %v1218 = vunpack.c.0.s8 %v1217
      %v1219 = vlaneseq
      %v1220 = vshrl.u32 %v1219, 7
      %v1221 = vsub.s32 %v1218, %v1220
      %v1222 = vrot.slane %v1214, %v1221
      %v1223 = vmul.bf16 %v259, %v825
      %v1224 = vmul.bf16 %v260, %v836
      %v1225 = vmul.bf16 %v261, %v847
      %v1226 = vmul.bf16 %v262, %v858
      %v1227 = vmul.bf16 %v263, %v869
      %v1228 = vmul.bf16 %v264, %v880
      %v1229 = vmul.bf16 %v265, %v891
      %v1230 = vmul.bf16 %v266, %v902
      %v1231 = vmul.bf16 %v267, %v913
      %v1232 = vmul.bf16 %v268, %v924
      %v1233 = vmul.bf16 %v269, %v935
      %v1234 = vmul.bf16 %v270, %v946
      %v1235 = vmul.bf16 %v271, %v957
      %v1236 = vmul.bf16 %v272, %v968
      %v1237 = vmul.bf16 %v273, %v979
      %v1238 = vmul.bf16 %v274, %v990
      %v1239 = vmul.bf16 %v275, %v1001
      %v1240 = vmul.bf16 %v276, %v1012
      %v1241 = vmul.bf16 %v277, %v1023
      %v1242 = vmul.bf16 %v278, %v1034
      %v1243 = vmul.bf16 %v279, %v1045
      %v1244 = vmul.bf16 %v280, %v1056
      %v1245 = vmul.bf16 %v281, %v1067
      %v1246 = vmul.bf16 %v282, %v1078
      %v1247 = vmul.bf16 %v283, %v1089
      %v1248 = vmul.bf16 %v284, %v1100
      %v1249 = vmul.bf16 %v285, %v1111
      %v1250 = vmul.bf16 %v286, %v1122
      %v1251 = vmul.bf16 %v287, %v1133
      %v1252 = vmul.bf16 %v288, %v1144
      %v1253 = vmul.bf16 %v289, %v1155
      %v1254 = vmul.bf16 %v290, %v1166
      %v1255 = vmul.bf16 %v291, %v1177
      %v1256 = vmul.bf16 %v292, %v1188
      %v1257 = vmul.bf16 %v293, %v1199
      %v1258 = vmul.bf16 %v294, %v1210
      %v1259 = vmul.bf16 %v295, %v1222
      %v1260 = vld [vmem:[%s2] sm:$0xf]
      %v1261 = vld [vmem:[%s2 + $0x4] sm:$0xf]
      %v1295 = vunpack.c.l.b16 %v777
      %v1296 = vunpack.c.l.b16 %v778
      %v1297 = vunpack.c.l.b16 %v779
      %v1298 = vunpack.c.l.b16 %v780
      %v1299 = vunpack.c.l.b16 %v781
      %v1300 = vunpack.c.l.b16 %v782
      %v1301 = vunpack.c.l.b16 %v783
      %v1302 = vunpack.c.l.b16 %v784
      %v1303 = vunpack.c.l.b16 %v785
      %v1304 = vunpack.c.l.b16 %v786
      %v1305 = vunpack.c.l.b16 %v787
      %v1306 = vunpack.c.l.b16 %v788
      %v1307 = vunpack.c.l.b16 %v789
      %v1308 = vunpack.c.l.b16 %v790
      %v1309 = vunpack.c.l.b16 %v791
      %v1310 = vunpack.c.l.b16 %v792
      %v1311 = vunpack.c.l.b16 %v793
      %v1312 = vunpack.c.l.b16 %v794
      %v1313 = vunpack.c.l.b16 %v795
      %v1314 = vunpack.c.l.b16 %v796
      %v1315 = vunpack.c.l.b16 %v797
      %v1316 = vunpack.c.l.b16 %v798
      %v1317 = vunpack.c.l.b16 %v799
      %v1318 = vunpack.c.l.b16 %v800
      %v1319 = vunpack.c.l.b16 %v801
      %v1320 = vunpack.c.l.b16 %v802
      %v1321 = vunpack.c.l.b16 %v803
      %v1322 = vunpack.c.l.b16 %v804
      %v1323 = vunpack.c.l.b16 %v805
      %v1324 = vunpack.c.l.b16 %v806
      %v1325 = vunpack.c.l.b16 %v807
      %v1326 = vunpack.c.l.b16 %v808
      %v1327 = vunpack.c.l.b16 %v809
      %v1328 = vpack.c.b16 %v1296, %v1295
      %v1329 = vpack.c.b16 %v1298, %v1297
      %v1330 = vpack.c.b16 %v1300, %v1299
      %v1331 = vpack.c.b16 %v1302, %v1301
      %v1332 = vpack.c.b16 %v1304, %v1303
      %v1333 = vpack.c.b16 %v1306, %v1305
      %v1334 = vpack.c.b16 %v1308, %v1307
      %v1335 = vpack.c.b16 %v1310, %v1309
      %v1336 = vpack.c.b16 %v1312, %v1311
      %v1337 = vpack.c.b16 %v1314, %v1313
      %v1338 = vpack.c.b16 %v1316, %v1315
      %v1339 = vpack.c.b16 %v1318, %v1317
      %v1340 = vpack.c.b16 %v1320, %v1319
      %v1341 = vpack.c.b16 %v1322, %v1321
      %v1342 = vpack.c.b16 %v1324, %v1323
      %v1343 = vpack.c.b16 %v1326, %v1325
      %v1344 = vpack.c.b16 %v1327, %v1327
      %vm1345 = vsmask.f32 4352
      %v1347 = vshrl.u32 %v1328, 16
      %v1349 = vrot.slane %v1347, 3
      %v1350 = vshll.u32 %v1328, 16
      %v1352 = vrot.slane %v1350, 4
      %v1353 = vor.u32 %v1349, %v1352
      %v1355 = vshrl.u32 %v1329, 16
      %v1357 = vrot.slane %v1355, 3
      %v1358 = vshll.u32 %v1329, 16
      %v1360 = vrot.slane %v1358, 4
      %v1361 = vor.u32 %v1357, %v1360
      %v1362 = vsel %vm1345, %v1353, %v1361
      %v1364 = vshrl.u32 %v1330, 16
      %v1366 = vrot.slane %v1364, 3
      %v1367 = vshll.u32 %v1330, 16
      %v1369 = vrot.slane %v1367, 4
      %v1370 = vor.u32 %v1366, %v1369
      %v1371 = vsel %vm1345, %v1361, %v1370
      %v1373 = vshrl.u32 %v1331, 16
      %v1375 = vrot.slane %v1373, 3
      %v1376 = vshll.u32 %v1331, 16
      %v1378 = vrot.slane %v1376, 4
      %v1379 = vor.u32 %v1375, %v1378
      %v1380 = vsel %vm1345, %v1370, %v1379
      %v1382 = vshrl.u32 %v1332, 16
      %v1384 = vrot.slane %v1382, 3
      %v1385 = vshll.u32 %v1332, 16
      %v1387 = vrot.slane %v1385, 4
      %v1388 = vor.u32 %v1384, %v1387
      %v1389 = vsel %vm1345, %v1379, %v1388
      %v1391 = vshrl.u32 %v1333, 16
      %v1393 = vrot.slane %v1391, 3
      %v1394 = vshll.u32 %v1333, 16
      %v1396 = vrot.slane %v1394, 4
      %v1397 = vor.u32 %v1393, %v1396
      %v1398 = vsel %vm1345, %v1388, %v1397
      %v1400 = vshrl.u32 %v1334, 16
      %v1402 = vrot.slane %v1400, 3
      %v1403 = vshll.u32 %v1334, 16
      %v1405 = vrot.slane %v1403, 4
      %v1406 = vor.u32 %v1402, %v1405
      %v1407 = vsel %vm1345, %v1397, %v1406
      %v1409 = vshrl.u32 %v1335, 16
      %v1411 = vrot.slane %v1409, 3
      %v1412 = vshll.u32 %v1335, 16
      %v1414 = vrot.slane %v1412, 4
      %v1415 = vor.u32 %v1411, %v1414
      %v1416 = vsel %vm1345, %v1406, %v1415
      %v1418 = vshrl.u32 %v1336, 16
      %v1420 = vrot.slane %v1418, 3
      %v1421 = vshll.u32 %v1336, 16
      %v1423 = vrot.slane %v1421, 4
      %v1424 = vor.u32 %v1420, %v1423
      %v1425 = vsel %vm1345, %v1415, %v1424
      %v1427 = vshrl.u32 %v1337, 16
      %v1429 = vrot.slane %v1427, 3
      %v1430 = vshll.u32 %v1337, 16
      %v1432 = vrot.slane %v1430, 4
      %v1433 = vor.u32 %v1429, %v1432
      %v1434 = vsel %vm1345, %v1424, %v1433
      %v1436 = vshrl.u32 %v1338, 16
      %v1438 = vrot.slane %v1436, 3
      %v1439 = vshll.u32 %v1338, 16
      %v1441 = vrot.slane %v1439, 4
      %v1442 = vor.u32 %v1438, %v1441
      %v1443 = vsel %vm1345, %v1433, %v1442
      %v1445 = vshrl.u32 %v1339, 16
      %v1447 = vrot.slane %v1445, 3
      %v1448 = vshll.u32 %v1339, 16
      %v1450 = vrot.slane %v1448, 4
      %v1451 = vor.u32 %v1447, %v1450
      %v1452 = vsel %vm1345, %v1442, %v1451
      %v1454 = vshrl.u32 %v1340, 16
      %v1456 = vrot.slane %v1454, 3
      %v1457 = vshll.u32 %v1340, 16
      %v1459 = vrot.slane %v1457, 4
      %v1460 = vor.u32 %v1456, %v1459
      %v1461 = vsel %vm1345, %v1451, %v1460
      %v1463 = vshrl.u32 %v1341, 16
      %v1465 = vrot.slane %v1463, 3
      %v1466 = vshll.u32 %v1341, 16
      %v1468 = vrot.slane %v1466, 4
      %v1469 = vor.u32 %v1465, %v1468
      %v1470 = vsel %vm1345, %v1460, %v1469
      %v1472 = vshrl.u32 %v1342, 16
      %v1474 = vrot.slane %v1472, 3
      %v1475 = vshll.u32 %v1342, 16
      %v1477 = vrot.slane %v1475, 4
      %v1478 = vor.u32 %v1474, %v1477
      %v1479 = vsel %vm1345, %v1469, %v1478
      %v1481 = vshrl.u32 %v1343, 16
      %v1483 = vrot.slane %v1481, 3
      %v1484 = vshll.u32 %v1343, 16
      %v1486 = vrot.slane %v1484, 4
      %v1487 = vor.u32 %v1483, %v1486
      %v1488 = vsel %vm1345, %v1478, %v1487
      %v1490 = vshrl.u32 %v1344, 16
      %v1492 = vrot.slane %v1490, 3
      %v1493 = vshll.u32 %v1344, 16
      %v1495 = vrot.slane %v1493, 4
      %v1496 = vor.u32 %v1492, %v1495
      %v1497 = vsel %vm1345, %v1487, %v1496
      %v1500 = vunpack.c.l.b16 %v1260
      %v1501 = vunpack.c.l.b16 %v1261
      %v1502 = vpack.c.b16 %v1501, %v1500
      %vm1504 = vcmask 130048
      %v1506 = vsel %vm1504, %v1362, 0
      %v1509 = vsel %vm1504, %v1371, 0
      %v1512 = vsel %vm1504, %v1380, 0
      %v1515 = vsel %vm1504, %v1389, 0
      %v1518 = vsel %vm1504, %v1398, 0
      %v1521 = vsel %vm1504, %v1407, 0
      %v1524 = vsel %vm1504, %v1416, 0
      %v1527 = vsel %vm1504, %v1425, 0
      %v1530 = vsel %vm1504, %v1434, 0
      %v1533 = vsel %vm1504, %v1443, 0
      %v1536 = vsel %vm1504, %v1452, 0
      %v1539 = vsel %vm1504, %v1461, 0
      %v1542 = vsel %vm1504, %v1470, 0
      %v1545 = vsel %vm1504, %v1479, 0
      %v1548 = vsel %vm1504, %v1488, 0
      %v1551 = vsel %vm1504, %v1497, 0
      %1553 = vmatprep.subr.bf16.mxu0 0
      %1554 = vmatpush1.bf16.msra.mxu0 %v1502
      %1555 = vmatprep.subr.bf16.mxu0 0
      %1556 = vmatpush1.bf16.msra.mxu0 0
      %1557 = vmatprep.subr.bf16.mxu0 0
      %1558 = vmatpush1.bf16.msra.mxu0 0
      %1559 = vmatprep.subr.bf16.mxu0 0
      %1560 = vmatpush1.bf16.msra.mxu0 0
      %1561 = vmatprep.subr.bf16.mxu0 0
      %1562 = vmatpush1.bf16.msra.mxu0 0
      %1563 = vmatprep.subr.bf16.mxu0 0
      %1564 = vmatpush1.bf16.msra.mxu0 0
      %1565 = vmatprep.subr.bf16.mxu0 0
      %1566 = vmatpush1.bf16.msra.mxu0 0
      %1567 = vmatprep.subr.bf16.mxu0 0
      %1568 = vmatpush1.bf16.msra.mxu0 0
      %1569 = vmatprep.subr.bf16.mxu0 0
      %1570 = vmatpush1.bf16.msra.mxu0 0
      %1571 = vmatprep.subr.bf16.mxu0 0
      %1572 = vmatpush1.bf16.msra.mxu0 0
      %1573 = vmatprep.subr.bf16.mxu0 0
      %1574 = vmatpush1.bf16.msra.mxu0 0
      %1575 = vmatprep.subr.bf16.mxu0 0
      %1576 = vmatpush1.bf16.msra.mxu0 0
      %1577 = vmatprep.subr.bf16.mxu0 0
      %1578 = vmatpush1.bf16.msra.mxu0 0
      %1579 = vmatprep.subr.bf16.mxu0 0
      %1580 = vmatpush1.bf16.msra.mxu0 0
      %1581 = vmatprep.subr.bf16.mxu0 0
      %1582 = vmatpush1.bf16.msra.mxu0 0
      %1583 = vmatprep.subr.bf16.mxu0 0
      %1584 = vmatpush1.bf16.msra.mxu0 0
      %1585 = vmatprep.mubr.bf16.mxu0 0
      %1586 = vmatmul.mubr.bf16.gmra.mrb[0].mxu0 %v1506
      %v1587 = vpop.f32.mrb[0].mxu0
      %v1588 = vadd.f32 0.0, %v1587
      %v1589 = vpop.f32.mrb[0].mxu0
      %v1590 = vpop.f32.mrb[0].mxu0
      %v1591 = vadd.f32 0.0, %v1590
      %v1592 = vpop.f32.mrb[0].mxu0
      %1593 = vmatprep.mubr.bf16.mxu0 0
      %1594 = vmatmul.mubr.bf16.gmra.mrb[0].mxu0 %v1509
      %v1595 = vpop.f32.mrb[0].mxu0
      %v1596 = vadd.f32 0.0, %v1595
      %v1597 = vpop.f32.mrb[0].mxu0
      %v1598 = vpop.f32.mrb[0].mxu0
      %v1599 = vadd.f32 0.0, %v1598
      %v1600 = vpop.f32.mrb[0].mxu0
      %1601 = vmatprep.mubr.bf16.mxu0 0
      %1602 = vmatmul.mubr.bf16.gmra.mrb[0].mxu0 %v1512
      %v1603 = vpop.f32.mrb[0].mxu0
      %v1604 = vadd.f32 0.0, %v1603
      %v1605 = vpop.f32.mrb[0].mxu0
      %v1606 = vpop.f32.mrb[0].mxu0
      %v1607 = vadd.f32 0.0, %v1606
      %v1608 = vpop.f32.mrb[0].mxu0
      %1609 = vmatprep.mubr.bf16.mxu0 0
      %1610 = vmatmul.mubr.bf16.gmra.mrb[0].mxu0 %v1515
      %v1611 = vpop.f32.mrb[0].mxu0
      %v1612 = vadd.f32 0.0, %v1611
      %v1613 = vpop.f32.mrb[0].mxu0
      %v1614 = vpop.f32.mrb[0].mxu0
      %v1615 = vadd.f32 0.0, %v1614
      %v1616 = vpop.f32.mrb[0].mxu0
      %1617 = vmatprep.mubr.bf16.mxu0 0
      %1618 = vmatmul.mubr.bf16.gmra.mrb[0].mxu0 %v1518
      %v1619 = vpop.f32.mrb[0].mxu0
      %v1620 = vadd.f32 0.0, %v1619
      %v1621 = vpop.f32.mrb[0].mxu0
      %v1622 = vpop.f32.mrb[0].mxu0
      %v1623 = vadd.f32 0.0, %v1622
      %v1624 = vpop.f32.mrb[0].mxu0
      %1625 = vmatprep.mubr.bf16.mxu0 0
      %1626 = vmatmul.mubr.bf16.gmra.mrb[0].mxu0 %v1521
      %v1627 = vpop.f32.mrb[0].mxu0
      %v1628 = vadd.f32 0.0, %v1627
      %v1629 = vpop.f32.mrb[0].mxu0
      %v1630 = vpop.f32.mrb[0].mxu0
      %v1631 = vadd.f32 0.0, %v1630
      %v1632 = vpop.f32.mrb[0].mxu0
      %1633 = vmatprep.mubr.bf16.mxu0 0
      %1634 = vmatmul.mubr.bf16.gmra.mrb[0].mxu0 %v1524
      %v1635 = vpop.f32.mrb[0].mxu0
      %v1636 = vadd.f32 0.0, %v1635
      %v1637 = vpop.f32.mrb[0].mxu0
      %v1638 = vpop.f32.mrb[0].mxu0
      %v1639 = vadd.f32 0.0, %v1638
      %v1640 = vpop.f32.mrb[0].mxu0
      %1641 = vmatprep.mubr.bf16.mxu0 0
      %1642 = vmatmul.mubr.bf16.gmra.mrb[0].mxu0 %v1527
      %v1643 = vpop.f32.mrb[0].mxu0
      %v1644 = vadd.f32 0.0, %v1643
      %v1645 = vpop.f32.mrb[0].mxu0
      %v1646 = vpop.f32.mrb[0].mxu0
      %v1647 = vadd.f32 0.0, %v1646
      %v1648 = vpop.f32.mrb[0].mxu0
      %1649 = vmatprep.mubr.bf16.mxu0 0
      %1650 = vmatmul.mubr.bf16.gmra.mrb[0].mxu0 %v1530
      %v1651 = vpop.f32.mrb[0].mxu0
      %v1652 = vadd.f32 0.0, %v1651
      %v1653 = vpop.f32.mrb[0].mxu0
      %v1654 = vpop.f32.mrb[0].mxu0
      %v1655 = vadd.f32 0.0, %v1654
      %v1656 = vpop.f32.mrb[0].mxu0
      %1657 = vmatprep.mubr.bf16.mxu0 0
      %1658 = vmatmul.mubr.bf16.gmra.mrb[0].mxu0 %v1533
      %v1659 = vpop.f32.mrb[0].mxu0
      %v1660 = vadd.f32 0.0, %v1659
      %v1661 = vpop.f32.mrb[0].mxu0
      %v1662 = vpop.f32.mrb[0].mxu0
      %v1663 = vadd.f32 0.0, %v1662
      %v1664 = vpop.f32.mrb[0].mxu0
      %1665 = vmatprep.mubr.bf16.mxu0 0
      %1666 = vmatmul.mubr.bf16.gmra.mrb[0].mxu0 %v1536
      %v1667 = vpop.f32.mrb[0].mxu0
      %v1668 = vadd.f32 0.0, %v1667
      %v1669 = vpop.f32.mrb[0].mxu0
      %v1670 = vpop.f32.mrb[0].mxu0
      %v1671 = vadd.f32 0.0, %v1670
      %v1672 = vpop.f32.mrb[0].mxu0
      %1673 = vmatprep.mubr.bf16.mxu0 0
      %1674 = vmatmul.mubr.bf16.gmra.mrb[0].mxu0 %v1539
      %v1675 = vpop.f32.mrb[0].mxu0
      %v1676 = vadd.f32 0.0, %v1675
      %v1677 = vpop.f32.mrb[0].mxu0
      %v1678 = vpop.f32.mrb[0].mxu0
      %v1679 = vadd.f32 0.0, %v1678
      %v1680 = vpop.f32.mrb[0].mxu0
      %1681 = vmatprep.mubr.bf16.mxu0 0
      %1682 = vmatmul.mubr.bf16.gmra.mrb[0].mxu0 %v1542
      %v1683 = vpop.f32.mrb[0].mxu0
      %v1684 = vadd.f32 0.0, %v1683
      %v1685 = vpop.f32.mrb[0].mxu0
      %v1686 = vpop.f32.mrb[0].mxu0
      %v1687 = vadd.f32 0.0, %v1686
      %v1688 = vpop.f32.mrb[0].mxu0
      %1689 = vmatprep.mubr.bf16.mxu0 0
      %1690 = vmatmul.mubr.bf16.gmra.mrb[0].mxu0 %v1545
      %v1691 = vpop.f32.mrb[0].mxu0
      %v1692 = vadd.f32 0.0, %v1691
      %v1693 = vpop.f32.mrb[0].mxu0
      %v1694 = vpop.f32.mrb[0].mxu0
      %v1695 = vadd.f32 0.0, %v1694
      %v1696 = vpop.f32.mrb[0].mxu0
      %1697 = vmatprep.mubr.bf16.mxu0 0
      %1698 = vmatmul.mubr.bf16.gmra.mrb[0].mxu0 %v1548
      %v1699 = vpop.f32.mrb[0].mxu0
      %v1700 = vadd.f32 0.0, %v1699
      %v1701 = vpop.f32.mrb[0].mxu0
      %v1702 = vpop.f32.mrb[0].mxu0
      %v1703 = vadd.f32 0.0, %v1702
      %v1704 = vpop.f32.mrb[0].mxu0
      %1705 = vmatprep.mubr.bf16.mxu0 0
      %1706 = vmatmul.mubr.bf16.gmra.mrb[0].mxu0 %v1551
      %v1707 = vpop.f32.mrb[0].mxu0
      %v1708 = vadd.f32 0.0, %v1707
      %v1709 = vpop.f32.mrb[0].mxu0
      %v1710 = vpop.f32.mrb[0].mxu0
      %v1711 = vadd.f32 0.0, %v1710
      %v1712 = vpop.f32.mrb[0].mxu0
      %1713 = vdwg.mxu0
      %vm1714 = vcmask 261120
      %1715 = vst.msk [vmem:[#allocation2] sm:$0xff] %vm1714, %v1588
      %1716 = vst.msk [vmem:[#allocation2 + $0x8] sm:$0xff] %vm1714, %v1591
      %1717 = vst.msk [vmem:[#allocation2 + $0x10] sm:$0xff] %vm1714, %v1596
      %1718 = vst.msk [vmem:[#allocation2 + $0x18] sm:$0xff] %vm1714, %v1599
      %1719 = vst.msk [vmem:[#allocation2 + $0x20] sm:$0xff] %vm1714, %v1604
      %1720 = vst.msk [vmem:[#allocation2 + $0x28] sm:$0xff] %vm1714, %v1607
      %1721 = vst.msk [vmem:[#allocation2 + $0x30] sm:$0xff] %vm1714, %v1612
      %1722 = vst.msk [vmem:[#allocation2 + $0x38] sm:$0xff] %vm1714, %v1615
      %1723 = vst.msk [vmem:[#allocation2 + $0x40] sm:$0xff] %vm1714, %v1620
      %1724 = vst.msk [vmem:[#allocation2 + $0x48] sm:$0xff] %vm1714, %v1623
      %1725 = vst.msk [vmem:[#allocation2 + $0x50] sm:$0xff] %vm1714, %v1628
      %1726 = vst.msk [vmem:[#allocation2 + $0x58] sm:$0xff] %vm1714, %v1631
      %1727 = vst.msk [vmem:[#allocation2 + $0x60] sm:$0xff] %vm1714, %v1636
      %1728 = vst.msk [vmem:[#allocation2 + $0x68] sm:$0xff] %vm1714, %v1639
      %1729 = vst.msk [vmem:[#allocation2 + $0x70] sm:$0xff] %vm1714, %v1644
      %1730 = vst.msk [vmem:[#allocation2 + $0x78] sm:$0xff] %vm1714, %v1647
      %1731 = vst.msk [vmem:[#allocation2 + $0x80] sm:$0xff] %vm1714, %v1652
      %1732 = vst.msk [vmem:[#allocation2 + $0x88] sm:$0xff] %vm1714, %v1655
      %1733 = vst.msk [vmem:[#allocation2 + $0x90] sm:$0xff] %vm1714, %v1660
      %1734 = vst.msk [vmem:[#allocation2 + $0x98] sm:$0xff] %vm1714, %v1663
      %1735 = vst.msk [vmem:[#allocation2 + $0xa0] sm:$0xff] %vm1714, %v1668
      %1736 = vst.msk [vmem:[#allocation2 + $0xa8] sm:$0xff] %vm1714, %v1671
      %1737 = vst.msk [vmem:[#allocation2 + $0xb0] sm:$0xff] %vm1714, %v1676
      %1738 = vst.msk [vmem:[#allocation2 + $0xb8] sm:$0xff] %vm1714, %v1679
      %1739 = vst.msk [vmem:[#allocation2 + $0xc0] sm:$0xff] %vm1714, %v1684
      %1740 = vst.msk [vmem:[#allocation2 + $0xc8] sm:$0xff] %vm1714, %v1687
      %1741 = vst.msk [vmem:[#allocation2 + $0xd0] sm:$0xff] %vm1714, %v1692
      %1742 = vst.msk [vmem:[#allocation2 + $0xd8] sm:$0xff] %vm1714, %v1695
      %1743 = vst.msk [vmem:[#allocation2 + $0xe0] sm:$0xff] %vm1714, %v1700
      %1744 = vst.msk [vmem:[#allocation2 + $0xe8] sm:$0xff] %vm1714, %v1703
      %1745 = vst.msk [vmem:[#allocation2 + $0xf0] sm:$0xff] %vm1714, %v1708
      %1746 = vst.msk [vmem:[#allocation2 + $0xf8] sm:$0xff] %vm1714, %v1711
      %s1747 = scalar_lea.vmem %s2, 8
      %v1748 = vld [vmem:[%s1747] sm:$0xf]
      %v1749 = vld [vmem:[%s1747 + $0x4] sm:$0xf]
      %v1782 = vunpack.c.l.b16 %v259
      %v1783 = vunpack.c.l.b16 %v260
      %v1784 = vunpack.c.l.b16 %v261
      %v1785 = vunpack.c.l.b16 %v262
      %v1786 = vunpack.c.l.b16 %v263
      %v1787 = vunpack.c.l.b16 %v264
      %v1788 = vunpack.c.l.b16 %v265
      %v1789 = vunpack.c.l.b16 %v266
      %v1790 = vunpack.c.l.b16 %v267
      %v1791 = vunpack.c.l.b16 %v268
      %v1792 = vunpack.c.l.b16 %v269
      %v1793 = vunpack.c.l.b16 %v270
      %v1794 = vunpack.c.l.b16 %v271
      %v1795 = vunpack.c.l.b16 %v272
      %v1796 = vunpack.c.l.b16 %v273
      %v1797 = vunpack.c.l.b16 %v274
      %v1798 = vunpack.c.l.b16 %v275
      %v1799 = vunpack.c.l.b16 %v276
      %v1800 = vunpack.c.l.b16 %v277
      %v1801 = vunpack.c.l.b16 %v278
      %v1802 = vunpack.c.l.b16 %v279
      %v1803 = vunpack.c.l.b16 %v280
      %v1804 = vunpack.c.l.b16 %v281
      %v1805 = vunpack.c.l.b16 %v282
      %v1806 = vunpack.c.l.b16 %v283
      %v1807 = vunpack.c.l.b16 %v284
      %v1808 = vunpack.c.l.b16 %v285
      %v1809 = vunpack.c.l.b16 %v286
      %v1810 = vunpack.c.l.b16 %v287
      %v1811 = vunpack.c.l.b16 %v288
      %v1812 = vunpack.c.l.b16 %v289
      %v1813 = vunpack.c.l.b16 %v290
      %v1814 = vpack.c.b16 %v1783, %v1782
      %v1815 = vpack.c.b16 %v1785, %v1784
      %v1816 = vpack.c.b16 %v1787, %v1786
      %v1817 = vpack.c.b16 %v1789, %v1788
      %v1818 = vpack.c.b16 %v1791, %v1790
      %v1819 = vpack.c.b16 %v1793, %v1792
      %v1820 = vpack.c.b16 %v1795, %v1794
      %v1821 = vpack.c.b16 %v1797, %v1796
      %v1822 = vpack.c.b16 %v1799, %v1798
      %v1823 = vpack.c.b16 %v1801, %v1800
      %v1824 = vpack.c.b16 %v1803, %v1802
      %v1825 = vpack.c.b16 %v1805, %v1804
      %v1826 = vpack.c.b16 %v1807, %v1806
      %v1827 = vpack.c.b16 %v1809, %v1808
      %v1828 = vpack.c.b16 %v1811, %v1810
      %v1829 = vpack.c.b16 %v1813, %v1812
      %v1832 = vunpack.c.l.b16 %v1748
      %v1833 = vunpack.c.l.b16 %v1749
      %v1834 = vpack.c.b16 %v1833, %v1832
      %v1837 = vsel %vm1504, %v1814, 0
      %v1840 = vsel %vm1504, %v1815, 0
      %v1843 = vsel %vm1504, %v1816, 0
      %v1846 = vsel %vm1504, %v1817, 0
      %v1849 = vsel %vm1504, %v1818, 0
      %v1852 = vsel %vm1504, %v1819, 0
      %v1855 = vsel %vm1504, %v1820, 0
      %v1858 = vsel %vm1504, %v1821, 0
      %v1861 = vsel %vm1504, %v1822, 0
      %v1864 = vsel %vm1504, %v1823, 0
      %v1867 = vsel %vm1504, %v1824, 0
      %v1870 = vsel %vm1504, %v1825, 0
      %v1873 = vsel %vm1504, %v1826, 0
      %v1876 = vsel %vm1504, %v1827, 0
      %v1879 = vsel %vm1504, %v1828, 0
      %v1882 = vsel %vm1504, %v1829, 0
      %1884 = vmatprep.subr.bf16.mxu0 0
      %1885 = vmatpush1.bf16.msra.mxu0 %v1834
      %1886 = vmatprep.subr.bf16.mxu0 0
      %1887 = vmatpush1.bf16.msra.mxu0 0
      %1888 = vmatprep.subr.bf16.mxu0 0
      %1889 = vmatpush1.bf16.msra.mxu0 0
      %1890 = vmatprep.subr.bf16.mxu0 0
      %1891 = vmatpush1.bf16.msra.mxu0 0
      %1892 = vmatprep.subr.bf16.mxu0 0
      %1893 = vmatpush1.bf16.msra.mxu0 0
      %1894 = vmatprep.subr.bf16.mxu0 0
      %1895 = vmatpush1.bf16.msra.mxu0 0
      %1896 = vmatprep.subr.bf16.mxu0 0
      %1897 = vmatpush1.bf16.msra.mxu0 0
      %1898 = vmatprep.subr.bf16.mxu0 0
      %1899 = vmatpush1.bf16.msra.mxu0 0
      %1900 = vmatprep.subr.bf16.mxu0 0
      %1901 = vmatpush1.bf16.msra.mxu0 0
      %1902 = vmatprep.subr.bf16.mxu0 0
      %1903 = vmatpush1.bf16.msra.mxu0 0
      %1904 = vmatprep.subr.bf16.mxu0 0
      %1905 = vmatpush1.bf16.msra.mxu0 0
      %1906 = vmatprep.subr.bf16.mxu0 0
      %1907 = vmatpush1.bf16.msra.mxu0 0
      %1908 = vmatprep.subr.bf16.mxu0 0
      %1909 = vmatpush1.bf16.msra.mxu0 0
      %1910 = vmatprep.subr.bf16.mxu0 0
      %1911 = vmatpush1.bf16.msra.mxu0 0
      %1912 = vmatprep.subr.bf16.mxu0 0
      %1913 = vmatpush1.bf16.msra.mxu0 0
      %1914 = vmatprep.subr.bf16.mxu0 0
      %1915 = vmatpush1.bf16.msra.mxu0 0
      %1916 = vmatprep.mubr.bf16.mxu0 0
      %1917 = vmatmul.mubr.bf16.gmra.mrb[0].mxu0 %v1837
      %v1918 = vpop.f32.mrb[0].mxu0
      %v1919 = vadd.f32 0.0, %v1918
      %v1920 = vpop.f32.mrb[0].mxu0
      %v1921 = vpop.f32.mrb[0].mxu0
      %v1922 = vadd.f32 0.0, %v1921
      %v1923 = vpop.f32.mrb[0].mxu0
      %1924 = vmatprep.mubr.bf16.mxu0 0
      %1925 = vmatmul.mubr.bf16.gmra.mrb[0].mxu0 %v1840
      %v1926 = vpop.f32.mrb[0].mxu0
      %v1927 = vadd.f32 0.0, %v1926
      %v1928 = vpop.f32.mrb[0].mxu0
      %v1929 = vpop.f32.mrb[0].mxu0
      %v1930 = vadd.f32 0.0, %v1929
      %v1931 = vpop.f32.mrb[0].mxu0
      %1932 = vmatprep.mubr.bf16.mxu0 0
      %1933 = vmatmul.mubr.bf16.gmra.mrb[0].mxu0 %v1843
      %v1934 = vpop.f32.mrb[0].mxu0
      %v1935 = vadd.f32 0.0, %v1934
      %v1936 = vpop.f32.mrb[0].mxu0
      %v1937 = vpop.f32.mrb[0].mxu0
      %v1938 = vadd.f32 0.0, %v1937
      %v1939 = vpop.f32.mrb[0].mxu0
      %1940 = vmatprep.mubr.bf16.mxu0 0
      %1941 = vmatmul.mubr.bf16.gmra.mrb[0].mxu0 %v1846
      %v1942 = vpop.f32.mrb[0].mxu0
      %v1943 = vadd.f32 0.0, %v1942
      %v1944 = vpop.f32.mrb[0].mxu0
      %v1945 = vpop.f32.mrb[0].mxu0
      %v1946 = vadd.f32 0.0, %v1945
      %v1947 = vpop.f32.mrb[0].mxu0
      %1948 = vmatprep.mubr.bf16.mxu0 0
      %1949 = vmatmul.mubr.bf16.gmra.mrb[0].mxu0 %v1849
      %v1950 = vpop.f32.mrb[0].mxu0
      %v1951 = vadd.f32 0.0, %v1950
      %v1952 = vpop.f32.mrb[0].mxu0
      %v1953 = vpop.f32.mrb[0].mxu0
      %v1954 = vadd.f32 0.0, %v1953
      %v1955 = vpop.f32.mrb[0].mxu0
      %1956 = vmatprep.mubr.bf16.mxu0 0
      %1957 = vmatmul.mubr.bf16.gmra.mrb[0].mxu0 %v1852
      %v1958 = vpop.f32.mrb[0].mxu0
      %v1959 = vadd.f32 0.0, %v1958
      %v1960 = vpop.f32.mrb[0].mxu0
      %v1961 = vpop.f32.mrb[0].mxu0
      %v1962 = vadd.f32 0.0, %v1961
      %v1963 = vpop.f32.mrb[0].mxu0
      %1964 = vmatprep.mubr.bf16.mxu0 0
      %1965 = vmatmul.mubr.bf16.gmra.mrb[0].mxu0 %v1855
      %v1966 = vpop.f32.mrb[0].mxu0
      %v1967 = vadd.f32 0.0, %v1966
      %v1968 = vpop.f32.mrb[0].mxu0
      %v1969 = vpop.f32.mrb[0].mxu0
      %v1970 = vadd.f32 0.0, %v1969
      %v1971 = vpop.f32.mrb[0].mxu0
      %1972 = vmatprep.mubr.bf16.mxu0 0
      %1973 = vmatmul.mubr.bf16.gmra.mrb[0].mxu0 %v1858
      %v1974 = vpop.f32.mrb[0].mxu0
      %v1975 = vadd.f32 0.0, %v1974
      %v1976 = vpop.f32.mrb[0].mxu0
      %v1977 = vpop.f32.mrb[0].mxu0
      %v1978 = vadd.f32 0.0, %v1977
      %v1979 = vpop.f32.mrb[0].mxu0
      %1980 = vmatprep.mubr.bf16.mxu0 0
      %1981 = vmatmul.mubr.bf16.gmra.mrb[0].mxu0 %v1861
      %v1982 = vpop.f32.mrb[0].mxu0
      %v1983 = vadd.f32 0.0, %v1982
      %v1984 = vpop.f32.mrb[0].mxu0
      %v1985 = vpop.f32.mrb[0].mxu0
      %v1986 = vadd.f32 0.0, %v1985
      %v1987 = vpop.f32.mrb[0].mxu0
      %1988 = vmatprep.mubr.bf16.mxu0 0
      %1989 = vmatmul.mubr.bf16.gmra.mrb[0].mxu0 %v1864
      %v1990 = vpop.f32.mrb[0].mxu0
      %v1991 = vadd.f32 0.0, %v1990
      %v1992 = vpop.f32.mrb[0].mxu0
      %v1993 = vpop.f32.mrb[0].mxu0
      %v1994 = vadd.f32 0.0, %v1993
      %v1995 = vpop.f32.mrb[0].mxu0
      %1996 = vmatprep.mubr.bf16.mxu0 0
      %1997 = vmatmul.mubr.bf16.gmra.mrb[0].mxu0 %v1867
      %v1998 = vpop.f32.mrb[0].mxu0
      %v1999 = vadd.f32 0.0, %v1998
      %v2000 = vpop.f32.mrb[0].mxu0
      %v2001 = vpop.f32.mrb[0].mxu0
      %v2002 = vadd.f32 0.0, %v2001
      %v2003 = vpop.f32.mrb[0].mxu0
      %2004 = vmatprep.mubr.bf16.mxu0 0
      %2005 = vmatmul.mubr.bf16.gmra.mrb[0].mxu0 %v1870
      %v2006 = vpop.f32.mrb[0].mxu0
      %v2007 = vadd.f32 0.0, %v2006
      %v2008 = vpop.f32.mrb[0].mxu0
      %v2009 = vpop.f32.mrb[0].mxu0
      %v2010 = vadd.f32 0.0, %v2009
      %v2011 = vpop.f32.mrb[0].mxu0
      %2012 = vmatprep.mubr.bf16.mxu0 0
      %2013 = vmatmul.mubr.bf16.gmra.mrb[0].mxu0 %v1873
      %v2014 = vpop.f32.mrb[0].mxu0
      %v2015 = vadd.f32 0.0, %v2014
      %v2016 = vpop.f32.mrb[0].mxu0
      %v2017 = vpop.f32.mrb[0].mxu0
      %v2018 = vadd.f32 0.0, %v2017
      %v2019 = vpop.f32.mrb[0].mxu0
      %2020 = vmatprep.mubr.bf16.mxu0 0
      %2021 = vmatmul.mubr.bf16.gmra.mrb[0].mxu0 %v1876
      %v2022 = vpop.f32.mrb[0].mxu0
      %v2023 = vadd.f32 0.0, %v2022
      %v2024 = vpop.f32.mrb[0].mxu0
      %v2025 = vpop.f32.mrb[0].mxu0
      %v2026 = vadd.f32 0.0, %v2025
      %v2027 = vpop.f32.mrb[0].mxu0
      %2028 = vmatprep.mubr.bf16.mxu0 0
      %2029 = vmatmul.mubr.bf16.gmra.mrb[0].mxu0 %v1879
      %v2030 = vpop.f32.mrb[0].mxu0
      %v2031 = vadd.f32 0.0, %v2030
      %v2032 = vpop.f32.mrb[0].mxu0
      %v2033 = vpop.f32.mrb[0].mxu0
      %v2034 = vadd.f32 0.0, %v2033
      %v2035 = vpop.f32.mrb[0].mxu0
      %2036 = vmatprep.mubr.bf16.mxu0 0
      %2037 = vmatmul.mubr.bf16.gmra.mrb[0].mxu0 %v1882
      %v2038 = vpop.f32.mrb[0].mxu0
      %v2039 = vadd.f32 0.0, %v2038
      %v2040 = vpop.f32.mrb[0].mxu0
      %v2041 = vpop.f32.mrb[0].mxu0
      %v2042 = vadd.f32 0.0, %v2041
      %v2043 = vpop.f32.mrb[0].mxu0
      %2044 = vdwg.mxu0
      %v2045 = vld [vmem:[#allocation2] sm:$0xff]
      %v2046 = vld [vmem:[#allocation2 + $0x8] sm:$0xff]
      %v2047 = vld [vmem:[#allocation2 + $0x10] sm:$0xff]
      %v2048 = vld [vmem:[#allocation2 + $0x18] sm:$0xff]
      %v2049 = vld [vmem:[#allocation2 + $0x20] sm:$0xff]
      %v2050 = vld [vmem:[#allocation2 + $0x28] sm:$0xff]
      %v2051 = vld [vmem:[#allocation2 + $0x30] sm:$0xff]
      %v2052 = vld [vmem:[#allocation2 + $0x38] sm:$0xff]
      %v2053 = vld [vmem:[#allocation2 + $0x40] sm:$0xff]
      %v2054 = vld [vmem:[#allocation2 + $0x48] sm:$0xff]
      %v2055 = vld [vmem:[#allocation2 + $0x50] sm:$0xff]
      %v2056 = vld [vmem:[#allocation2 + $0x58] sm:$0xff]
      %v2057 = vld [vmem:[#allocation2 + $0x60] sm:$0xff]
      %v2058 = vld [vmem:[#allocation2 + $0x68] sm:$0xff]
      %v2059 = vld [vmem:[#allocation2 + $0x70] sm:$0xff]
      %v2060 = vld [vmem:[#allocation2 + $0x78] sm:$0xff]
      %v2061 = vld [vmem:[#allocation2 + $0x80] sm:$0xff]
      %v2062 = vld [vmem:[#allocation2 + $0x88] sm:$0xff]
      %v2063 = vld [vmem:[#allocation2 + $0x90] sm:$0xff]
      %v2064 = vld [vmem:[#allocation2 + $0x98] sm:$0xff]
      %v2065 = vld [vmem:[#allocation2 + $0xa0] sm:$0xff]
      %v2066 = vld [vmem:[#allocation2 + $0xa8] sm:$0xff]
      %v2067 = vld [vmem:[#allocation2 + $0xb0] sm:$0xff]
      %v2068 = vld [vmem:[#allocation2 + $0xb8] sm:$0xff]
      %v2069 = vld [vmem:[#allocation2 + $0xc0] sm:$0xff]
      %v2070 = vld [vmem:[#allocation2 + $0xc8] sm:$0xff]
      %v2071 = vld [vmem:[#allocation2 + $0xd0] sm:$0xff]
      %v2072 = vld [vmem:[#allocation2 + $0xd8] sm:$0xff]
      %v2073 = vld [vmem:[#allocation2 + $0xe0] sm:$0xff]
      %v2074 = vld [vmem:[#allocation2 + $0xe8] sm:$0xff]
      %v2075 = vld [vmem:[#allocation2 + $0xf0] sm:$0xff]
      %v2076 = vld [vmem:[#allocation2 + $0xf8] sm:$0xff]
      %v2077 = vadd.f32 %v2045, %v1919
      %v2078 = vadd.f32 %v2046, %v1922
      %v2079 = vadd.f32 %v2047, %v1927
      %v2080 = vadd.f32 %v2048, %v1930
      %v2081 = vadd.f32 %v2049, %v1935
      %v2082 = vadd.f32 %v2050, %v1938
      %v2083 = vadd.f32 %v2051, %v1943
      %v2084 = vadd.f32 %v2052, %v1946
      %v2085 = vadd.f32 %v2053, %v1951
      %v2086 = vadd.f32 %v2054, %v1954
      %v2087 = vadd.f32 %v2055, %v1959
      %v2088 = vadd.f32 %v2056, %v1962
      %v2089 = vadd.f32 %v2057, %v1967
      %v2090 = vadd.f32 %v2058, %v1970
      %v2091 = vadd.f32 %v2059, %v1975
      %v2092 = vadd.f32 %v2060, %v1978
      %v2093 = vadd.f32 %v2061, %v1983
      %v2094 = vadd.f32 %v2062, %v1986
      %v2095 = vadd.f32 %v2063, %v1991
      %v2096 = vadd.f32 %v2064, %v1994
      %v2097 = vadd.f32 %v2065, %v1999
      %v2098 = vadd.f32 %v2066, %v2002
      %v2099 = vadd.f32 %v2067, %v2007
      %v2100 = vadd.f32 %v2068, %v2010
      %v2101 = vadd.f32 %v2069, %v2015
      %v2102 = vadd.f32 %v2070, %v2018
      %v2103 = vadd.f32 %v2071, %v2023
      %v2104 = vadd.f32 %v2072, %v2026
      %v2105 = vadd.f32 %v2073, %v2031
      %v2106 = vadd.f32 %v2074, %v2034
      %v2107 = vadd.f32 %v2075, %v2039
      %v2108 = vadd.f32 %v2076, %v2042
      %2109 = vst.msk [vmem:[#allocation2] sm:$0xff] %vm1714, %v2077
      %2110 = vst.msk [vmem:[#allocation2 + $0x8] sm:$0xff] %vm1714, %v2078
      %2111 = vst.msk [vmem:[#allocation2 + $0x10] sm:$0xff] %vm1714, %v2079
      %2112 = vst.msk [vmem:[#allocation2 + $0x18] sm:$0xff] %vm1714, %v2080
      %2113 = vst.msk [vmem:[#allocation2 + $0x20] sm:$0xff] %vm1714, %v2081
      %2114 = vst.msk [vmem:[#allocation2 + $0x28] sm:$0xff] %vm1714, %v2082
      %2115 = vst.msk [vmem:[#allocation2 + $0x30] sm:$0xff] %vm1714, %v2083
      %2116 = vst.msk [vmem:[#allocation2 + $0x38] sm:$0xff] %vm1714, %v2084
      %2117 = vst.msk [vmem:[#allocation2 + $0x40] sm:$0xff] %vm1714, %v2085
      %2118 = vst.msk [vmem:[#allocation2 + $0x48] sm:$0xff] %vm1714, %v2086
      %2119 = vst.msk [vmem:[#allocation2 + $0x50] sm:$0xff] %vm1714, %v2087
      %2120 = vst.msk [vmem:[#allocation2 + $0x58] sm:$0xff] %vm1714, %v2088
      %2121 = vst.msk [vmem:[#allocation2 + $0x60] sm:$0xff] %vm1714, %v2089
      %2122 = vst.msk [vmem:[#allocation2 + $0x68] sm:$0xff] %vm1714, %v2090
      %2123 = vst.msk [vmem:[#allocation2 + $0x70] sm:$0xff] %vm1714, %v2091
      %2124 = vst.msk [vmem:[#allocation2 + $0x78] sm:$0xff] %vm1714, %v2092
      %2125 = vst.msk [vmem:[#allocation2 + $0x80] sm:$0xff] %vm1714, %v2093
      %2126 = vst.msk [vmem:[#allocation2 + $0x88] sm:$0xff] %vm1714, %v2094
      %2127 = vst.msk [vmem:[#allocation2 + $0x90] sm:$0xff] %vm1714, %v2095
      %2128 = vst.msk [vmem:[#allocation2 + $0x98] sm:$0xff] %vm1714, %v2096
      %2129 = vst.msk [vmem:[#allocation2 + $0xa0] sm:$0xff] %vm1714, %v2097
      %2130 = vst.msk [vmem:[#allocation2 + $0xa8] sm:$0xff] %vm1714, %v2098
      %2131 = vst.msk [vmem:[#allocation2 + $0xb0] sm:$0xff] %vm1714, %v2099
      %2132 = vst.msk [vmem:[#allocation2 + $0xb8] sm:$0xff] %vm1714, %v2100
      %2133 = vst.msk [vmem:[#allocation2 + $0xc0] sm:$0xff] %vm1714, %v2101
      %2134 = vst.msk [vmem:[#allocation2 + $0xc8] sm:$0xff] %vm1714, %v2102
      %2135 = vst.msk [vmem:[#allocation2 + $0xd0] sm:$0xff] %vm1714, %v2103
      %2136 = vst.msk [vmem:[#allocation2 + $0xd8] sm:$0xff] %vm1714, %v2104
      %2137 = vst.msk [vmem:[#allocation2 + $0xe0] sm:$0xff] %vm1714, %v2105
      %2138 = vst.msk [vmem:[#allocation2 + $0xe8] sm:$0xff] %vm1714, %v2106
      %2139 = vst.msk [vmem:[#allocation2 + $0xf0] sm:$0xff] %vm1714, %v2107
      %2140 = vst.msk [vmem:[#allocation2 + $0xf8] sm:$0xff] %vm1714, %v2108
      %s2141 = scalar_lea.vmem %s2, 16
      %v2142 = vld [vmem:[%s2141] sm:$0xf]
      %v2143 = vld [vmem:[%s2141 + $0x4] sm:$0xf]
      %v2177 = vunpack.c.l.b16 %v1223
      %v2178 = vunpack.c.l.b16 %v1224
      %v2179 = vunpack.c.l.b16 %v1225
      %v2180 = vunpack.c.l.b16 %v1226
      %v2181 = vunpack.c.l.b16 %v1227
      %v2182 = vunpack.c.l.b16 %v1228
      %v2183 = vunpack.c.l.b16 %v1229
      %v2184 = vunpack.c.l.b16 %v1230
      %v2185 = vunpack.c.l.b16 %v1231
      %v2186 = vunpack.c.l.b16 %v1232
      %v2187 = vunpack.c.l.b16 %v1233
      %v2188 = vunpack.c.l.b16 %v1234
      %v2189 = vunpack.c.l.b16 %v1235
      %v2190 = vunpack.c.l.b16 %v1236
      %v2191 = vunpack.c.l.b16 %v1237
      %v2192 = vunpack.c.l.b16 %v1238
      %v2193 = vunpack.c.l.b16 %v1239
      %v2194 = vunpack.c.l.b16 %v1240
      %v2195 = vunpack.c.l.b16 %v1241
      %v2196 = vunpack.c.l.b16 %v1242
      %v2197 = vunpack.c.l.b16 %v1243
      %v2198 = vunpack.c.l.b16 %v1244
      %v2199 = vunpack.c.l.b16 %v1245
      %v2200 = vunpack.c.l.b16 %v1246
      %v2201 = vunpack.c.l.b16 %v1247
      %v2202 = vunpack.c.l.b16 %v1248
      %v2203 = vunpack.c.l.b16 %v1249
      %v2204 = vunpack.c.l.b16 %v1250
      %v2205 = vunpack.c.l.b16 %v1251
      %v2206 = vunpack.c.l.b16 %v1252
      %v2207 = vunpack.c.l.b16 %v1253
      %v2208 = vunpack.c.l.b16 %v1254
      %v2209 = vunpack.c.l.b16 %v1255
      %v2210 = vpack.c.b16 %v2178, %v2177
      %v2211 = vpack.c.b16 %v2180, %v2179
      %v2212 = vpack.c.b16 %v2182, %v2181
      %v2213 = vpack.c.b16 %v2184, %v2183
      %v2214 = vpack.c.b16 %v2186, %v2185
      %v2215 = vpack.c.b16 %v2188, %v2187
      %v2216 = vpack.c.b16 %v2190, %v2189
      %v2217 = vpack.c.b16 %v2192, %v2191
      %v2218 = vpack.c.b16 %v2194, %v2193
      %v2219 = vpack.c.b16 %v2196, %v2195
      %v2220 = vpack.c.b16 %v2198, %v2197
      %v2221 = vpack.c.b16 %v2200, %v2199
      %v2222 = vpack.c.b16 %v2202, %v2201
      %v2223 = vpack.c.b16 %v2204, %v2203
      %v2224 = vpack.c.b16 %v2206, %v2205
      %v2225 = vpack.c.b16 %v2208, %v2207
      %v2226 = vpack.c.b16 %v2209, %v2209
      %vm2227 = vsmask.f32 7424
      %v2229 = vshrl.u32 %v2210, 16
      %v2231 = vshll.u32 %v2210, 16
      %v2233 = vrot.slane %v2231, 1
      %v2234 = vor.u32 %v2229, %v2233
      %v2236 = vshll.u32 %v2211, 16
      %v2238 = vrot.slane %v2236, 1
      %v2239 = vsel %vm2227, %v2234, %v2238
      %v2240 = vshrl.u32 %v2211, 16
      %v2242 = vor.u32 %v2240, %v2238
      %v2244 = vshll.u32 %v2212, 16
      %v2246 = vrot.slane %v2244, 1
      %v2247 = vsel %vm2227, %v2242, %v2246
      %v2248 = vshrl.u32 %v2212, 16
      %v2250 = vor.u32 %v2248, %v2246
      %v2252 = vshll.u32 %v2213, 16
      %v2254 = vrot.slane %v2252, 1
      %v2255 = vsel %vm2227, %v2250, %v2254
      %v2256 = vshrl.u32 %v2213, 16
      %v2258 = vor.u32 %v2256, %v2254
      %v2260 = vshll.u32 %v2214, 16
      %v2262 = vrot.slane %v2260, 1
      %v2263 = vsel %vm2227, %v2258, %v2262
      %v2264 = vshrl.u32 %v2214, 16
      %v2266 = vor.u32 %v2264, %v2262
      %v2268 = vshll.u32 %v2215, 16
      %v2270 = vrot.slane %v2268, 1
      %v2271 = vsel %vm2227, %v2266, %v2270
      %v2272 = vshrl.u32 %v2215, 16
      %v2274 = vor.u32 %v2272, %v2270
      %v2276 = vshll.u32 %v2216, 16
      %v2278 = vrot.slane %v2276, 1
      %v2279 = vsel %vm2227, %v2274, %v2278
      %v2280 = vshrl.u32 %v2216, 16
      %v2282 = vor.u32 %v2280, %v2278
      %v2284 = vshll.u32 %v2217, 16
      %v2286 = vrot.slane %v2284, 1
      %v2287 = vsel %vm2227, %v2282, %v2286
      %v2288 = vshrl.u32 %v2217, 16
      %v2290 = vor.u32 %v2288, %v2286
      %v2292 = vshll.u32 %v2218, 16
      %v2294 = vrot.slane %v2292, 1
      %v2295 = vsel %vm2227, %v2290, %v2294
      %v2296 = vshrl.u32 %v2218, 16
      %v2298 = vor.u32 %v2296, %v2294
      %v2300 = vshll.u32 %v2219, 16
      %v2302 = vrot.slane %v2300, 1
      %v2303 = vsel %vm2227, %v2298, %v2302
      %v2304 = vshrl.u32 %v2219, 16
      %v2306 = vor.u32 %v2304, %v2302
      %v2308 = vshll.u32 %v2220, 16
      %v2310 = vrot.slane %v2308, 1
      %v2311 = vsel %vm2227, %v2306, %v2310
      %v2312 = vshrl.u32 %v2220, 16
      %v2314 = vor.u32 %v2312, %v2310
      %v2316 = vshll.u32 %v2221, 16
      %v2318 = vrot.slane %v2316, 1
      %v2319 = vsel %vm2227, %v2314, %v2318
      %v2320 = vshrl.u32 %v2221, 16
      %v2322 = vor.u32 %v2320, %v2318
      %v2324 = vshll.u32 %v2222, 16
      %v2326 = vrot.slane %v2324, 1
      %v2327 = vsel %vm2227, %v2322, %v2326
      %v2328 = vshrl.u32 %v2222, 16
      %v2330 = vor.u32 %v2328, %v2326
      %v2332 = vshll.u32 %v2223, 16
      %v2334 = vrot.slane %v2332, 1
      %v2335 = vsel %vm2227, %v2330, %v2334
      %v2336 = vshrl.u32 %v2223, 16
      %v2338 = vor.u32 %v2336, %v2334
      %v2340 = vshll.u32 %v2224, 16
      %v2342 = vrot.slane %v2340, 1
      %v2343 = vsel %vm2227, %v2338, %v2342
      %v2344 = vshrl.u32 %v2224, 16
      %v2346 = vor.u32 %v2344, %v2342
      %v2348 = vshll.u32 %v2225, 16
      %v2350 = vrot.slane %v2348, 1
      %v2351 = vsel %vm2227, %v2346, %v2350
      %v2352 = vshrl.u32 %v2225, 16
      %v2354 = vor.u32 %v2352, %v2350
      %v2356 = vshll.u32 %v2226, 16
      %v2358 = vrot.slane %v2356, 1
      %v2359 = vsel %vm2227, %v2354, %v2358
      %v2362 = vunpack.c.l.b16 %v2142
      %v2363 = vunpack.c.l.b16 %v2143
      %v2364 = vpack.c.b16 %v2363, %v2362
      %v2367 = vsel %vm1504, %v2239, 0
      %v2370 = vsel %vm1504, %v2247, 0
      %v2373 = vsel %vm1504, %v2255, 0
      %v2376 = vsel %vm1504, %v2263, 0
      %v2379 = vsel %vm1504, %v2271, 0
      %v2382 = vsel %vm1504, %v2279, 0
      %v2385 = vsel %vm1504, %v2287, 0
      %v2388 = vsel %vm1504, %v2295, 0
      %v2391 = vsel %vm1504, %v2303, 0
      %v2394 = vsel %vm1504, %v2311, 0
      %v2397 = vsel %vm1504, %v2319, 0
      %v2400 = vsel %vm1504, %v2327, 0
      %v2403 = vsel %vm1504, %v2335, 0
      %v2406 = vsel %vm1504, %v2343, 0
      %v2409 = vsel %vm1504, %v2351, 0
      %v2412 = vsel %vm1504, %v2359, 0
      %2414 = vmatprep.subr.bf16.mxu0 0
      %2415 = vmatpush1.bf16.msra.mxu0 %v2364
      %2416 = vmatprep.subr.bf16.mxu0 0
      %2417 = vmatpush1.bf16.msra.mxu0 0
      %2418 = vmatprep.subr.bf16.mxu0 0
      %2419 = vmatpush1.bf16.msra.mxu0 0
      %2420 = vmatprep.subr.bf16.mxu0 0
      %2421 = vmatpush1.bf16.msra.mxu0 0
      %2422 = vmatprep.subr.bf16.mxu0 0
      %2423 = vmatpush1.bf16.msra.mxu0 0
      %2424 = vmatprep.subr.bf16.mxu0 0
      %2425 = vmatpush1.bf16.msra.mxu0 0
      %2426 = vmatprep.subr.bf16.mxu0 0
      %2427 = vmatpush1.bf16.msra.mxu0 0
      %2428 = vmatprep.subr.bf16.mxu0 0
      %2429 = vmatpush1.bf16.msra.mxu0 0
      %2430 = vmatprep.subr.bf16.mxu0 0
      %2431 = vmatpush1.bf16.msra.mxu0 0
      %2432 = vmatprep.subr.bf16.mxu0 0
      %2433 = vmatpush1.bf16.msra.mxu0 0
      %2434 = vmatprep.subr.bf16.mxu0 0
      %2435 = vmatpush1.bf16.msra.mxu0 0
      %2436 = vmatprep.subr.bf16.mxu0 0
      %2437 = vmatpush1.bf16.msra.mxu0 0
      %2438 = vmatprep.subr.bf16.mxu0 0
      %2439 = vmatpush1.bf16.msra.mxu0 0
      %2440 = vmatprep.subr.bf16.mxu0 0
      %2441 = vmatpush1.bf16.msra.mxu0 0
      %2442 = vmatprep.subr.bf16.mxu0 0
      %2443 = vmatpush1.bf16.msra.mxu0 0
      %2444 = vmatprep.subr.bf16.mxu0 0
      %2445 = vmatpush1.bf16.msra.mxu0 0
      %2446 = vmatprep.mubr.bf16.mxu0 0
      %2447 = vmatmul.mubr.bf16.gmra.mrb[0].mxu0 %v2367
      %v2448 = vpop.f32.mrb[0].mxu0
      %v2449 = vadd.f32 0.0, %v2448
      %v2450 = vpop.f32.mrb[0].mxu0
      %v2451 = vpop.f32.mrb[0].mxu0
      %v2452 = vadd.f32 0.0, %v2451
      %v2453 = vpop.f32.mrb[0].mxu0
      %2454 = vmatprep.mubr.bf16.mxu0 0
      %2455 = vmatmul.mubr.bf16.gmra.mrb[0].mxu0 %v2370
      %v2456 = vpop.f32.mrb[0].mxu0
      %v2457 = vadd.f32 0.0, %v2456
      %v2458 = vpop.f32.mrb[0].mxu0
      %v2459 = vpop.f32.mrb[0].mxu0
      %v2460 = vadd.f32 0.0, %v2459
      %v2461 = vpop.f32.mrb[0].mxu0
      %2462 = vmatprep.mubr.bf16.mxu0 0
      %2463 = vmatmul.mubr.bf16.gmra.mrb[0].mxu0 %v2373
      %v2464 = vpop.f32.mrb[0].mxu0
      %v2465 = vadd.f32 0.0, %v2464
      %v2466 = vpop.f32.mrb[0].mxu0
      %v2467 = vpop.f32.mrb[0].mxu0
      %v2468 = vadd.f32 0.0, %v2467
      %v2469 = vpop.f32.mrb[0].mxu0
      %2470 = vmatprep.mubr.bf16.mxu0 0
      %2471 = vmatmul.mubr.bf16.gmra.mrb[0].mxu0 %v2376
      %v2472 = vpop.f32.mrb[0].mxu0
      %v2473 = vadd.f32 0.0, %v2472
      %v2474 = vpop.f32.mrb[0].mxu0
      %v2475 = vpop.f32.mrb[0].mxu0
      %v2476 = vadd.f32 0.0, %v2475
      %v2477 = vpop.f32.mrb[0].mxu0
      %2478 = vmatprep.mubr.bf16.mxu0 0
      %2479 = vmatmul.mubr.bf16.gmra.mrb[0].mxu0 %v2379
      %v2480 = vpop.f32.mrb[0].mxu0
      %v2481 = vadd.f32 0.0, %v2480
      %v2482 = vpop.f32.mrb[0].mxu0
      %v2483 = vpop.f32.mrb[0].mxu0
      %v2484 = vadd.f32 0.0, %v2483
      %v2485 = vpop.f32.mrb[0].mxu0
      %2486 = vmatprep.mubr.bf16.mxu0 0
      %2487 = vmatmul.mubr.bf16.gmra.mrb[0].mxu0 %v2382
      %v2488 = vpop.f32.mrb[0].mxu0
      %v2489 = vadd.f32 0.0, %v2488
      %v2490 = vpop.f32.mrb[0].mxu0
      %v2491 = vpop.f32.mrb[0].mxu0
      %v2492 = vadd.f32 0.0, %v2491
      %v2493 = vpop.f32.mrb[0].mxu0
      %2494 = vmatprep.mubr.bf16.mxu0 0
      %2495 = vmatmul.mubr.bf16.gmra.mrb[0].mxu0 %v2385
      %v2496 = vpop.f32.mrb[0].mxu0
      %v2497 = vadd.f32 0.0, %v2496
      %v2498 = vpop.f32.mrb[0].mxu0
      %v2499 = vpop.f32.mrb[0].mxu0
      %v2500 = vadd.f32 0.0, %v2499
      %v2501 = vpop.f32.mrb[0].mxu0
      %2502 = vmatprep.mubr.bf16.mxu0 0
      %2503 = vmatmul.mubr.bf16.gmra.mrb[0].mxu0 %v2388
      %v2504 = vpop.f32.mrb[0].mxu0
      %v2505 = vadd.f32 0.0, %v2504
      %v2506 = vpop.f32.mrb[0].mxu0
      %v2507 = vpop.f32.mrb[0].mxu0
      %v2508 = vadd.f32 0.0, %v2507
      %v2509 = vpop.f32.mrb[0].mxu0
      %2510 = vmatprep.mubr.bf16.mxu0 0
      %2511 = vmatmul.mubr.bf16.gmra.mrb[0].mxu0 %v2391
      %v2512 = vpop.f32.mrb[0].mxu0
      %v2513 = vadd.f32 0.0, %v2512
      %v2514 = vpop.f32.mrb[0].mxu0
      %v2515 = vpop.f32.mrb[0].mxu0
      %v2516 = vadd.f32 0.0, %v2515
      %v2517 = vpop.f32.mrb[0].mxu0
      %2518 = vmatprep.mubr.bf16.mxu0 0
      %2519 = vmatmul.mubr.bf16.gmra.mrb[0].mxu0 %v2394
      %v2520 = vpop.f32.mrb[0].mxu0
      %v2521 = vadd.f32 0.0, %v2520
      %v2522 = vpop.f32.mrb[0].mxu0
      %v2523 = vpop.f32.mrb[0].mxu0
      %v2524 = vadd.f32 0.0, %v2523
      %v2525 = vpop.f32.mrb[0].mxu0
      %2526 = vmatprep.mubr.bf16.mxu0 0
      %2527 = vmatmul.mubr.bf16.gmra.mrb[0].mxu0 %v2397
      %v2528 = vpop.f32.mrb[0].mxu0
      %v2529 = vadd.f32 0.0, %v2528
      %v2530 = vpop.f32.mrb[0].mxu0
      %v2531 = vpop.f32.mrb[0].mxu0
      %v2532 = vadd.f32 0.0, %v2531
      %v2533 = vpop.f32.mrb[0].mxu0
      %2534 = vmatprep.mubr.bf16.mxu0 0
      %2535 = vmatmul.mubr.bf16.gmra.mrb[0].mxu0 %v2400
      %v2536 = vpop.f32.mrb[0].mxu0
      %v2537 = vadd.f32 0.0, %v2536
      %v2538 = vpop.f32.mrb[0].mxu0
      %v2539 = vpop.f32.mrb[0].mxu0
      %v2540 = vadd.f32 0.0, %v2539
      %v2541 = vpop.f32.mrb[0].mxu0
      %2542 = vmatprep.mubr.bf16.mxu0 0
      %2543 = vmatmul.mubr.bf16.gmra.mrb[0].mxu0 %v2403
      %v2544 = vpop.f32.mrb[0].mxu0
      %v2545 = vadd.f32 0.0, %v2544
      %v2546 = vpop.f32.mrb[0].mxu0
      %v2547 = vpop.f32.mrb[0].mxu0
      %v2548 = vadd.f32 0.0, %v2547
      %v2549 = vpop.f32.mrb[0].mxu0
      %2550 = vmatprep.mubr.bf16.mxu0 0
      %2551 = vmatmul.mubr.bf16.gmra.mrb[0].mxu0 %v2406
      %v2552 = vpop.f32.mrb[0].mxu0
      %v2553 = vadd.f32 0.0, %v2552
      %v2554 = vpop.f32.mrb[0].mxu0
      %v2555 = vpop.f32.mrb[0].mxu0
      %v2556 = vadd.f32 0.0, %v2555
      %v2557 = vpop.f32.mrb[0].mxu0
      %2558 = vmatprep.mubr.bf16.mxu0 0
      %2559 = vmatmul.mubr.bf16.gmra.mrb[0].mxu0 %v2409
      %v2560 = vpop.f32.mrb[0].mxu0
      %v2561 = vadd.f32 0.0, %v2560
      %v2562 = vpop.f32.mrb[0].mxu0
      %v2563 = vpop.f32.mrb[0].mxu0
      %v2564 = vadd.f32 0.0, %v2563
      %v2565 = vpop.f32.mrb[0].mxu0
      %2566 = vmatprep.mubr.bf16.mxu0 0
      %2567 = vmatmul.mubr.bf16.gmra.mrb[0].mxu0 %v2412
      %v2568 = vpop.f32.mrb[0].mxu0
      %v2569 = vadd.f32 0.0, %v2568
      %v2570 = vpop.f32.mrb[0].mxu0
      %v2571 = vpop.f32.mrb[0].mxu0
      %v2572 = vadd.f32 0.0, %v2571
      %v2573 = vpop.f32.mrb[0].mxu0
      %2574 = vdwg.mxu0
      %v2575 = vld [vmem:[#allocation2] sm:$0xff]
      %v2576 = vld [vmem:[#allocation2 + $0x8] sm:$0xff]
      %v2577 = vld [vmem:[#allocation2 + $0x10] sm:$0xff]
      %v2578 = vld [vmem:[#allocation2 + $0x18] sm:$0xff]
      %v2579 = vld [vmem:[#allocation2 + $0x20] sm:$0xff]
      %v2580 = vld [vmem:[#allocation2 + $0x28] sm:$0xff]
      %v2581 = vld [vmem:[#allocation2 + $0x30] sm:$0xff]
      %v2582 = vld [vmem:[#allocation2 + $0x38] sm:$0xff]
      %v2583 = vld [vmem:[#allocation2 + $0x40] sm:$0xff]
      %v2584 = vld [vmem:[#allocation2 + $0x48] sm:$0xff]
      %v2585 = vld [vmem:[#allocation2 + $0x50] sm:$0xff]
      %v2586 = vld [vmem:[#allocation2 + $0x58] sm:$0xff]
      %v2587 = vld [vmem:[#allocation2 + $0x60] sm:$0xff]
      %v2588 = vld [vmem:[#allocation2 + $0x68] sm:$0xff]
      %v2589 = vld [vmem:[#allocation2 + $0x70] sm:$0xff]
      %v2590 = vld [vmem:[#allocation2 + $0x78] sm:$0xff]
      %v2591 = vld [vmem:[#allocation2 + $0x80] sm:$0xff]
      %v2592 = vld [vmem:[#allocation2 + $0x88] sm:$0xff]
      %v2593 = vld [vmem:[#allocation2 + $0x90] sm:$0xff]
      %v2594 = vld [vmem:[#allocation2 + $0x98] sm:$0xff]
      %v2595 = vld [vmem:[#allocation2 + $0xa0] sm:$0xff]
      %v2596 = vld [vmem:[#allocation2 + $0xa8] sm:$0xff]
      %v2597 = vld [vmem:[#allocation2 + $0xb0] sm:$0xff]
      %v2598 = vld [vmem:[#allocation2 + $0xb8] sm:$0xff]
      %v2599 = vld [vmem:[#allocation2 + $0xc0] sm:$0xff]
      %v2600 = vld [vmem:[#allocation2 + $0xc8] sm:$0xff]
      %v2601 = vld [vmem:[#allocation2 + $0xd0] sm:$0xff]
      %v2602 = vld [vmem:[#allocation2 + $0xd8] sm:$0xff]
      %v2603 = vld [vmem:[#allocation2 + $0xe0] sm:$0xff]
      %v2604 = vld [vmem:[#allocation2 + $0xe8] sm:$0xff]
      %v2605 = vld [vmem:[#allocation2 + $0xf0] sm:$0xff]
      %v2606 = vld [vmem:[#allocation2 + $0xf8] sm:$0xff]
      %v2607 = vadd.f32 %v2575, %v2449
      %v2608 = vadd.f32 %v2576, %v2452
      %v2609 = vadd.f32 %v2577, %v2457
      %v2610 = vadd.f32 %v2578, %v2460
      %v2611 = vadd.f32 %v2579, %v2465
      %v2612 = vadd.f32 %v2580, %v2468
      %v2613 = vadd.f32 %v2581, %v2473
      %v2614 = vadd.f32 %v2582, %v2476
      %v2615 = vadd.f32 %v2583, %v2481
      %v2616 = vadd.f32 %v2584, %v2484
      %v2617 = vadd.f32 %v2585, %v2489
      %v2618 = vadd.f32 %v2586, %v2492
      %v2619 = vadd.f32 %v2587, %v2497
      %v2620 = vadd.f32 %v2588, %v2500
      %v2621 = vadd.f32 %v2589, %v2505
      %v2622 = vadd.f32 %v2590, %v2508
      %v2623 = vadd.f32 %v2591, %v2513
      %v2624 = vadd.f32 %v2592, %v2516
      %v2625 = vadd.f32 %v2593, %v2521
      %v2626 = vadd.f32 %v2594, %v2524
      %v2627 = vadd.f32 %v2595, %v2529
      %v2628 = vadd.f32 %v2596, %v2532
      %v2629 = vadd.f32 %v2597, %v2537
      %v2630 = vadd.f32 %v2598, %v2540
      %v2631 = vadd.f32 %v2599, %v2545
      %v2632 = vadd.f32 %v2600, %v2548
      %v2633 = vadd.f32 %v2601, %v2553
      %v2634 = vadd.f32 %v2602, %v2556
      %v2635 = vadd.f32 %v2603, %v2561
      %v2636 = vadd.f32 %v2604, %v2564
      %v2637 = vadd.f32 %v2605, %v2569
      %v2638 = vadd.f32 %v2606, %v2572
      %2639 = vst.msk [vmem:[#allocation2] sm:$0xff] %vm1714, %v2607
      %2640 = vst.msk [vmem:[#allocation2 + $0x8] sm:$0xff] %vm1714, %v2608
      %2641 = vst.msk [vmem:[#allocation2 + $0x10] sm:$0xff] %vm1714, %v2609
      %2642 = vst.msk [vmem:[#allocation2 + $0x18] sm:$0xff] %vm1714, %v2610
      %2643 = vst.msk [vmem:[#allocation2 + $0x20] sm:$0xff] %vm1714, %v2611
      %2644 = vst.msk [vmem:[#allocation2 + $0x28] sm:$0xff] %vm1714, %v2612
      %2645 = vst.msk [vmem:[#allocation2 + $0x30] sm:$0xff] %vm1714, %v2613
      %2646 = vst.msk [vmem:[#allocation2 + $0x38] sm:$0xff] %vm1714, %v2614
      %2647 = vst.msk [vmem:[#allocation2 + $0x40] sm:$0xff] %vm1714, %v2615
      %2648 = vst.msk [vmem:[#allocation2 + $0x48] sm:$0xff] %vm1714, %v2616
      %2649 = vst.msk [vmem:[#allocation2 + $0x50] sm:$0xff] %vm1714, %v2617
      %2650 = vst.msk [vmem:[#allocation2 + $0x58] sm:$0xff] %vm1714, %v2618
      %2651 = vst.msk [vmem:[#allocation2 + $0x60] sm:$0xff] %vm1714, %v2619
      %2652 = vst.msk [vmem:[#allocation2 + $0x68] sm:$0xff] %vm1714, %v2620
      %2653 = vst.msk [vmem:[#allocation2 + $0x70] sm:$0xff] %vm1714, %v2621
      %2654 = vst.msk [vmem:[#allocation2 + $0x78] sm:$0xff] %vm1714, %v2622
      %2655 = vst.msk [vmem:[#allocation2 + $0x80] sm:$0xff] %vm1714, %v2623
      %2656 = vst.msk [vmem:[#allocation2 + $0x88] sm:$0xff] %vm1714, %v2624
      %2657 = vst.msk [vmem:[#allocation2 + $0x90] sm:$0xff] %vm1714, %v2625
      %2658 = vst.msk [vmem:[#allocation2 + $0x98] sm:$0xff] %vm1714, %v2626
      %2659 = vst.msk [vmem:[#allocation2 + $0xa0] sm:$0xff] %vm1714, %v2627
      %2660 = vst.msk [vmem:[#allocation2 + $0xa8] sm:$0xff] %vm1714, %v2628
      %2661 = vst.msk [vmem:[#allocation2 + $0xb0] sm:$0xff] %vm1714, %v2629
      %2662 = vst.msk [vmem:[#allocation2 + $0xb8] sm:$0xff] %vm1714, %v2630
      %2663 = vst.msk [vmem:[#allocation2 + $0xc0] sm:$0xff] %vm1714, %v2631
      %2664 = vst.msk [vmem:[#allocation2 + $0xc8] sm:$0xff] %vm1714, %v2632
      %2665 = vst.msk [vmem:[#allocation2 + $0xd0] sm:$0xff] %vm1714, %v2633
      %2666 = vst.msk [vmem:[#allocation2 + $0xd8] sm:$0xff] %vm1714, %v2634
      %2667 = vst.msk [vmem:[#allocation2 + $0xe0] sm:$0xff] %vm1714, %v2635
      %2668 = vst.msk [vmem:[#allocation2 + $0xe8] sm:$0xff] %vm1714, %v2636
      %2669 = vst.msk [vmem:[#allocation2 + $0xf0] sm:$0xff] %vm1714, %v2637
      %2670 = vst.msk [vmem:[#allocation2 + $0xf8] sm:$0xff] %vm1714, %v2638
      %s2671 = scalar_lea.vmem %s2, 24
      %v2672 = vld [vmem:[%s2671] sm:$0xf]
      %v2673 = vld [vmem:[%s2671 + $0x4] sm:$0xf]
      %v2676 = vunpack.c.l.b16 %v810
      %v2677 = vunpack.c.l.b16 %v811
      %v2678 = vpack.c.b16 %v2676, %v1327
      %v2679 = vpack.c.b16 %v2677, %v2677
      %v2681 = vshrl.u32 %v2678, 16
      %v2683 = vrot.slane %v2681, 3
      %v2684 = vshll.u32 %v2678, 16
      %v2686 = vrot.slane %v2684, 4
      %v2687 = vor.u32 %v2683, %v2686
      %v2688 = vsel %vm1345, %v1487, %v2687
      %v2690 = vshrl.u32 %v2679, 16
      %v2692 = vrot.slane %v2690, 3
      %v2693 = vshll.u32 %v2679, 16
      %v2695 = vrot.slane %v2693, 4
      %v2696 = vor.u32 %v2692, %v2695
      %v2697 = vsel %vm1345, %v2687, %v2696
      %v2700 = vunpack.c.l.b16 %v2672
      %v2701 = vunpack.c.l.b16 %v2673
      %v2702 = vpack.c.b16 %v2701, %v2700
      %v2705 = vsel %vm1504, %v2688, 0
      %v2708 = vsel %vm1504, %v2697, 0
      %2710 = vmatprep.subr.bf16.mxu0 0
      %2711 = vmatpush1.bf16.msra.mxu0 %v2702
      %2712 = vmatprep.subr.bf16.mxu0 0
      %2713 = vmatpush1.bf16.msra.mxu0 0
      %2714 = vmatprep.subr.bf16.mxu0 0
      %2715 = vmatpush1.bf16.msra.mxu0 0
      %2716 = vmatprep.subr.bf16.mxu0 0
      %2717 = vmatpush1.bf16.msra.mxu0 0
      %2718 = vmatprep.subr.bf16.mxu0 0
      %2719 = vmatpush1.bf16.msra.mxu0 0
      %2720 = vmatprep.subr.bf16.mxu0 0
      %2721 = vmatpush1.bf16.msra.mxu0 0
      %2722 = vmatprep.subr.bf16.mxu0 0
      %2723 = vmatpush1.bf16.msra.mxu0 0
      %2724 = vmatprep.subr.bf16.mxu0 0
      %2725 = vmatpush1.bf16.msra.mxu0 0
      %2726 = vmatprep.subr.bf16.mxu0 0
      %2727 = vmatpush1.bf16.msra.mxu0 0
      %2728 = vmatprep.subr.bf16.mxu0 0
      %2729 = vmatpush1.bf16.msra.mxu0 0
      %2730 = vmatprep.subr.bf16.mxu0 0
      %2731 = vmatpush1.bf16.msra.mxu0 0
      %2732 = vmatprep.subr.bf16.mxu0 0
      %2733 = vmatpush1.bf16.msra.mxu0 0
      %2734 = vmatprep.subr.bf16.mxu0 0
      %2735 = vmatpush1.bf16.msra.mxu0 0
      %2736 = vmatprep.subr.bf16.mxu0 0
      %2737 = vmatpush1.bf16.msra.mxu0 0
      %2738 = vmatprep.subr.bf16.mxu0 0
      %2739 = vmatpush1.bf16.msra.mxu0 0
      %2740 = vmatprep.subr.bf16.mxu0 0
      %2741 = vmatpush1.bf16.msra.mxu0 0
      %2742 = vmatprep.mubr.bf16.mxu0 0
      %2743 = vmatmul.mubr.bf16.gmra.mrb[0].mxu0 %v1509
      %v2744 = vpop.f32.mrb[0].mxu0
      %v2745 = vadd.f32 0.0, %v2744
      %v2746 = vpop.f32.mrb[0].mxu0
      %v2747 = vpop.f32.mrb[0].mxu0
      %v2748 = vadd.f32 0.0, %v2747
      %v2749 = vpop.f32.mrb[0].mxu0
      %2750 = vmatprep.mubr.bf16.mxu0 0
      %2751 = vmatmul.mubr.bf16.gmra.mrb[0].mxu0 %v1512
      %v2752 = vpop.f32.mrb[0].mxu0
      %v2753 = vadd.f32 0.0, %v2752
      %v2754 = vpop.f32.mrb[0].mxu0
      %v2755 = vpop.f32.mrb[0].mxu0
      %v2756 = vadd.f32 0.0, %v2755
      %v2757 = vpop.f32.mrb[0].mxu0
      %2758 = vmatprep.mubr.bf16.mxu0 0
      %2759 = vmatmul.mubr.bf16.gmra.mrb[0].mxu0 %v1515
      %v2760 = vpop.f32.mrb[0].mxu0
      %v2761 = vadd.f32 0.0, %v2760
      %v2762 = vpop.f32.mrb[0].mxu0
      %v2763 = vpop.f32.mrb[0].mxu0
      %v2764 = vadd.f32 0.0, %v2763
      %v2765 = vpop.f32.mrb[0].mxu0
      %2766 = vmatprep.mubr.bf16.mxu0 0
      %2767 = vmatmul.mubr.bf16.gmra.mrb[0].mxu0 %v1518
      %v2768 = vpop.f32.mrb[0].mxu0
      %v2769 = vadd.f32 0.0, %v2768
      %v2770 = vpop.f32.mrb[0].mxu0
      %v2771 = vpop.f32.mrb[0].mxu0
      %v2772 = vadd.f32 0.0, %v2771
      %v2773 = vpop.f32.mrb[0].mxu0
      %2774 = vmatprep.mubr.bf16.mxu0 0
      %2775 = vmatmul.mubr.bf16.gmra.mrb[0].mxu0 %v1521
      %v2776 = vpop.f32.mrb[0].mxu0
      %v2777 = vadd.f32 0.0, %v2776
      %v2778 = vpop.f32.mrb[0].mxu0
      %v2779 = vpop.f32.mrb[0].mxu0
      %v2780 = vadd.f32 0.0, %v2779
      %v2781 = vpop.f32.mrb[0].mxu0
      %2782 = vmatprep.mubr.bf16.mxu0 0
      %2783 = vmatmul.mubr.bf16.gmra.mrb[0].mxu0 %v1524
      %v2784 = vpop.f32.mrb[0].mxu0
      %v2785 = vadd.f32 0.0, %v2784
      %v2786 = vpop.f32.mrb[0].mxu0
      %v2787 = vpop.f32.mrb[0].mxu0
      %v2788 = vadd.f32 0.0, %v2787
      %v2789 = vpop.f32.mrb[0].mxu0
      %2790 = vmatprep.mubr.bf16.mxu0 0
      %2791 = vmatmul.mubr.bf16.gmra.mrb[0].mxu0 %v1527
      %v2792 = vpop.f32.mrb[0].mxu0
      %v2793 = vadd.f32 0.0, %v2792
      %v2794 = vpop.f32.mrb[0].mxu0
      %v2795 = vpop.f32.mrb[0].mxu0
      %v2796 = vadd.f32 0.0, %v2795
      %v2797 = vpop.f32.mrb[0].mxu0
      %2798 = vmatprep.mubr.bf16.mxu0 0
      %2799 = vmatmul.mubr.bf16.gmra.mrb[0].mxu0 %v1530
      %v2800 = vpop.f32.mrb[0].mxu0
      %v2801 = vadd.f32 0.0, %v2800
      %v2802 = vpop.f32.mrb[0].mxu0
      %v2803 = vpop.f32.mrb[0].mxu0
      %v2804 = vadd.f32 0.0, %v2803
      %v2805 = vpop.f32.mrb[0].mxu0
      %2806 = vmatprep.mubr.bf16.mxu0 0
      %2807 = vmatmul.mubr.bf16.gmra.mrb[0].mxu0 %v1533
      %v2808 = vpop.f32.mrb[0].mxu0
      %v2809 = vadd.f32 0.0, %v2808
      %v2810 = vpop.f32.mrb[0].mxu0
      %v2811 = vpop.f32.mrb[0].mxu0
      %v2812 = vadd.f32 0.0, %v2811
      %v2813 = vpop.f32.mrb[0].mxu0
      %2814 = vmatprep.mubr.bf16.mxu0 0
      %2815 = vmatmul.mubr.bf16.gmra.mrb[0].mxu0 %v1536
      %v2816 = vpop.f32.mrb[0].mxu0
      %v2817 = vadd.f32 0.0, %v2816
      %v2818 = vpop.f32.mrb[0].mxu0
      %v2819 = vpop.f32.mrb[0].mxu0
      %v2820 = vadd.f32 0.0, %v2819
      %v2821 = vpop.f32.mrb[0].mxu0
      %2822 = vmatprep.mubr.bf16.mxu0 0
      %2823 = vmatmul.mubr.bf16.gmra.mrb[0].mxu0 %v1539
      %v2824 = vpop.f32.mrb[0].mxu0
      %v2825 = vadd.f32 0.0, %v2824
      %v2826 = vpop.f32.mrb[0].mxu0
      %v2827 = vpop.f32.mrb[0].mxu0
      %v2828 = vadd.f32 0.0, %v2827
      %v2829 = vpop.f32.mrb[0].mxu0
      %2830 = vmatprep.mubr.bf16.mxu0 0
      %2831 = vmatmul.mubr.bf16.gmra.mrb[0].mxu0 %v1542
      %v2832 = vpop.f32.mrb[0].mxu0
      %v2833 = vadd.f32 0.0, %v2832
      %v2834 = vpop.f32.mrb[0].mxu0
      %v2835 = vpop.f32.mrb[0].mxu0
      %v2836 = vadd.f32 0.0, %v2835
      %v2837 = vpop.f32.mrb[0].mxu0
      %2838 = vmatprep.mubr.bf16.mxu0 0
      %2839 = vmatmul.mubr.bf16.gmra.mrb[0].mxu0 %v1545
      %v2840 = vpop.f32.mrb[0].mxu0
      %v2841 = vadd.f32 0.0, %v2840
      %v2842 = vpop.f32.mrb[0].mxu0
      %v2843 = vpop.f32.mrb[0].mxu0
      %v2844 = vadd.f32 0.0, %v2843
      %v2845 = vpop.f32.mrb[0].mxu0
      %2846 = vmatprep.mubr.bf16.mxu0 0
      %2847 = vmatmul.mubr.bf16.gmra.mrb[0].mxu0 %v1548
      %v2848 = vpop.f32.mrb[0].mxu0
      %v2849 = vadd.f32 0.0, %v2848
      %v2850 = vpop.f32.mrb[0].mxu0
      %v2851 = vpop.f32.mrb[0].mxu0
      %v2852 = vadd.f32 0.0, %v2851
      %v2853 = vpop.f32.mrb[0].mxu0
      %2854 = vmatprep.mubr.bf16.mxu0 0
      %2855 = vmatmul.mubr.bf16.gmra.mrb[0].mxu0 %v2705
      %v2856 = vpop.f32.mrb[0].mxu0
      %v2857 = vadd.f32 0.0, %v2856
      %v2858 = vpop.f32.mrb[0].mxu0
      %v2859 = vpop.f32.mrb[0].mxu0
      %v2860 = vadd.f32 0.0, %v2859
      %v2861 = vpop.f32.mrb[0].mxu0
      %2862 = vmatprep.mubr.bf16.mxu0 0
      %2863 = vmatmul.mubr.bf16.gmra.mrb[0].mxu0 %v2708
      %v2864 = vpop.f32.mrb[0].mxu0
      %v2865 = vadd.f32 0.0, %v2864
      %v2866 = vpop.f32.mrb[0].mxu0
      %v2867 = vpop.f32.mrb[0].mxu0
      %v2868 = vadd.f32 0.0, %v2867
      %v2869 = vpop.f32.mrb[0].mxu0
      %2870 = vdwg.mxu0
      %v2871 = vld [vmem:[#allocation2] sm:$0xff]
      %v2872 = vld [vmem:[#allocation2 + $0x8] sm:$0xff]
      %v2873 = vld [vmem:[#allocation2 + $0x10] sm:$0xff]
      %v2874 = vld [vmem:[#allocation2 + $0x18] sm:$0xff]
      %v2875 = vld [vmem:[#allocation2 + $0x20] sm:$0xff]
      %v2876 = vld [vmem:[#allocation2 + $0x28] sm:$0xff]
      %v2877 = vld [vmem:[#allocation2 + $0x30] sm:$0xff]
      %v2878 = vld [vmem:[#allocation2 + $0x38] sm:$0xff]
      %v2879 = vld [vmem:[#allocation2 + $0x40] sm:$0xff]
      %v2880 = vld [vmem:[#allocation2 + $0x48] sm:$0xff]
      %v2881 = vld [vmem:[#allocation2 + $0x50] sm:$0xff]
      %v2882 = vld [vmem:[#allocation2 + $0x58] sm:$0xff]
      %v2883 = vld [vmem:[#allocation2 + $0x60] sm:$0xff]
      %v2884 = vld [vmem:[#allocation2 + $0x68] sm:$0xff]
      %v2885 = vld [vmem:[#allocation2 + $0x70] sm:$0xff]
      %v2886 = vld [vmem:[#allocation2 + $0x78] sm:$0xff]
      %v2887 = vld [vmem:[#allocation2 + $0x80] sm:$0xff]
      %v2888 = vld [vmem:[#allocation2 + $0x88] sm:$0xff]
      %v2889 = vld [vmem:[#allocation2 + $0x90] sm:$0xff]
      %v2890 = vld [vmem:[#allocation2 + $0x98] sm:$0xff]
      %v2891 = vld [vmem:[#allocation2 + $0xa0] sm:$0xff]
      %v2892 = vld [vmem:[#allocation2 + $0xa8] sm:$0xff]
      %v2893 = vld [vmem:[#allocation2 + $0xb0] sm:$0xff]
      %v2894 = vld [vmem:[#allocation2 + $0xb8] sm:$0xff]
      %v2895 = vld [vmem:[#allocation2 + $0xc0] sm:$0xff]
      %v2896 = vld [vmem:[#allocation2 + $0xc8] sm:$0xff]
      %v2897 = vld [vmem:[#allocation2 + $0xd0] sm:$0xff]
      %v2898 = vld [vmem:[#allocation2 + $0xd8] sm:$0xff]
      %v2899 = vld [vmem:[#allocation2 + $0xe0] sm:$0xff]
      %v2900 = vld [vmem:[#allocation2 + $0xe8] sm:$0xff]
      %v2901 = vld [vmem:[#allocation2 + $0xf0] sm:$0xff]
      %v2902 = vld [vmem:[#allocation2 + $0xf8] sm:$0xff]
      %v2903 = vadd.f32 %v2871, %v2745
      %v2904 = vadd.f32 %v2872, %v2748
      %v2905 = vadd.f32 %v2873, %v2753
      %v2906 = vadd.f32 %v2874, %v2756
      %v2907 = vadd.f32 %v2875, %v2761
      %v2908 = vadd.f32 %v2876, %v2764
      %v2909 = vadd.f32 %v2877, %v2769
      %v2910 = vadd.f32 %v2878, %v2772
      %v2911 = vadd.f32 %v2879, %v2777
      %v2912 = vadd.f32 %v2880, %v2780
      %v2913 = vadd.f32 %v2881, %v2785
      %v2914 = vadd.f32 %v2882, %v2788
      %v2915 = vadd.f32 %v2883, %v2793
      %v2916 = vadd.f32 %v2884, %v2796
      %v2917 = vadd.f32 %v2885, %v2801
      %v2918 = vadd.f32 %v2886, %v2804
      %v2919 = vadd.f32 %v2887, %v2809
      %v2920 = vadd.f32 %v2888, %v2812
      %v2921 = vadd.f32 %v2889, %v2817
      %v2922 = vadd.f32 %v2890, %v2820
      %v2923 = vadd.f32 %v2891, %v2825
      %v2924 = vadd.f32 %v2892, %v2828
      %v2925 = vadd.f32 %v2893, %v2833
      %v2926 = vadd.f32 %v2894, %v2836
      %v2927 = vadd.f32 %v2895, %v2841
      %v2928 = vadd.f32 %v2896, %v2844
      %v2929 = vadd.f32 %v2897, %v2849
      %v2930 = vadd.f32 %v2898, %v2852
      %v2931 = vadd.f32 %v2899, %v2857
      %v2932 = vadd.f32 %v2900, %v2860
      %v2933 = vadd.f32 %v2901, %v2865
      %v2934 = vadd.f32 %v2902, %v2868
      %2935 = vst.msk [vmem:[#allocation2] sm:$0xff] %vm1714, %v2903
      %2936 = vst.msk [vmem:[#allocation2 + $0x8] sm:$0xff] %vm1714, %v2904
      %2937 = vst.msk [vmem:[#allocation2 + $0x10] sm:$0xff] %vm1714, %v2905
      %2938 = vst.msk [vmem:[#allocation2 + $0x18] sm:$0xff] %vm1714, %v2906
      %2939 = vst.msk [vmem:[#allocation2 + $0x20] sm:$0xff] %vm1714, %v2907
      %2940 = vst.msk [vmem:[#allocation2 + $0x28] sm:$0xff] %vm1714, %v2908
      %2941 = vst.msk [vmem:[#allocation2 + $0x30] sm:$0xff] %vm1714, %v2909
      %2942 = vst.msk [vmem:[#allocation2 + $0x38] sm:$0xff] %vm1714, %v2910
      %2943 = vst.msk [vmem:[#allocation2 + $0x40] sm:$0xff] %vm1714, %v2911
      %2944 = vst.msk [vmem:[#allocation2 + $0x48] sm:$0xff] %vm1714, %v2912
      %2945 = vst.msk [vmem:[#allocation2 + $0x50] sm:$0xff] %vm1714, %v2913
      %2946 = vst.msk [vmem:[#allocation2 + $0x58] sm:$0xff] %vm1714, %v2914
      %2947 = vst.msk [vmem:[#allocation2 + $0x60] sm:$0xff] %vm1714, %v2915
      %2948 = vst.msk [vmem:[#allocation2 + $0x68] sm:$0xff] %vm1714, %v2916
      %2949 = vst.msk [vmem:[#allocation2 + $0x70] sm:$0xff] %vm1714, %v2917
      %2950 = vst.msk [vmem:[#allocation2 + $0x78] sm:$0xff] %vm1714, %v2918
      %2951 = vst.msk [vmem:[#allocation2 + $0x80] sm:$0xff] %vm1714, %v2919
      %2952 = vst.msk [vmem:[#allocation2 + $0x88] sm:$0xff] %vm1714, %v2920
      %2953 = vst.msk [vmem:[#allocation2 + $0x90] sm:$0xff] %vm1714, %v2921
      %2954 = vst.msk [vmem:[#allocation2 + $0x98] sm:$0xff] %vm1714, %v2922
      %2955 = vst.msk [vmem:[#allocation2 + $0xa0] sm:$0xff] %vm1714, %v2923
      %2956 = vst.msk [vmem:[#allocation2 + $0xa8] sm:$0xff] %vm1714, %v2924
      %2957 = vst.msk [vmem:[#allocation2 + $0xb0] sm:$0xff] %vm1714, %v2925
      %2958 = vst.msk [vmem:[#allocation2 + $0xb8] sm:$0xff] %vm1714, %v2926
      %2959 = vst.msk [vmem:[#allocation2 + $0xc0] sm:$0xff] %vm1714, %v2927
      %2960 = vst.msk [vmem:[#allocation2 + $0xc8] sm:$0xff] %vm1714, %v2928
      %2961 = vst.msk [vmem:[#allocation2 + $0xd0] sm:$0xff] %vm1714, %v2929
      %2962 = vst.msk [vmem:[#allocation2 + $0xd8] sm:$0xff] %vm1714, %v2930
      %2963 = vst.msk [vmem:[#allocation2 + $0xe0] sm:$0xff] %vm1714, %v2931
      %2964 = vst.msk [vmem:[#allocation2 + $0xe8] sm:$0xff] %vm1714, %v2932
      %2965 = vst.msk [vmem:[#allocation2 + $0xf0] sm:$0xff] %vm1714, %v2933
      %2966 = vst.msk [vmem:[#allocation2 + $0xf8] sm:$0xff] %vm1714, %v2934
      %s2967 = scalar_lea.vmem %s2, 32
      %v2968 = vld [vmem:[%s2967] sm:$0xf]
      %v2969 = vld [vmem:[%s2967 + $0x4] sm:$0xf]
      %v2972 = vunpack.c.l.b16 %v291
      %v2973 = vunpack.c.l.b16 %v292
      %v2974 = vpack.c.b16 %v2973, %v2972
      %v2977 = vunpack.c.l.b16 %v2968
      %v2978 = vunpack.c.l.b16 %v2969
      %v2979 = vpack.c.b16 %v2978, %v2977
      %v2982 = vsel %vm1504, %v2974, 0
      %2984 = vmatprep.subr.bf16.mxu0 0
      %2985 = vmatpush1.bf16.msra.mxu0 %v2979
      %2986 = vmatprep.subr.bf16.mxu0 0
      %2987 = vmatpush1.bf16.msra.mxu0 0
      %2988 = vmatprep.subr.bf16.mxu0 0
      %2989 = vmatpush1.bf16.msra.mxu0 0
      %2990 = vmatprep.subr.bf16.mxu0 0
      %2991 = vmatpush1.bf16.msra.mxu0 0
      %2992 = vmatprep.subr.bf16.mxu0 0
      %2993 = vmatpush1.bf16.msra.mxu0 0
      %2994 = vmatprep.subr.bf16.mxu0 0
      %2995 = vmatpush1.bf16.msra.mxu0 0
      %2996 = vmatprep.subr.bf16.mxu0 0
      %2997 = vmatpush1.bf16.msra.mxu0 0
      %2998 = vmatprep.subr.bf16.mxu0 0
      %2999 = vmatpush1.bf16.msra.mxu0 0
      %3000 = vmatprep.subr.bf16.mxu0 0
      %3001 = vmatpush1.bf16.msra.mxu0 0
      %3002 = vmatprep.subr.bf16.mxu0 0
      %3003 = vmatpush1.bf16.msra.mxu0 0
      %3004 = vmatprep.subr.bf16.mxu0 0
      %3005 = vmatpush1.bf16.msra.mxu0 0
      %3006 = vmatprep.subr.bf16.mxu0 0
      %3007 = vmatpush1.bf16.msra.mxu0 0
      %3008 = vmatprep.subr.bf16.mxu0 0
      %3009 = vmatpush1.bf16.msra.mxu0 0
      %3010 = vmatprep.subr.bf16.mxu0 0
      %3011 = vmatpush1.bf16.msra.mxu0 0
      %3012 = vmatprep.subr.bf16.mxu0 0
      %3013 = vmatpush1.bf16.msra.mxu0 0
      %3014 = vmatprep.subr.bf16.mxu0 0
      %3015 = vmatpush1.bf16.msra.mxu0 0
      %3016 = vmatprep.mubr.bf16.mxu0 0
      %3017 = vmatmul.mubr.bf16.gmra.mrb[0].mxu0 %v1840
      %v3018 = vpop.f32.mrb[0].mxu0
      %v3019 = vadd.f32 0.0, %v3018
      %v3020 = vpop.f32.mrb[0].mxu0
      %v3021 = vpop.f32.mrb[0].mxu0
      %v3022 = vadd.f32 0.0, %v3021
      %v3023 = vpop.f32.mrb[0].mxu0
      %3024 = vmatprep.mubr.bf16.mxu0 0
      %3025 = vmatmul.mubr.bf16.gmra.mrb[0].mxu0 %v1843
      %v3026 = vpop.f32.mrb[0].mxu0
      %v3027 = vadd.f32 0.0, %v3026
      %v3028 = vpop.f32.mrb[0].mxu0
      %v3029 = vpop.f32.mrb[0].mxu0
      %v3030 = vadd.f32 0.0, %v3029
      %v3031 = vpop.f32.mrb[0].mxu0
      %3032 = vmatprep.mubr.bf16.mxu0 0
      %3033 = vmatmul.mubr.bf16.gmra.mrb[0].mxu0 %v1846
      %v3034 = vpop.f32.mrb[0].mxu0
      %v3035 = vadd.f32 0.0, %v3034
      %v3036 = vpop.f32.mrb[0].mxu0
      %v3037 = vpop.f32.mrb[0].mxu0
      %v3038 = vadd.f32 0.0, %v3037
      %v3039 = vpop.f32.mrb[0].mxu0
      %3040 = vmatprep.mubr.bf16.mxu0 0
      %3041 = vmatmul.mubr.bf16.gmra.mrb[0].mxu0 %v1849
      %v3042 = vpop.f32.mrb[0].mxu0
      %v3043 = vadd.f32 0.0, %v3042
      %v3044 = vpop.f32.mrb[0].mxu0
      %v3045 = vpop.f32.mrb[0].mxu0
      %v3046 = vadd.f32 0.0, %v3045
      %v3047 = vpop.f32.mrb[0].mxu0
      %3048 = vmatprep.mubr.bf16.mxu0 0
      %3049 = vmatmul.mubr.bf16.gmra.mrb[0].mxu0 %v1852
      %v3050 = vpop.f32.mrb[0].mxu0
      %v3051 = vadd.f32 0.0, %v3050
      %v3052 = vpop.f32.mrb[0].mxu0
      %v3053 = vpop.f32.mrb[0].mxu0
      %v3054 = vadd.f32 0.0, %v3053
      %v3055 = vpop.f32.mrb[0].mxu0
      %3056 = vmatprep.mubr.bf16.mxu0 0
      %3057 = vmatmul.mubr.bf16.gmra.mrb[0].mxu0 %v1855
      %v3058 = vpop.f32.mrb[0].mxu0
      %v3059 = vadd.f32 0.0, %v3058
      %v3060 = vpop.f32.mrb[0].mxu0
      %v3061 = vpop.f32.mrb[0].mxu0
      %v3062 = vadd.f32 0.0, %v3061
      %v3063 = vpop.f32.mrb[0].mxu0
      %3064 = vmatprep.mubr.bf16.mxu0 0
      %3065 = vmatmul.mubr.bf16.gmra.mrb[0].mxu0 %v1858
      %v3066 = vpop.f32.mrb[0].mxu0
      %v3067 = vadd.f32 0.0, %v3066
      %v3068 = vpop.f32.mrb[0].mxu0
      %v3069 = vpop.f32.mrb[0].mxu0
      %v3070 = vadd.f32 0.0, %v3069
      %v3071 = vpop.f32.mrb[0].mxu0
      %3072 = vmatprep.mubr.bf16.mxu0 0
      %3073 = vmatmul.mubr.bf16.gmra.mrb[0].mxu0 %v1861
      %v3074 = vpop.f32.mrb[0].mxu0
      %v3075 = vadd.f32 0.0, %v3074
      %v3076 = vpop.f32.mrb[0].mxu0
      %v3077 = vpop.f32.mrb[0].mxu0
      %v3078 = vadd.f32 0.0, %v3077
      %v3079 = vpop.f32.mrb[0].mxu0
      %3080 = vmatprep.mubr.bf16.mxu0 0
      %3081 = vmatmul.mubr.bf16.gmra.mrb[0].mxu0 %v1864
      %v3082 = vpop.f32.mrb[0].mxu0
      %v3083 = vadd.f32 0.0, %v3082
      %v3084 = vpop.f32.mrb[0].mxu0
      %v3085 = vpop.f32.mrb[0].mxu0
      %v3086 = vadd.f32 0.0, %v3085
      %v3087 = vpop.f32.mrb[0].mxu0
      %3088 = vmatprep.mubr.bf16.mxu0 0
      %3089 = vmatmul.mubr.bf16.gmra.mrb[0].mxu0 %v1867
      %v3090 = vpop.f32.mrb[0].mxu0
      %v3091 = vadd.f32 0.0, %v3090
      %v3092 = vpop.f32.mrb[0].mxu0
      %v3093 = vpop.f32.mrb[0].mxu0
      %v3094 = vadd.f32 0.0, %v3093
      %v3095 = vpop.f32.mrb[0].mxu0
      %3096 = vmatprep.mubr.bf16.mxu0 0
      %3097 = vmatmul.mubr.bf16.gmra.mrb[0].mxu0 %v1870
      %v3098 = vpop.f32.mrb[0].mxu0
      %v3099 = vadd.f32 0.0, %v3098
      %v3100 = vpop.f32.mrb[0].mxu0
      %v3101 = vpop.f32.mrb[0].mxu0
      %v3102 = vadd.f32 0.0, %v3101
      %v3103 = vpop.f32.mrb[0].mxu0
      %3104 = vmatprep.mubr.bf16.mxu0 0
      %3105 = vmatmul.mubr.bf16.gmra.mrb[0].mxu0 %v1873
      %v3106 = vpop.f32.mrb[0].mxu0
      %v3107 = vadd.f32 0.0, %v3106
      %v3108 = vpop.f32.mrb[0].mxu0
      %v3109 = vpop.f32.mrb[0].mxu0
      %v3110 = vadd.f32 0.0, %v3109
      %v3111 = vpop.f32.mrb[0].mxu0
      %3112 = vmatprep.mubr.bf16.mxu0 0
      %3113 = vmatmul.mubr.bf16.gmra.mrb[0].mxu0 %v1876
      %v3114 = vpop.f32.mrb[0].mxu0
      %v3115 = vadd.f32 0.0, %v3114
      %v3116 = vpop.f32.mrb[0].mxu0
      %v3117 = vpop.f32.mrb[0].mxu0
      %v3118 = vadd.f32 0.0, %v3117
      %v3119 = vpop.f32.mrb[0].mxu0
      %3120 = vmatprep.mubr.bf16.mxu0 0
      %3121 = vmatmul.mubr.bf16.gmra.mrb[0].mxu0 %v1879
      %v3122 = vpop.f32.mrb[0].mxu0
      %v3123 = vadd.f32 0.0, %v3122
      %v3124 = vpop.f32.mrb[0].mxu0
      %v3125 = vpop.f32.mrb[0].mxu0
      %v3126 = vadd.f32 0.0, %v3125
      %v3127 = vpop.f32.mrb[0].mxu0
      %3128 = vmatprep.mubr.bf16.mxu0 0
      %3129 = vmatmul.mubr.bf16.gmra.mrb[0].mxu0 %v1882
      %v3130 = vpop.f32.mrb[0].mxu0
      %v3131 = vadd.f32 0.0, %v3130
      %v3132 = vpop.f32.mrb[0].mxu0
      %v3133 = vpop.f32.mrb[0].mxu0
      %v3134 = vadd.f32 0.0, %v3133
      %v3135 = vpop.f32.mrb[0].mxu0
      %3136 = vmatprep.mubr.bf16.mxu0 0
      %3137 = vmatmul.mubr.bf16.gmra.mrb[0].mxu0 %v2982
      %v3138 = vpop.f32.mrb[0].mxu0
      %v3139 = vadd.f32 0.0, %v3138
      %v3140 = vpop.f32.mrb[0].mxu0
      %v3141 = vpop.f32.mrb[0].mxu0
      %v3142 = vadd.f32 0.0, %v3141
      %v3143 = vpop.f32.mrb[0].mxu0
      %3144 = vdwg.mxu0
      %v3145 = vld [vmem:[#allocation2] sm:$0xff]
      %v3146 = vld [vmem:[#allocation2 + $0x8] sm:$0xff]
      %v3147 = vld [vmem:[#allocation2 + $0x10] sm:$0xff]
      %v3148 = vld [vmem:[#allocation2 + $0x18] sm:$0xff]
      %v3149 = vld [vmem:[#allocation2 + $0x20] sm:$0xff]
      %v3150 = vld [vmem:[#allocation2 + $0x28] sm:$0xff]
      %v3151 = vld [vmem:[#allocation2 + $0x30] sm:$0xff]
      %v3152 = vld [vmem:[#allocation2 + $0x38] sm:$0xff]
      %v3153 = vld [vmem:[#allocation2 + $0x40] sm:$0xff]
      %v3154 = vld [vmem:[#allocation2 + $0x48] sm:$0xff]
      %v3155 = vld [vmem:[#allocation2 + $0x50] sm:$0xff]
      %v3156 = vld [vmem:[#allocation2 + $0x58] sm:$0xff]
      %v3157 = vld [vmem:[#allocation2 + $0x60] sm:$0xff]
      %v3158 = vld [vmem:[#allocation2 + $0x68] sm:$0xff]
      %v3159 = vld [vmem:[#allocation2 + $0x70] sm:$0xff]
      %v3160 = vld [vmem:[#allocation2 + $0x78] sm:$0xff]
      %v3161 = vld [vmem:[#allocation2 + $0x80] sm:$0xff]
      %v3162 = vld [vmem:[#allocation2 + $0x88] sm:$0xff]
      %v3163 = vld [vmem:[#allocation2 + $0x90] sm:$0xff]
      %v3164 = vld [vmem:[#allocation2 + $0x98] sm:$0xff]
      %v3165 = vld [vmem:[#allocation2 + $0xa0] sm:$0xff]
      %v3166 = vld [vmem:[#allocation2 + $0xa8] sm:$0xff]
      %v3167 = vld [vmem:[#allocation2 + $0xb0] sm:$0xff]
      %v3168 = vld [vmem:[#allocation2 + $0xb8] sm:$0xff]
      %v3169 = vld [vmem:[#allocation2 + $0xc0] sm:$0xff]
      %v3170 = vld [vmem:[#allocation2 + $0xc8] sm:$0xff]
      %v3171 = vld [vmem:[#allocation2 + $0xd0] sm:$0xff]
      %v3172 = vld [vmem:[#allocation2 + $0xd8] sm:$0xff]
      %v3173 = vld [vmem:[#allocation2 + $0xe0] sm:$0xff]
      %v3174 = vld [vmem:[#allocation2 + $0xe8] sm:$0xff]
      %v3175 = vld [vmem:[#allocation2 + $0xf0] sm:$0xff]
      %v3176 = vld [vmem:[#allocation2 + $0xf8] sm:$0xff]
      %v3177 = vadd.f32 %v3145, %v3019
      %v3178 = vadd.f32 %v3146, %v3022
      %v3179 = vadd.f32 %v3147, %v3027
      %v3180 = vadd.f32 %v3148, %v3030
      %v3181 = vadd.f32 %v3149, %v3035
      %v3182 = vadd.f32 %v3150, %v3038
      %v3183 = vadd.f32 %v3151, %v3043
      %v3184 = vadd.f32 %v3152, %v3046
      %v3185 = vadd.f32 %v3153, %v3051
      %v3186 = vadd.f32 %v3154, %v3054
      %v3187 = vadd.f32 %v3155, %v3059
      %v3188 = vadd.f32 %v3156, %v3062
      %v3189 = vadd.f32 %v3157, %v3067
      %v3190 = vadd.f32 %v3158, %v3070
      %v3191 = vadd.f32 %v3159, %v3075
      %v3192 = vadd.f32 %v3160, %v3078
      %v3193 = vadd.f32 %v3161, %v3083
      %v3194 = vadd.f32 %v3162, %v3086
      %v3195 = vadd.f32 %v3163, %v3091
      %v3196 = vadd.f32 %v3164, %v3094
      %v3197 = vadd.f32 %v3165, %v3099
      %v3198 = vadd.f32 %v3166, %v3102
      %v3199 = vadd.f32 %v3167, %v3107
      %v3200 = vadd.f32 %v3168, %v3110
      %v3201 = vadd.f32 %v3169, %v3115
      %v3202 = vadd.f32 %v3170, %v3118
      %v3203 = vadd.f32 %v3171, %v3123
      %v3204 = vadd.f32 %v3172, %v3126
      %v3205 = vadd.f32 %v3173, %v3131
      %v3206 = vadd.f32 %v3174, %v3134
      %v3207 = vadd.f32 %v3175, %v3139
      %v3208 = vadd.f32 %v3176, %v3142
      %3209 = vst.msk [vmem:[#allocation2] sm:$0xff] %vm1714, %v3177
      %3210 = vst.msk [vmem:[#allocation2 + $0x8] sm:$0xff] %vm1714, %v3178
      %3211 = vst.msk [vmem:[#allocation2 + $0x10] sm:$0xff] %vm1714, %v3179
      %3212 = vst.msk [vmem:[#allocation2 + $0x18] sm:$0xff] %vm1714, %v3180
      %3213 = vst.msk [vmem:[#allocation2 + $0x20] sm:$0xff] %vm1714, %v3181
      %3214 = vst.msk [vmem:[#allocation2 + $0x28] sm:$0xff] %vm1714, %v3182
      %3215 = vst.msk [vmem:[#allocation2 + $0x30] sm:$0xff] %vm1714, %v3183
      %3216 = vst.msk [vmem:[#allocation2 + $0x38] sm:$0xff] %vm1714, %v3184
      %3217 = vst.msk [vmem:[#allocation2 + $0x40] sm:$0xff] %vm1714, %v3185
      %3218 = vst.msk [vmem:[#allocation2 + $0x48] sm:$0xff] %vm1714, %v3186
      %3219 = vst.msk [vmem:[#allocation2 + $0x50] sm:$0xff] %vm1714, %v3187
      %3220 = vst.msk [vmem:[#allocation2 + $0x58] sm:$0xff] %vm1714, %v3188
      %3221 = vst.msk [vmem:[#allocation2 + $0x60] sm:$0xff] %vm1714, %v3189
      %3222 = vst.msk [vmem:[#allocation2 + $0x68] sm:$0xff] %vm1714, %v3190
      %3223 = vst.msk [vmem:[#allocation2 + $0x70] sm:$0xff] %vm1714, %v3191
      %3224 = vst.msk [vmem:[#allocation2 + $0x78] sm:$0xff] %vm1714, %v3192
      %3225 = vst.msk [vmem:[#allocation2 + $0x80] sm:$0xff] %vm1714, %v3193
      %3226 = vst.msk [vmem:[#allocation2 + $0x88] sm:$0xff] %vm1714, %v3194
      %3227 = vst.msk [vmem:[#allocation2 + $0x90] sm:$0xff] %vm1714, %v3195
      %3228 = vst.msk [vmem:[#allocation2 + $0x98] sm:$0xff] %vm1714, %v3196
      %3229 = vst.msk [vmem:[#allocation2 + $0xa0] sm:$0xff] %vm1714, %v3197
      %3230 = vst.msk [vmem:[#allocation2 + $0xa8] sm:$0xff] %vm1714, %v3198
      %3231 = vst.msk [vmem:[#allocation2 + $0xb0] sm:$0xff] %vm1714, %v3199
      %3232 = vst.msk [vmem:[#allocation2 + $0xb8] sm:$0xff] %vm1714, %v3200
      %3233 = vst.msk [vmem:[#allocation2 + $0xc0] sm:$0xff] %vm1714, %v3201
      %3234 = vst.msk [vmem:[#allocation2 + $0xc8] sm:$0xff] %vm1714, %v3202
      %3235 = vst.msk [vmem:[#allocation2 + $0xd0] sm:$0xff] %vm1714, %v3203
      %3236 = vst.msk [vmem:[#allocation2 + $0xd8] sm:$0xff] %vm1714, %v3204
      %3237 = vst.msk [vmem:[#allocation2 + $0xe0] sm:$0xff] %vm1714, %v3205
      %3238 = vst.msk [vmem:[#allocation2 + $0xe8] sm:$0xff] %vm1714, %v3206
      %3239 = vst.msk [vmem:[#allocation2 + $0xf0] sm:$0xff] %vm1714, %v3207
      %3240 = vst.msk [vmem:[#allocation2 + $0xf8] sm:$0xff] %vm1714, %v3208
      %s3241 = scalar_lea.vmem %s2, 40
      %v3242 = vld [vmem:[%s3241] sm:$0xf]
      %v3243 = vld [vmem:[%s3241 + $0x4] sm:$0xf]
      %v3246 = vunpack.c.l.b16 %v1256
      %v3247 = vunpack.c.l.b16 %v1257
      %v3248 = vpack.c.b16 %v3246, %v2209
      %v3249 = vpack.c.b16 %v3247, %v3247
      %v3251 = vshll.u32 %v3248, 16
      %v3253 = vrot.slane %v3251, 1
      %v3254 = vsel %vm2227, %v2354, %v3253
      %v3255 = vshrl.u32 %v3248, 16
      %v3257 = vor.u32 %v3255, %v3253
      %v3259 = vshll.u32 %v3249, 16
      %v3261 = vrot.slane %v3259, 1
      %v3262 = vsel %vm2227, %v3257, %v3261
      %v3265 = vunpack.c.l.b16 %v3242
      %v3266 = vunpack.c.l.b16 %v3243
      %v3267 = vpack.c.b16 %v3266, %v3265
      %v3270 = vsel %vm1504, %v3254, 0
      %v3273 = vsel %vm1504, %v3262, 0
      %3275 = vmatprep.subr.bf16.mxu0 0
      %3276 = vmatpush1.bf16.msra.mxu0 %v3267
      %3277 = vmatprep.subr.bf16.mxu0 0
      %3278 = vmatpush1.bf16.msra.mxu0 0
      %3279 = vmatprep.subr.bf16.mxu0 0
      %3280 = vmatpush1.bf16.msra.mxu0 0
      %3281 = vmatprep.subr.bf16.mxu0 0
      %3282 = vmatpush1.bf16.msra.mxu0 0
      %3283 = vmatprep.subr.bf16.mxu0 0
      %3284 = vmatpush1.bf16.msra.mxu0 0
      %3285 = vmatprep.subr.bf16.mxu0 0
      %3286 = vmatpush1.bf16.msra.mxu0 0
      %3287 = vmatprep.subr.bf16.mxu0 0
      %3288 = vmatpush1.bf16.msra.mxu0 0
      %3289 = vmatprep.subr.bf16.mxu0 0
      %3290 = vmatpush1.bf16.msra.mxu0 0
      %3291 = vmatprep.subr.bf16.mxu0 0
      %3292 = vmatpush1.bf16.msra.mxu0 0
      %3293 = vmatprep.subr.bf16.mxu0 0
      %3294 = vmatpush1.bf16.msra.mxu0 0
      %3295 = vmatprep.subr.bf16.mxu0 0
      %3296 = vmatpush1.bf16.msra.mxu0 0
      %3297 = vmatprep.subr.bf16.mxu0 0
      %3298 = vmatpush1.bf16.msra.mxu0 0
      %3299 = vmatprep.subr.bf16.mxu0 0
      %3300 = vmatpush1.bf16.msra.mxu0 0
      %3301 = vmatprep.subr.bf16.mxu0 0
      %3302 = vmatpush1.bf16.msra.mxu0 0
      %3303 = vmatprep.subr.bf16.mxu0 0
      %3304 = vmatpush1.bf16.msra.mxu0 0
      %3305 = vmatprep.subr.bf16.mxu0 0
      %3306 = vmatpush1.bf16.msra.mxu0 0
      %3307 = vmatprep.mubr.bf16.mxu0 0
      %3308 = vmatmul.mubr.bf16.gmra.mrb[0].mxu0 %v2370
      %v3309 = vpop.f32.mrb[0].mxu0
      %v3310 = vadd.f32 0.0, %v3309
      %v3311 = vpop.f32.mrb[0].mxu0
      %v3312 = vpop.f32.mrb[0].mxu0
      %v3313 = vadd.f32 0.0, %v3312
      %v3314 = vpop.f32.mrb[0].mxu0
      %3315 = vmatprep.mubr.bf16.mxu0 0
      %3316 = vmatmul.mubr.bf16.gmra.mrb[0].mxu0 %v2373
      %v3317 = vpop.f32.mrb[0].mxu0
      %v3318 = vadd.f32 0.0, %v3317
      %v3319 = vpop.f32.mrb[0].mxu0
      %v3320 = vpop.f32.mrb[0].mxu0
      %v3321 = vadd.f32 0.0, %v3320
      %v3322 = vpop.f32.mrb[0].mxu0
      %3323 = vmatprep.mubr.bf16.mxu0 0
      %3324 = vmatmul.mubr.bf16.gmra.mrb[0].mxu0 %v2376
      %v3325 = vpop.f32.mrb[0].mxu0
      %v3326 = vadd.f32 0.0, %v3325
      %v3327 = vpop.f32.mrb[0].mxu0
      %v3328 = vpop.f32.mrb[0].mxu0
      %v3329 = vadd.f32 0.0, %v3328
      %v3330 = vpop.f32.mrb[0].mxu0
      %3331 = vmatprep.mubr.bf16.mxu0 0
      %3332 = vmatmul.mubr.bf16.gmra.mrb[0].mxu0 %v2379
      %v3333 = vpop.f32.mrb[0].mxu0
      %v3334 = vadd.f32 0.0, %v3333
      %v3335 = vpop.f32.mrb[0].mxu0
      %v3336 = vpop.f32.mrb[0].mxu0
      %v3337 = vadd.f32 0.0, %v3336
      %v3338 = vpop.f32.mrb[0].mxu0
      %3339 = vmatprep.mubr.bf16.mxu0 0
      %3340 = vmatmul.mubr.bf16.gmra.mrb[0].mxu0 %v2382
      %v3341 = vpop.f32.mrb[0].mxu0
      %v3342 = vadd.f32 0.0, %v3341
      %v3343 = vpop.f32.mrb[0].mxu0
      %v3344 = vpop.f32.mrb[0].mxu0
      %v3345 = vadd.f32 0.0, %v3344
      %v3346 = vpop.f32.mrb[0].mxu0
      %3347 = vmatprep.mubr.bf16.mxu0 0
      %3348 = vmatmul.mubr.bf16.gmra.mrb[0].mxu0 %v2385
      %v3349 = vpop.f32.mrb[0].mxu0
      %v3350 = vadd.f32 0.0, %v3349
      %v3351 = vpop.f32.mrb[0].mxu0
      %v3352 = vpop.f32.mrb[0].mxu0
      %v3353 = vadd.f32 0.0, %v3352
      %v3354 = vpop.f32.mrb[0].mxu0
      %3355 = vmatprep.mubr.bf16.mxu0 0
      %3356 = vmatmul.mubr.bf16.gmra.mrb[0].mxu0 %v2388
      %v3357 = vpop.f32.mrb[0].mxu0
      %v3358 = vadd.f32 0.0, %v3357
      %v3359 = vpop.f32.mrb[0].mxu0
      %v3360 = vpop.f32.mrb[0].mxu0
      %v3361 = vadd.f32 0.0, %v3360
      %v3362 = vpop.f32.mrb[0].mxu0
      %3363 = vmatprep.mubr.bf16.mxu0 0
      %3364 = vmatmul.mubr.bf16.gmra.mrb[0].mxu0 %v2391
      %v3365 = vpop.f32.mrb[0].mxu0
      %v3366 = vadd.f32 0.0, %v3365
      %v3367 = vpop.f32.mrb[0].mxu0
      %v3368 = vpop.f32.mrb[0].mxu0
      %v3369 = vadd.f32 0.0, %v3368
      %v3370 = vpop.f32.mrb[0].mxu0
      %3371 = vmatprep.mubr.bf16.mxu0 0
      %3372 = vmatmul.mubr.bf16.gmra.mrb[0].mxu0 %v2394
      %v3373 = vpop.f32.mrb[0].mxu0
      %v3374 = vadd.f32 0.0, %v3373
      %v3375 = vpop.f32.mrb[0].mxu0
      %v3376 = vpop.f32.mrb[0].mxu0
      %v3377 = vadd.f32 0.0, %v3376
      %v3378 = vpop.f32.mrb[0].mxu0
      %3379 = vmatprep.mubr.bf16.mxu0 0
      %3380 = vmatmul.mubr.bf16.gmra.mrb[0].mxu0 %v2397
      %v3381 = vpop.f32.mrb[0].mxu0
      %v3382 = vadd.f32 0.0, %v3381
      %v3383 = vpop.f32.mrb[0].mxu0
      %v3384 = vpop.f32.mrb[0].mxu0
      %v3385 = vadd.f32 0.0, %v3384
      %v3386 = vpop.f32.mrb[0].mxu0
      %3387 = vmatprep.mubr.bf16.mxu0 0
      %3388 = vmatmul.mubr.bf16.gmra.mrb[0].mxu0 %v2400
      %v3389 = vpop.f32.mrb[0].mxu0
      %v3390 = vadd.f32 0.0, %v3389
      %v3391 = vpop.f32.mrb[0].mxu0
      %v3392 = vpop.f32.mrb[0].mxu0
      %v3393 = vadd.f32 0.0, %v3392
      %v3394 = vpop.f32.mrb[0].mxu0
      %3395 = vmatprep.mubr.bf16.mxu0 0
      %3396 = vmatmul.mubr.bf16.gmra.mrb[0].mxu0 %v2403
      %v3397 = vpop.f32.mrb[0].mxu0
      %v3398 = vadd.f32 0.0, %v3397
      %v3399 = vpop.f32.mrb[0].mxu0
      %v3400 = vpop.f32.mrb[0].mxu0
      %v3401 = vadd.f32 0.0, %v3400
      %v3402 = vpop.f32.mrb[0].mxu0
      %3403 = vmatprep.mubr.bf16.mxu0 0
      %3404 = vmatmul.mubr.bf16.gmra.mrb[0].mxu0 %v2406
      %v3405 = vpop.f32.mrb[0].mxu0
      %v3406 = vadd.f32 0.0, %v3405
      %v3407 = vpop.f32.mrb[0].mxu0
      %v3408 = vpop.f32.mrb[0].mxu0
      %v3409 = vadd.f32 0.0, %v3408
      %v3410 = vpop.f32.mrb[0].mxu0
      %3411 = vmatprep.mubr.bf16.mxu0 0
      %3412 = vmatmul.mubr.bf16.gmra.mrb[0].mxu0 %v2409
      %v3413 = vpop.f32.mrb[0].mxu0
      %v3414 = vadd.f32 0.0, %v3413
      %v3415 = vpop.f32.mrb[0].mxu0
      %v3416 = vpop.f32.mrb[0].mxu0
      %v3417 = vadd.f32 0.0, %v3416
      %v3418 = vpop.f32.mrb[0].mxu0
      %3419 = vmatprep.mubr.bf16.mxu0 0
      %3420 = vmatmul.mubr.bf16.gmra.mrb[0].mxu0 %v3270
      %v3421 = vpop.f32.mrb[0].mxu0
      %v3422 = vadd.f32 0.0, %v3421
      %v3423 = vpop.f32.mrb[0].mxu0
      %v3424 = vpop.f32.mrb[0].mxu0
      %v3425 = vadd.f32 0.0, %v3424
      %v3426 = vpop.f32.mrb[0].mxu0
      %3427 = vmatprep.mubr.bf16.mxu0 0
      %3428 = vmatmul.mubr.bf16.gmra.mrb[0].mxu0 %v3273
      %v3429 = vpop.f32.mrb[0].mxu0
      %v3430 = vadd.f32 0.0, %v3429
      %v3431 = vpop.f32.mrb[0].mxu0
      %v3432 = vpop.f32.mrb[0].mxu0
      %v3433 = vadd.f32 0.0, %v3432
      %v3434 = vpop.f32.mrb[0].mxu0
      %3435 = vdwg.mxu0
      %v3436 = vld [vmem:[#allocation2] sm:$0xff]
      %v3437 = vld [vmem:[#allocation2 + $0x8] sm:$0xff]
      %v3438 = vld [vmem:[#allocation2 + $0x10] sm:$0xff]
      %v3439 = vld [vmem:[#allocation2 + $0x18] sm:$0xff]
      %v3440 = vld [vmem:[#allocation2 + $0x20] sm:$0xff]
      %v3441 = vld [vmem:[#allocation2 + $0x28] sm:$0xff]
      %v3442 = vld [vmem:[#allocation2 + $0x30] sm:$0xff]
      %v3443 = vld [vmem:[#allocation2 + $0x38] sm:$0xff]
      %v3444 = vld [vmem:[#allocation2 + $0x40] sm:$0xff]
      %v3445 = vld [vmem:[#allocation2 + $0x48] sm:$0xff]
      %v3446 = vld [vmem:[#allocation2 + $0x50] sm:$0xff]
      %v3447 = vld [vmem:[#allocation2 + $0x58] sm:$0xff]
      %v3448 = vld [vmem:[#allocation2 + $0x60] sm:$0xff]
      %v3449 = vld [vmem:[#allocation2 + $0x68] sm:$0xff]
      %v3450 = vld [vmem:[#allocation2 + $0x70] sm:$0xff]
      %v3451 = vld [vmem:[#allocation2 + $0x78] sm:$0xff]
      %v3452 = vld [vmem:[#allocation2 + $0x80] sm:$0xff]
      %v3453 = vld [vmem:[#allocation2 + $0x88] sm:$0xff]
      %v3454 = vld [vmem:[#allocation2 + $0x90] sm:$0xff]
      %v3455 = vld [vmem:[#allocation2 + $0x98] sm:$0xff]
      %v3456 = vld [vmem:[#allocation2 + $0xa0] sm:$0xff]
      %v3457 = vld [vmem:[#allocation2 + $0xa8] sm:$0xff]
      %v3458 = vld [vmem:[#allocation2 + $0xb0] sm:$0xff]
      %v3459 = vld [vmem:[#allocation2 + $0xb8] sm:$0xff]
      %v3460 = vld [vmem:[#allocation2 + $0xc0] sm:$0xff]
      %v3461 = vld [vmem:[#allocation2 + $0xc8] sm:$0xff]
      %v3462 = vld [vmem:[#allocation2 + $0xd0] sm:$0xff]
      %v3463 = vld [vmem:[#allocation2 + $0xd8] sm:$0xff]
      %v3464 = vld [vmem:[#allocation2 + $0xe0] sm:$0xff]
      %v3465 = vld [vmem:[#allocation2 + $0xe8] sm:$0xff]
      %v3466 = vld [vmem:[#allocation2 + $0xf0] sm:$0xff]
      %v3467 = vld [vmem:[#allocation2 + $0xf8] sm:$0xff]
      %v3468 = vadd.f32 %v3436, %v3310
      %v3469 = vadd.f32 %v3437, %v3313
      %v3470 = vadd.f32 %v3438, %v3318
      %v3471 = vadd.f32 %v3439, %v3321
      %v3472 = vadd.f32 %v3440, %v3326
      %v3473 = vadd.f32 %v3441, %v3329
      %v3474 = vadd.f32 %v3442, %v3334
      %v3475 = vadd.f32 %v3443, %v3337
      %v3476 = vadd.f32 %v3444, %v3342
      %v3477 = vadd.f32 %v3445, %v3345
      %v3478 = vadd.f32 %v3446, %v3350
      %v3479 = vadd.f32 %v3447, %v3353
      %v3480 = vadd.f32 %v3448, %v3358
      %v3481 = vadd.f32 %v3449, %v3361
      %v3482 = vadd.f32 %v3450, %v3366
      %v3483 = vadd.f32 %v3451, %v3369
      %v3484 = vadd.f32 %v3452, %v3374
      %v3485 = vadd.f32 %v3453, %v3377
      %v3486 = vadd.f32 %v3454, %v3382
      %v3487 = vadd.f32 %v3455, %v3385
      %v3488 = vadd.f32 %v3456, %v3390
      %v3489 = vadd.f32 %v3457, %v3393
      %v3490 = vadd.f32 %v3458, %v3398
      %v3491 = vadd.f32 %v3459, %v3401
      %v3492 = vadd.f32 %v3460, %v3406
      %v3493 = vadd.f32 %v3461, %v3409
      %v3494 = vadd.f32 %v3462, %v3414
      %v3495 = vadd.f32 %v3463, %v3417
      %v3496 = vadd.f32 %v3464, %v3422
      %v3497 = vadd.f32 %v3465, %v3425
      %v3498 = vadd.f32 %v3466, %v3430
      %v3499 = vadd.f32 %v3467, %v3433
      %3500 = vst.msk [vmem:[#allocation2] sm:$0xff] %vm1714, %v3468
      %3501 = vst.msk [vmem:[#allocation2 + $0x8] sm:$0xff] %vm1714, %v3469
      %3502 = vst.msk [vmem:[#allocation2 + $0x10] sm:$0xff] %vm1714, %v3470
      %3503 = vst.msk [vmem:[#allocation2 + $0x18] sm:$0xff] %vm1714, %v3471
      %3504 = vst.msk [vmem:[#allocation2 + $0x20] sm:$0xff] %vm1714, %v3472
      %3505 = vst.msk [vmem:[#allocation2 + $0x28] sm:$0xff] %vm1714, %v3473
      %3506 = vst.msk [vmem:[#allocation2 + $0x30] sm:$0xff] %vm1714, %v3474
      %3507 = vst.msk [vmem:[#allocation2 + $0x38] sm:$0xff] %vm1714, %v3475
      %3508 = vst.msk [vmem:[#allocation2 + $0x40] sm:$0xff] %vm1714, %v3476
      %3509 = vst.msk [vmem:[#allocation2 + $0x48] sm:$0xff] %vm1714, %v3477
      %3510 = vst.msk [vmem:[#allocation2 + $0x50] sm:$0xff] %vm1714, %v3478
      %3511 = vst.msk [vmem:[#allocation2 + $0x58] sm:$0xff] %vm1714, %v3479
      %3512 = vst.msk [vmem:[#allocation2 + $0x60] sm:$0xff] %vm1714, %v3480
      %3513 = vst.msk [vmem:[#allocation2 + $0x68] sm:$0xff] %vm1714, %v3481
      %3514 = vst.msk [vmem:[#allocation2 + $0x70] sm:$0xff] %vm1714, %v3482
      %3515 = vst.msk [vmem:[#allocation2 + $0x78] sm:$0xff] %vm1714, %v3483
      %3516 = vst.msk [vmem:[#allocation2 + $0x80] sm:$0xff] %vm1714, %v3484
      %3517 = vst.msk [vmem:[#allocation2 + $0x88] sm:$0xff] %vm1714, %v3485
      %3518 = vst.msk [vmem:[#allocation2 + $0x90] sm:$0xff] %vm1714, %v3486
      %3519 = vst.msk [vmem:[#allocation2 + $0x98] sm:$0xff] %vm1714, %v3487
      %3520 = vst.msk [vmem:[#allocation2 + $0xa0] sm:$0xff] %vm1714, %v3488
      %3521 = vst.msk [vmem:[#allocation2 + $0xa8] sm:$0xff] %vm1714, %v3489
      %3522 = vst.msk [vmem:[#allocation2 + $0xb0] sm:$0xff] %vm1714, %v3490
      %3523 = vst.msk [vmem:[#allocation2 + $0xb8] sm:$0xff] %vm1714, %v3491
      %3524 = vst.msk [vmem:[#allocation2 + $0xc0] sm:$0xff] %vm1714, %v3492
      %3525 = vst.msk [vmem:[#allocation2 + $0xc8] sm:$0xff] %vm1714, %v3493
      %3526 = vst.msk [vmem:[#allocation2 + $0xd0] sm:$0xff] %vm1714, %v3494
      %3527 = vst.msk [vmem:[#allocation2 + $0xd8] sm:$0xff] %vm1714, %v3495
      %3528 = vst.msk [vmem:[#allocation2 + $0xe0] sm:$0xff] %vm1714, %v3496
      %3529 = vst.msk [vmem:[#allocation2 + $0xe8] sm:$0xff] %vm1714, %v3497
      %3530 = vst.msk [vmem:[#allocation2 + $0xf0] sm:$0xff] %vm1714, %v3498
      %3531 = vst.msk [vmem:[#allocation2 + $0xf8] sm:$0xff] %vm1714, %v3499
      %s3532 = scalar_lea.vmem %s2, 48
      %v3533 = vld [vmem:[%s3532] sm:$0xf]
      %v3534 = vld [vmem:[%s3532 + $0x4] sm:$0xf]
      %v3537 = vunpack.c.l.b16 %v812
      %v3538 = vunpack.c.l.b16 %v813
      %v3539 = vpack.c.b16 %v3537, %v2677
      %v3540 = vpack.c.b16 %v3538, %v3538
      %v3542 = vshrl.u32 %v3539, 16
      %v3544 = vrot.slane %v3542, 3
      %v3545 = vshll.u32 %v3539, 16
      %v3547 = vrot.slane %v3545, 4
      %v3548 = vor.u32 %v3544, %v3547
      %v3549 = vsel %vm1345, %v2687, %v3548
      %v3551 = vshrl.u32 %v3540, 16
      %v3553 = vrot.slane %v3551, 3
      %v3554 = vshll.u32 %v3540, 16
      %v3556 = vrot.slane %v3554, 4
      %v3557 = vor.u32 %v3553, %v3556
      %v3558 = vsel %vm1345, %v3548, %v3557
      %v3561 = vunpack.c.l.b16 %v3533
      %v3562 = vunpack.c.l.b16 %v3534
      %v3563 = vpack.c.b16 %v3562, %v3561
      %v3566 = vsel %vm1504, %v3549, 0
      %v3569 = vsel %vm1504, %v3558, 0
      %3571 = vmatprep.subr.bf16.mxu0 0
      %3572 = vmatpush1.bf16.msra.mxu0 %v3563
      %3573 = vmatprep.subr.bf16.mxu0 0
      %3574 = vmatpush1.bf16.msra.mxu0 0
      %3575 = vmatprep.subr.bf16.mxu0 0
      %3576 = vmatpush1.bf16.msra.mxu0 0
      %3577 = vmatprep.subr.bf16.mxu0 0
      %3578 = vmatpush1.bf16.msra.mxu0 0
      %3579 = vmatprep.subr.bf16.mxu0 0
      %3580 = vmatpush1.bf16.msra.mxu0 0
      %3581 = vmatprep.subr.bf16.mxu0 0
      %3582 = vmatpush1.bf16.msra.mxu0 0
      %3583 = vmatprep.subr.bf16.mxu0 0
      %3584 = vmatpush1.bf16.msra.mxu0 0
      %3585 = vmatprep.subr.bf16.mxu0 0
      %3586 = vmatpush1.bf16.msra.mxu0 0
      %3587 = vmatprep.subr.bf16.mxu0 0
      %3588 = vmatpush1.bf16.msra.mxu0 0
      %3589 = vmatprep.subr.bf16.mxu0 0
      %3590 = vmatpush1.bf16.msra.mxu0 0
      %3591 = vmatprep.subr.bf16.mxu0 0
      %3592 = vmatpush1.bf16.msra.mxu0 0
      %3593 = vmatprep.subr.bf16.mxu0 0
      %3594 = vmatpush1.bf16.msra.mxu0 0
      %3595 = vmatprep.subr.bf16.mxu0 0
      %3596 = vmatpush1.bf16.msra.mxu0 0
      %3597 = vmatprep.subr.bf16.mxu0 0
      %3598 = vmatpush1.bf16.msra.mxu0 0
      %3599 = vmatprep.subr.bf16.mxu0 0
      %3600 = vmatpush1.bf16.msra.mxu0 0
      %3601 = vmatprep.subr.bf16.mxu0 0
      %3602 = vmatpush1.bf16.msra.mxu0 0
      %3603 = vmatprep.mubr.bf16.mxu0 0
      %3604 = vmatmul.mubr.bf16.gmra.mrb[0].mxu0 %v1512
      %v3605 = vpop.f32.mrb[0].mxu0
      %v3606 = vadd.f32 0.0, %v3605
      %v3607 = vpop.f32.mrb[0].mxu0
      %v3608 = vpop.f32.mrb[0].mxu0
      %v3609 = vadd.f32 0.0, %v3608
      %v3610 = vpop.f32.mrb[0].mxu0
      %3611 = vmatprep.mubr.bf16.mxu0 0
      %3612 = vmatmul.mubr.bf16.gmra.mrb[0].mxu0 %v1515
      %v3613 = vpop.f32.mrb[0].mxu0
      %v3614 = vadd.f32 0.0, %v3613
      %v3615 = vpop.f32.mrb[0].mxu0
      %v3616 = vpop.f32.mrb[0].mxu0
      %v3617 = vadd.f32 0.0, %v3616
      %v3618 = vpop.f32.mrb[0].mxu0
      %3619 = vmatprep.mubr.bf16.mxu0 0
      %3620 = vmatmul.mubr.bf16.gmra.mrb[0].mxu0 %v1518
      %v3621 = vpop.f32.mrb[0].mxu0
      %v3622 = vadd.f32 0.0, %v3621
      %v3623 = vpop.f32.mrb[0].mxu0
      %v3624 = vpop.f32.mrb[0].mxu0
      %v3625 = vadd.f32 0.0, %v3624
      %v3626 = vpop.f32.mrb[0].mxu0
      %3627 = vmatprep.mubr.bf16.mxu0 0
      %3628 = vmatmul.mubr.bf16.gmra.mrb[0].mxu0 %v1521
      %v3629 = vpop.f32.mrb[0].mxu0
      %v3630 = vadd.f32 0.0, %v3629
      %v3631 = vpop.f32.mrb[0].mxu0
      %v3632 = vpop.f32.mrb[0].mxu0
      %v3633 = vadd.f32 0.0, %v3632
      %v3634 = vpop.f32.mrb[0].mxu0
      %3635 = vmatprep.mubr.bf16.mxu0 0
      %3636 = vmatmul.mubr.bf16.gmra.mrb[0].mxu0 %v1524
      %v3637 = vpop.f32.mrb[0].mxu0
      %v3638 = vadd.f32 0.0, %v3637
      %v3639 = vpop.f32.mrb[0].mxu0
      %v3640 = vpop.f32.mrb[0].mxu0
      %v3641 = vadd.f32 0.0, %v3640
      %v3642 = vpop.f32.mrb[0].mxu0
      %3643 = vmatprep.mubr.bf16.mxu0 0
      %3644 = vmatmul.mubr.bf16.gmra.mrb[0].mxu0 %v1527
      %v3645 = vpop.f32.mrb[0].mxu0
      %v3646 = vadd.f32 0.0, %v3645
      %v3647 = vpop.f32.mrb[0].mxu0
      %v3648 = vpop.f32.mrb[0].mxu0
      %v3649 = vadd.f32 0.0, %v3648
      %v3650 = vpop.f32.mrb[0].mxu0
      %3651 = vmatprep.mubr.bf16.mxu0 0
      %3652 = vmatmul.mubr.bf16.gmra.mrb[0].mxu0 %v1530
      %v3653 = vpop.f32.mrb[0].mxu0
      %v3654 = vadd.f32 0.0, %v3653
      %v3655 = vpop.f32.mrb[0].mxu0
      %v3656 = vpop.f32.mrb[0].mxu0
      %v3657 = vadd.f32 0.0, %v3656
      %v3658 = vpop.f32.mrb[0].mxu0
      %3659 = vmatprep.mubr.bf16.mxu0 0
      %3660 = vmatmul.mubr.bf16.gmra.mrb[0].mxu0 %v1533
      %v3661 = vpop.f32.mrb[0].mxu0
      %v3662 = vadd.f32 0.0, %v3661
      %v3663 = vpop.f32.mrb[0].mxu0
      %v3664 = vpop.f32.mrb[0].mxu0
      %v3665 = vadd.f32 0.0, %v3664
      %v3666 = vpop.f32.mrb[0].mxu0
      %3667 = vmatprep.mubr.bf16.mxu0 0
      %3668 = vmatmul.mubr.bf16.gmra.mrb[0].mxu0 %v1536
      %v3669 = vpop.f32.mrb[0].mxu0
      %v3670 = vadd.f32 0.0, %v3669
      %v3671 = vpop.f32.mrb[0].mxu0
      %v3672 = vpop.f32.mrb[0].mxu0
      %v3673 = vadd.f32 0.0, %v3672
      %v3674 = vpop.f32.mrb[0].mxu0
      %3675 = vmatprep.mubr.bf16.mxu0 0
      %3676 = vmatmul.mubr.bf16.gmra.mrb[0].mxu0 %v1539
      %v3677 = vpop.f32.mrb[0].mxu0
      %v3678 = vadd.f32 0.0, %v3677
      %v3679 = vpop.f32.mrb[0].mxu0
      %v3680 = vpop.f32.mrb[0].mxu0
      %v3681 = vadd.f32 0.0, %v3680
      %v3682 = vpop.f32.mrb[0].mxu0
      %3683 = vmatprep.mubr.bf16.mxu0 0
      %3684 = vmatmul.mubr.bf16.gmra.mrb[0].mxu0 %v1542
      %v3685 = vpop.f32.mrb[0].mxu0
      %v3686 = vadd.f32 0.0, %v3685
      %v3687 = vpop.f32.mrb[0].mxu0
      %v3688 = vpop.f32.mrb[0].mxu0
      %v3689 = vadd.f32 0.0, %v3688
      %v3690 = vpop.f32.mrb[0].mxu0
      %3691 = vmatprep.mubr.bf16.mxu0 0
      %3692 = vmatmul.mubr.bf16.gmra.mrb[0].mxu0 %v1545
      %v3693 = vpop.f32.mrb[0].mxu0
      %v3694 = vadd.f32 0.0, %v3693
      %v3695 = vpop.f32.mrb[0].mxu0
      %v3696 = vpop.f32.mrb[0].mxu0
      %v3697 = vadd.f32 0.0, %v3696
      %v3698 = vpop.f32.mrb[0].mxu0
      %3699 = vmatprep.mubr.bf16.mxu0 0
      %3700 = vmatmul.mubr.bf16.gmra.mrb[0].mxu0 %v1548
      %v3701 = vpop.f32.mrb[0].mxu0
      %v3702 = vadd.f32 0.0, %v3701
      %v3703 = vpop.f32.mrb[0].mxu0
      %v3704 = vpop.f32.mrb[0].mxu0
      %v3705 = vadd.f32 0.0, %v3704
      %v3706 = vpop.f32.mrb[0].mxu0
      %3707 = vmatprep.mubr.bf16.mxu0 0
      %3708 = vmatmul.mubr.bf16.gmra.mrb[0].mxu0 %v2705
      %v3709 = vpop.f32.mrb[0].mxu0
      %v3710 = vadd.f32 0.0, %v3709
      %v3711 = vpop.f32.mrb[0].mxu0
      %v3712 = vpop.f32.mrb[0].mxu0
      %v3713 = vadd.f32 0.0, %v3712
      %v3714 = vpop.f32.mrb[0].mxu0
      %3715 = vmatprep.mubr.bf16.mxu0 0
      %3716 = vmatmul.mubr.bf16.gmra.mrb[0].mxu0 %v3566
      %v3717 = vpop.f32.mrb[0].mxu0
      %v3718 = vadd.f32 0.0, %v3717
      %v3719 = vpop.f32.mrb[0].mxu0
      %v3720 = vpop.f32.mrb[0].mxu0
      %v3721 = vadd.f32 0.0, %v3720
      %v3722 = vpop.f32.mrb[0].mxu0
      %3723 = vmatprep.mubr.bf16.mxu0 0
      %3724 = vmatmul.mubr.bf16.gmra.mrb[0].mxu0 %v3569
      %v3725 = vpop.f32.mrb[0].mxu0
      %v3726 = vadd.f32 0.0, %v3725
      %v3727 = vpop.f32.mrb[0].mxu0
      %v3728 = vpop.f32.mrb[0].mxu0
      %v3729 = vadd.f32 0.0, %v3728
      %v3730 = vpop.f32.mrb[0].mxu0
      %3731 = vdwg.mxu0
      %v3732 = vld [vmem:[#allocation2] sm:$0xff]
      %v3733 = vld [vmem:[#allocation2 + $0x8] sm:$0xff]
      %v3734 = vld [vmem:[#allocation2 + $0x10] sm:$0xff]
      %v3735 = vld [vmem:[#allocation2 + $0x18] sm:$0xff]
      %v3736 = vld [vmem:[#allocation2 + $0x20] sm:$0xff]
      %v3737 = vld [vmem:[#allocation2 + $0x28] sm:$0xff]
      %v3738 = vld [vmem:[#allocation2 + $0x30] sm:$0xff]
      %v3739 = vld [vmem:[#allocation2 + $0x38] sm:$0xff]
      %v3740 = vld [vmem:[#allocation2 + $0x40] sm:$0xff]
      %v3741 = vld [vmem:[#allocation2 + $0x48] sm:$0xff]
      %v3742 = vld [vmem:[#allocation2 + $0x50] sm:$0xff]
      %v3743 = vld [vmem:[#allocation2 + $0x58] sm:$0xff]
      %v3744 = vld [vmem:[#allocation2 + $0x60] sm:$0xff]
      %v3745 = vld [vmem:[#allocation2 + $0x68] sm:$0xff]
      %v3746 = vld [vmem:[#allocation2 + $0x70] sm:$0xff]
      %v3747 = vld [vmem:[#allocation2 + $0x78] sm:$0xff]
      %v3748 = vld [vmem:[#allocation2 + $0x80] sm:$0xff]
      %v3749 = vld [vmem:[#allocation2 + $0x88] sm:$0xff]
      %v3750 = vld [vmem:[#allocation2 + $0x90] sm:$0xff]
      %v3751 = vld [vmem:[#allocation2 + $0x98] sm:$0xff]
      %v3752 = vld [vmem:[#allocation2 + $0xa0] sm:$0xff]
      %v3753 = vld [vmem:[#allocation2 + $0xa8] sm:$0xff]
      %v3754 = vld [vmem:[#allocation2 + $0xb0] sm:$0xff]
      %v3755 = vld [vmem:[#allocation2 + $0xb8] sm:$0xff]
      %v3756 = vld [vmem:[#allocation2 + $0xc0] sm:$0xff]
      %v3757 = vld [vmem:[#allocation2 + $0xc8] sm:$0xff]
      %v3758 = vld [vmem:[#allocation2 + $0xd0] sm:$0xff]
      %v3759 = vld [vmem:[#allocation2 + $0xd8] sm:$0xff]
      %v3760 = vld [vmem:[#allocation2 + $0xe0] sm:$0xff]
      %v3761 = vld [vmem:[#allocation2 + $0xe8] sm:$0xff]
      %v3762 = vld [vmem:[#allocation2 + $0xf0] sm:$0xff]
      %v3763 = vld [vmem:[#allocation2 + $0xf8] sm:$0xff]
      %v3764 = vadd.f32 %v3732, %v3606
      %v3765 = vadd.f32 %v3733, %v3609
      %v3766 = vadd.f32 %v3734, %v3614
      %v3767 = vadd.f32 %v3735, %v3617
      %v3768 = vadd.f32 %v3736, %v3622
      %v3769 = vadd.f32 %v3737, %v3625
      %v3770 = vadd.f32 %v3738, %v3630
      %v3771 = vadd.f32 %v3739, %v3633
      %v3772 = vadd.f32 %v3740, %v3638
      %v3773 = vadd.f32 %v3741, %v3641
      %v3774 = vadd.f32 %v3742, %v3646
      %v3775 = vadd.f32 %v3743, %v3649
      %v3776 = vadd.f32 %v3744, %v3654
      %v3777 = vadd.f32 %v3745, %v3657
      %v3778 = vadd.f32 %v3746, %v3662
      %v3779 = vadd.f32 %v3747, %v3665
      %v3780 = vadd.f32 %v3748, %v3670
      %v3781 = vadd.f32 %v3749, %v3673
      %v3782 = vadd.f32 %v3750, %v3678
      %v3783 = vadd.f32 %v3751, %v3681
      %v3784 = vadd.f32 %v3752, %v3686
      %v3785 = vadd.f32 %v3753, %v3689
      %v3786 = vadd.f32 %v3754, %v3694
      %v3787 = vadd.f32 %v3755, %v3697
      %v3788 = vadd.f32 %v3756, %v3702
      %v3789 = vadd.f32 %v3757, %v3705
      %v3790 = vadd.f32 %v3758, %v3710
      %v3791 = vadd.f32 %v3759, %v3713
      %v3792 = vadd.f32 %v3760, %v3718
      %v3793 = vadd.f32 %v3761, %v3721
      %v3794 = vadd.f32 %v3762, %v3726
      %v3795 = vadd.f32 %v3763, %v3729
      %3796 = vst.msk [vmem:[#allocation2] sm:$0xff] %vm1714, %v3764
      %3797 = vst.msk [vmem:[#allocation2 + $0x8] sm:$0xff] %vm1714, %v3765
      %3798 = vst.msk [vmem:[#allocation2 + $0x10] sm:$0xff] %vm1714, %v3766
      %3799 = vst.msk [vmem:[#allocation2 + $0x18] sm:$0xff] %vm1714, %v3767
      %3800 = vst.msk [vmem:[#allocation2 + $0x20] sm:$0xff] %vm1714, %v3768
      %3801 = vst.msk [vmem:[#allocation2 + $0x28] sm:$0xff] %vm1714, %v3769
      %3802 = vst.msk [vmem:[#allocation2 + $0x30] sm:$0xff] %vm1714, %v3770
      %3803 = vst.msk [vmem:[#allocation2 + $0x38] sm:$0xff] %vm1714, %v3771
      %3804 = vst.msk [vmem:[#allocation2 + $0x40] sm:$0xff] %vm1714, %v3772
      %3805 = vst.msk [vmem:[#allocation2 + $0x48] sm:$0xff] %vm1714, %v3773
      %3806 = vst.msk [vmem:[#allocation2 + $0x50] sm:$0xff] %vm1714, %v3774
      %3807 = vst.msk [vmem:[#allocation2 + $0x58] sm:$0xff] %vm1714, %v3775
      %3808 = vst.msk [vmem:[#allocation2 + $0x60] sm:$0xff] %vm1714, %v3776
      %3809 = vst.msk [vmem:[#allocation2 + $0x68] sm:$0xff] %vm1714, %v3777
      %3810 = vst.msk [vmem:[#allocation2 + $0x70] sm:$0xff] %vm1714, %v3778
      %3811 = vst.msk [vmem:[#allocation2 + $0x78] sm:$0xff] %vm1714, %v3779
      %3812 = vst.msk [vmem:[#allocation2 + $0x80] sm:$0xff] %vm1714, %v3780
      %3813 = vst.msk [vmem:[#allocation2 + $0x88] sm:$0xff] %vm1714, %v3781
      %3814 = vst.msk [vmem:[#allocation2 + $0x90] sm:$0xff] %vm1714, %v3782
      %3815 = vst.msk [vmem:[#allocation2 + $0x98] sm:$0xff] %vm1714, %v3783
      %3816 = vst.msk [vmem:[#allocation2 + $0xa0] sm:$0xff] %vm1714, %v3784
      %3817 = vst.msk [vmem:[#allocation2 + $0xa8] sm:$0xff] %vm1714, %v3785
      %3818 = vst.msk [vmem:[#allocation2 + $0xb0] sm:$0xff] %vm1714, %v3786
      %3819 = vst.msk [vmem:[#allocation2 + $0xb8] sm:$0xff] %vm1714, %v3787
      %3820 = vst.msk [vmem:[#allocation2 + $0xc0] sm:$0xff] %vm1714, %v3788
      %3821 = vst.msk [vmem:[#allocation2 + $0xc8] sm:$0xff] %vm1714, %v3789
      %3822 = vst.msk [vmem:[#allocation2 + $0xd0] sm:$0xff] %vm1714, %v3790
      %3823 = vst.msk [vmem:[#allocation2 + $0xd8] sm:$0xff] %vm1714, %v3791
      %3824 = vst.msk [vmem:[#allocation2 + $0xe0] sm:$0xff] %vm1714, %v3792
      %3825 = vst.msk [vmem:[#allocation2 + $0xe8] sm:$0xff] %vm1714, %v3793
      %3826 = vst.msk [vmem:[#allocation2 + $0xf0] sm:$0xff] %vm1714, %v3794
      %3827 = vst.msk [vmem:[#allocation2 + $0xf8] sm:$0xff] %vm1714, %v3795
      %s3828 = scalar_lea.vmem %s2, 56
      %v3829 = vld [vmem:[%s3828] sm:$0xf]
      %v3830 = vld [vmem:[%s3828 + $0x4] sm:$0xf]
      %v3833 = vunpack.c.l.b16 %v293
      %v3834 = vunpack.c.l.b16 %v294
      %v3835 = vpack.c.b16 %v3834, %v3833
      %v3838 = vunpack.c.l.b16 %v3829
      %v3839 = vunpack.c.l.b16 %v3830
      %v3840 = vpack.c.b16 %v3839, %v3838
      %v3843 = vsel %vm1504, %v3835, 0
      %3845 = vmatprep.subr.bf16.mxu0 0
      %3846 = vmatpush1.bf16.msra.mxu0 %v3840
      %3847 = vmatprep.subr.bf16.mxu0 0
      %3848 = vmatpush1.bf16.msra.mxu0 0
      %3849 = vmatprep.subr.bf16.mxu0 0
      %3850 = vmatpush1.bf16.msra.mxu0 0
      %3851 = vmatprep.subr.bf16.mxu0 0
      %3852 = vmatpush1.bf16.msra.mxu0 0
      %3853 = vmatprep.subr.bf16.mxu0 0
      %3854 = vmatpush1.bf16.msra.mxu0 0
      %3855 = vmatprep.subr.bf16.mxu0 0
      %3856 = vmatpush1.bf16.msra.mxu0 0
      %3857 = vmatprep.subr.bf16.mxu0 0
      %3858 = vmatpush1.bf16.msra.mxu0 0
      %3859 = vmatprep.subr.bf16.mxu0 0
      %3860 = vmatpush1.bf16.msra.mxu0 0
      %3861 = vmatprep.subr.bf16.mxu0 0
      %3862 = vmatpush1.bf16.msra.mxu0 0
      %3863 = vmatprep.subr.bf16.mxu0 0
      %3864 = vmatpush1.bf16.msra.mxu0 0
      %3865 = vmatprep.subr.bf16.mxu0 0
      %3866 = vmatpush1.bf16.msra.mxu0 0
      %3867 = vmatprep.subr.bf16.mxu0 0
      %3868 = vmatpush1.bf16.msra.mxu0 0
      %3869 = vmatprep.subr.bf16.mxu0 0
      %3870 = vmatpush1.bf16.msra.mxu0 0
      %3871 = vmatprep.subr.bf16.mxu0 0
      %3872 = vmatpush1.bf16.msra.mxu0 0
      %3873 = vmatprep.subr.bf16.mxu0 0
      %3874 = vmatpush1.bf16.msra.mxu0 0
      %3875 = vmatprep.subr.bf16.mxu0 0
      %3876 = vmatpush1.bf16.msra.mxu0 0
      %3877 = vmatprep.mubr.bf16.mxu0 0
      %3878 = vmatmul.mubr.bf16.gmra.mrb[0].mxu0 %v1843
      %v3879 = vpop.f32.mrb[0].mxu0
      %v3880 = vadd.f32 0.0, %v3879
      %v3881 = vpop.f32.mrb[0].mxu0
      %v3882 = vpop.f32.mrb[0].mxu0
      %v3883 = vadd.f32 0.0, %v3882
      %v3884 = vpop.f32.mrb[0].mxu0
      %3885 = vmatprep.mubr.bf16.mxu0 0
      %3886 = vmatmul.mubr.bf16.gmra.mrb[0].mxu0 %v1846
      %v3887 = vpop.f32.mrb[0].mxu0
      %v3888 = vadd.f32 0.0, %v3887
      %v3889 = vpop.f32.mrb[0].mxu0
      %v3890 = vpop.f32.mrb[0].mxu0
      %v3891 = vadd.f32 0.0, %v3890
      %v3892 = vpop.f32.mrb[0].mxu0
      %3893 = vmatprep.mubr.bf16.mxu0 0
      %3894 = vmatmul.mubr.bf16.gmra.mrb[0].mxu0 %v1849
      %v3895 = vpop.f32.mrb[0].mxu0
      %v3896 = vadd.f32 0.0, %v3895
      %v3897 = vpop.f32.mrb[0].mxu0
      %v3898 = vpop.f32.mrb[0].mxu0
      %v3899 = vadd.f32 0.0, %v3898
      %v3900 = vpop.f32.mrb[0].mxu0
      %3901 = vmatprep.mubr.bf16.mxu0 0
      %3902 = vmatmul.mubr.bf16.gmra.mrb[0].mxu0 %v1852
      %v3903 = vpop.f32.mrb[0].mxu0
      %v3904 = vadd.f32 0.0, %v3903
      %v3905 = vpop.f32.mrb[0].mxu0
      %v3906 = vpop.f32.mrb[0].mxu0
      %v3907 = vadd.f32 0.0, %v3906
      %v3908 = vpop.f32.mrb[0].mxu0
      %3909 = vmatprep.mubr.bf16.mxu0 0
      %3910 = vmatmul.mubr.bf16.gmra.mrb[0].mxu0 %v1855
      %v3911 = vpop.f32.mrb[0].mxu0
      %v3912 = vadd.f32 0.0, %v3911
      %v3913 = vpop.f32.mrb[0].mxu0
      %v3914 = vpop.f32.mrb[0].mxu0
      %v3915 = vadd.f32 0.0, %v3914
      %v3916 = vpop.f32.mrb[0].mxu0
      %3917 = vmatprep.mubr.bf16.mxu0 0
      %3918 = vmatmul.mubr.bf16.gmra.mrb[0].mxu0 %v1858
      %v3919 = vpop.f32.mrb[0].mxu0
      %v3920 = vadd.f32 0.0, %v3919
      %v3921 = vpop.f32.mrb[0].mxu0
      %v3922 = vpop.f32.mrb[0].mxu0
      %v3923 = vadd.f32 0.0, %v3922
      %v3924 = vpop.f32.mrb[0].mxu0
      %3925 = vmatprep.mubr.bf16.mxu0 0
      %3926 = vmatmul.mubr.bf16.gmra.mrb[0].mxu0 %v1861
      %v3927 = vpop.f32.mrb[0].mxu0
      %v3928 = vadd.f32 0.0, %v3927
      %v3929 = vpop.f32.mrb[0].mxu0
      %v3930 = vpop.f32.mrb[0].mxu0
      %v3931 = vadd.f32 0.0, %v3930
      %v3932 = vpop.f32.mrb[0].mxu0
      %3933 = vmatprep.mubr.bf16.mxu0 0
      %3934 = vmatmul.mubr.bf16.gmra.mrb[0].mxu0 %v1864
      %v3935 = vpop.f32.mrb[0].mxu0
      %v3936 = vadd.f32 0.0, %v3935
      %v3937 = vpop.f32.mrb[0].mxu0
      %v3938 = vpop.f32.mrb[0].mxu0
      %v3939 = vadd.f32 0.0, %v3938
      %v3940 = vpop.f32.mrb[0].mxu0
      %3941 = vmatprep.mubr.bf16.mxu0 0
      %3942 = vmatmul.mubr.bf16.gmra.mrb[0].mxu0 %v1867
      %v3943 = vpop.f32.mrb[0].mxu0
      %v3944 = vadd.f32 0.0, %v3943
      %v3945 = vpop.f32.mrb[0].mxu0
      %v3946 = vpop.f32.mrb[0].mxu0
      %v3947 = vadd.f32 0.0, %v3946
      %v3948 = vpop.f32.mrb[0].mxu0
      %3949 = vmatprep.mubr.bf16.mxu0 0
      %3950 = vmatmul.mubr.bf16.gmra.mrb[0].mxu0 %v1870
      %v3951 = vpop.f32.mrb[0].mxu0
      %v3952 = vadd.f32 0.0, %v3951
      %v3953 = vpop.f32.mrb[0].mxu0
      %v3954 = vpop.f32.mrb[0].mxu0
      %v3955 = vadd.f32 0.0, %v3954
      %v3956 = vpop.f32.mrb[0].mxu0
      %3957 = vmatprep.mubr.bf16.mxu0 0
      %3958 = vmatmul.mubr.bf16.gmra.mrb[0].mxu0 %v1873
      %v3959 = vpop.f32.mrb[0].mxu0
      %v3960 = vadd.f32 0.0, %v3959
      %v3961 = vpop.f32.mrb[0].mxu0
      %v3962 = vpop.f32.mrb[0].mxu0
      %v3963 = vadd.f32 0.0, %v3962
      %v3964 = vpop.f32.mrb[0].mxu0
      %3965 = vmatprep.mubr.bf16.mxu0 0
      %3966 = vmatmul.mubr.bf16.gmra.mrb[0].mxu0 %v1876
      %v3967 = vpop.f32.mrb[0].mxu0
      %v3968 = vadd.f32 0.0, %v3967
      %v3969 = vpop.f32.mrb[0].mxu0
      %v3970 = vpop.f32.mrb[0].mxu0
      %v3971 = vadd.f32 0.0, %v3970
      %v3972 = vpop.f32.mrb[0].mxu0
      %3973 = vmatprep.mubr.bf16.mxu0 0
      %3974 = vmatmul.mubr.bf16.gmra.mrb[0].mxu0 %v1879
      %v3975 = vpop.f32.mrb[0].mxu0
      %v3976 = vadd.f32 0.0, %v3975
      %v3977 = vpop.f32.mrb[0].mxu0
      %v3978 = vpop.f32.mrb[0].mxu0
      %v3979 = vadd.f32 0.0, %v3978
      %v3980 = vpop.f32.mrb[0].mxu0
      %3981 = vmatprep.mubr.bf16.mxu0 0
      %3982 = vmatmul.mubr.bf16.gmra.mrb[0].mxu0 %v1882
      %v3983 = vpop.f32.mrb[0].mxu0
      %v3984 = vadd.f32 0.0, %v3983
      %v3985 = vpop.f32.mrb[0].mxu0
      %v3986 = vpop.f32.mrb[0].mxu0
      %v3987 = vadd.f32 0.0, %v3986
      %v3988 = vpop.f32.mrb[0].mxu0
      %3989 = vmatprep.mubr.bf16.mxu0 0
      %3990 = vmatmul.mubr.bf16.gmra.mrb[0].mxu0 %v2982
      %v3991 = vpop.f32.mrb[0].mxu0
      %v3992 = vadd.f32 0.0, %v3991
      %v3993 = vpop.f32.mrb[0].mxu0
      %v3994 = vpop.f32.mrb[0].mxu0
      %v3995 = vadd.f32 0.0, %v3994
      %v3996 = vpop.f32.mrb[0].mxu0
      %3997 = vmatprep.mubr.bf16.mxu0 0
      %3998 = vmatmul.mubr.bf16.gmra.mrb[0].mxu0 %v3843
      %v3999 = vpop.f32.mrb[0].mxu0
      %v4000 = vadd.f32 0.0, %v3999
      %v4001 = vpop.f32.mrb[0].mxu0
      %v4002 = vpop.f32.mrb[0].mxu0
      %v4003 = vadd.f32 0.0, %v4002
      %v4004 = vpop.f32.mrb[0].mxu0
      %4005 = vdwg.mxu0
      %v4006 = vld [vmem:[#allocation2] sm:$0xff]
      %v4007 = vld [vmem:[#allocation2 + $0x8] sm:$0xff]
      %v4008 = vld [vmem:[#allocation2 + $0x10] sm:$0xff]
      %v4009 = vld [vmem:[#allocation2 + $0x18] sm:$0xff]
      %v4010 = vld [vmem:[#allocation2 + $0x20] sm:$0xff]
      %v4011 = vld [vmem:[#allocation2 + $0x28] sm:$0xff]
      %v4012 = vld [vmem:[#allocation2 + $0x30] sm:$0xff]
      %v4013 = vld [vmem:[#allocation2 + $0x38] sm:$0xff]
      %v4014 = vld [vmem:[#allocation2 + $0x40] sm:$0xff]
      %v4015 = vld [vmem:[#allocation2 + $0x48] sm:$0xff]
      %v4016 = vld [vmem:[#allocation2 + $0x50] sm:$0xff]
      %v4017 = vld [vmem:[#allocation2 + $0x58] sm:$0xff]
      %v4018 = vld [vmem:[#allocation2 + $0x60] sm:$0xff]
      %v4019 = vld [vmem:[#allocation2 + $0x68] sm:$0xff]
      %v4020 = vld [vmem:[#allocation2 + $0x70] sm:$0xff]
      %v4021 = vld [vmem:[#allocation2 + $0x78] sm:$0xff]
      %v4022 = vld [vmem:[#allocation2 + $0x80] sm:$0xff]
      %v4023 = vld [vmem:[#allocation2 + $0x88] sm:$0xff]
      %v4024 = vld [vmem:[#allocation2 + $0x90] sm:$0xff]
      %v4025 = vld [vmem:[#allocation2 + $0x98] sm:$0xff]
      %v4026 = vld [vmem:[#allocation2 + $0xa0] sm:$0xff]
      %v4027 = vld [vmem:[#allocation2 + $0xa8] sm:$0xff]
      %v4028 = vld [vmem:[#allocation2 + $0xb0] sm:$0xff]
      %v4029 = vld [vmem:[#allocation2 + $0xb8] sm:$0xff]
      %v4030 = vld [vmem:[#allocation2 + $0xc0] sm:$0xff]
      %v4031 = vld [vmem:[#allocation2 + $0xc8] sm:$0xff]
      %v4032 = vld [vmem:[#allocation2 + $0xd0] sm:$0xff]
      %v4033 = vld [vmem:[#allocation2 + $0xd8] sm:$0xff]
      %v4034 = vld [vmem:[#allocation2 + $0xe0] sm:$0xff]
      %v4035 = vld [vmem:[#allocation2 + $0xe8] sm:$0xff]
      %v4036 = vld [vmem:[#allocation2 + $0xf0] sm:$0xff]
      %v4037 = vld [vmem:[#allocation2 + $0xf8] sm:$0xff]
      %v4038 = vadd.f32 %v4006, %v3880
      %v4039 = vadd.f32 %v4007, %v3883
      %v4040 = vadd.f32 %v4008, %v3888
      %v4041 = vadd.f32 %v4009, %v3891
      %v4042 = vadd.f32 %v4010, %v3896
      %v4043 = vadd.f32 %v4011, %v3899
      %v4044 = vadd.f32 %v4012, %v3904
      %v4045 = vadd.f32 %v4013, %v3907
      %v4046 = vadd.f32 %v4014, %v3912
      %v4047 = vadd.f32 %v4015, %v3915
      %v4048 = vadd.f32 %v4016, %v3920
      %v4049 = vadd.f32 %v4017, %v3923
      %v4050 = vadd.f32 %v4018, %v3928
      %v4051 = vadd.f32 %v4019, %v3931
      %v4052 = vadd.f32 %v4020, %v3936
      %v4053 = vadd.f32 %v4021, %v3939
      %v4054 = vadd.f32 %v4022, %v3944
      %v4055 = vadd.f32 %v4023, %v3947
      %v4056 = vadd.f32 %v4024, %v3952
      %v4057 = vadd.f32 %v4025, %v3955
      %v4058 = vadd.f32 %v4026, %v3960
      %v4059 = vadd.f32 %v4027, %v3963
      %v4060 = vadd.f32 %v4028, %v3968
      %v4061 = vadd.f32 %v4029, %v3971
      %v4062 = vadd.f32 %v4030, %v3976
      %v4063 = vadd.f32 %v4031, %v3979
      %v4064 = vadd.f32 %v4032, %v3984
      %v4065 = vadd.f32 %v4033, %v3987
      %v4066 = vadd.f32 %v4034, %v3992
      %v4067 = vadd.f32 %v4035, %v3995
      %v4068 = vadd.f32 %v4036, %v4000
      %v4069 = vadd.f32 %v4037, %v4003
      %4070 = vst.msk [vmem:[#allocation2] sm:$0xff] %vm1714, %v4038
      %4071 = vst.msk [vmem:[#allocation2 + $0x8] sm:$0xff] %vm1714, %v4039
      %4072 = vst.msk [vmem:[#allocation2 + $0x10] sm:$0xff] %vm1714, %v4040
      %4073 = vst.msk [vmem:[#allocation2 + $0x18] sm:$0xff] %vm1714, %v4041
      %4074 = vst.msk [vmem:[#allocation2 + $0x20] sm:$0xff] %vm1714, %v4042
      %4075 = vst.msk [vmem:[#allocation2 + $0x28] sm:$0xff] %vm1714, %v4043
      %4076 = vst.msk [vmem:[#allocation2 + $0x30] sm:$0xff] %vm1714, %v4044
      %4077 = vst.msk [vmem:[#allocation2 + $0x38] sm:$0xff] %vm1714, %v4045
      %4078 = vst.msk [vmem:[#allocation2 + $0x40] sm:$0xff] %vm1714, %v4046
      %4079 = vst.msk [vmem:[#allocation2 + $0x48] sm:$0xff] %vm1714, %v4047
      %4080 = vst.msk [vmem:[#allocation2 + $0x50] sm:$0xff] %vm1714, %v4048
      %4081 = vst.msk [vmem:[#allocation2 + $0x58] sm:$0xff] %vm1714, %v4049
      %4082 = vst.msk [vmem:[#allocation2 + $0x60] sm:$0xff] %vm1714, %v4050
      %4083 = vst.msk [vmem:[#allocation2 + $0x68] sm:$0xff] %vm1714, %v4051
      %4084 = vst.msk [vmem:[#allocation2 + $0x70] sm:$0xff] %vm1714, %v4052
      %4085 = vst.msk [vmem:[#allocation2 + $0x78] sm:$0xff] %vm1714, %v4053
      %4086 = vst.msk [vmem:[#allocation2 + $0x80] sm:$0xff] %vm1714, %v4054
      %4087 = vst.msk [vmem:[#allocation2 + $0x88] sm:$0xff] %vm1714, %v4055
      %4088 = vst.msk [vmem:[#allocation2 + $0x90] sm:$0xff] %vm1714, %v4056
      %4089 = vst.msk [vmem:[#allocation2 + $0x98] sm:$0xff] %vm1714, %v4057
      %4090 = vst.msk [vmem:[#allocation2 + $0xa0] sm:$0xff] %vm1714, %v4058
      %4091 = vst.msk [vmem:[#allocation2 + $0xa8] sm:$0xff] %vm1714, %v4059
      %4092 = vst.msk [vmem:[#allocation2 + $0xb0] sm:$0xff] %vm1714, %v4060
      %4093 = vst.msk [vmem:[#allocation2 + $0xb8] sm:$0xff] %vm1714, %v4061
      %4094 = vst.msk [vmem:[#allocation2 + $0xc0] sm:$0xff] %vm1714, %v4062
      %4095 = vst.msk [vmem:[#allocation2 + $0xc8] sm:$0xff] %vm1714, %v4063
      %4096 = vst.msk [vmem:[#allocation2 + $0xd0] sm:$0xff] %vm1714, %v4064
      %4097 = vst.msk [vmem:[#allocation2 + $0xd8] sm:$0xff] %vm1714, %v4065
      %4098 = vst.msk [vmem:[#allocation2 + $0xe0] sm:$0xff] %vm1714, %v4066
      %4099 = vst.msk [vmem:[#allocation2 + $0xe8] sm:$0xff] %vm1714, %v4067
      %4100 = vst.msk [vmem:[#allocation2 + $0xf0] sm:$0xff] %vm1714, %v4068
      %4101 = vst.msk [vmem:[#allocation2 + $0xf8] sm:$0xff] %vm1714, %v4069
      %s4102 = scalar_lea.vmem %s2, 64
      %v4103 = vld [vmem:[%s4102] sm:$0xf]
      %v4104 = vld [vmem:[%s4102 + $0x4] sm:$0xf]
      %v4107 = vunpack.c.l.b16 %v1258
      %v4108 = vunpack.c.l.b16 %v1259
      %v4109 = vpack.c.b16 %v4107, %v3247
      %v4110 = vpack.c.b16 %v4108, %v4108
      %v4112 = vshll.u32 %v4109, 16
      %v4114 = vrot.slane %v4112, 1
      %v4115 = vsel %vm2227, %v3257, %v4114
      %v4116 = vshrl.u32 %v4109, 16
      %v4118 = vor.u32 %v4116, %v4114
      %v4120 = vshll.u32 %v4110, 16
      %v4122 = vrot.slane %v4120, 1
      %v4123 = vsel %vm2227, %v4118, %v4122
      %v4126 = vunpack.c.l.b16 %v4103
      %v4127 = vunpack.c.l.b16 %v4104
      %v4128 = vpack.c.b16 %v4127, %v4126
      %v4131 = vsel %vm1504, %v4115, 0
      %v4134 = vsel %vm1504, %v4123, 0
      %4136 = vmatprep.subr.bf16.mxu0 0
      %4137 = vmatpush1.bf16.msra.mxu0 %v4128
      %4138 = vmatprep.subr.bf16.mxu0 0
      %4139 = vmatpush1.bf16.msra.mxu0 0
      %4140 = vmatprep.subr.bf16.mxu0 0
      %4141 = vmatpush1.bf16.msra.mxu0 0
      %4142 = vmatprep.subr.bf16.mxu0 0
      %4143 = vmatpush1.bf16.msra.mxu0 0
      %4144 = vmatprep.subr.bf16.mxu0 0
      %4145 = vmatpush1.bf16.msra.mxu0 0
      %4146 = vmatprep.subr.bf16.mxu0 0
      %4147 = vmatpush1.bf16.msra.mxu0 0
      %4148 = vmatprep.subr.bf16.mxu0 0
      %4149 = vmatpush1.bf16.msra.mxu0 0
      %4150 = vmatprep.subr.bf16.mxu0 0
      %4151 = vmatpush1.bf16.msra.mxu0 0
      %4152 = vmatprep.subr.bf16.mxu0 0
      %4153 = vmatpush1.bf16.msra.mxu0 0
      %4154 = vmatprep.subr.bf16.mxu0 0
      %4155 = vmatpush1.bf16.msra.mxu0 0
      %4156 = vmatprep.subr.bf16.mxu0 0
      %4157 = vmatpush1.bf16.msra.mxu0 0
      %4158 = vmatprep.subr.bf16.mxu0 0
      %4159 = vmatpush1.bf16.msra.mxu0 0
      %4160 = vmatprep.subr.bf16.mxu0 0
      %4161 = vmatpush1.bf16.msra.mxu0 0
      %4162 = vmatprep.subr.bf16.mxu0 0
      %4163 = vmatpush1.bf16.msra.mxu0 0
      %4164 = vmatprep.subr.bf16.mxu0 0
      %4165 = vmatpush1.bf16.msra.mxu0 0
      %4166 = vmatprep.subr.bf16.mxu0 0
      %4167 = vmatpush1.bf16.msra.mxu0 0
      %4168 = vmatprep.mubr.bf16.mxu0 0
      %4169 = vmatmul.mubr.bf16.gmra.mrb[0].mxu0 %v2373
      %v4170 = vpop.f32.mrb[0].mxu0
      %v4171 = vadd.f32 0.0, %v4170
      %v4172 = vpop.f32.mrb[0].mxu0
      %v4173 = vpop.f32.mrb[0].mxu0
      %v4174 = vadd.f32 0.0, %v4173
      %v4175 = vpop.f32.mrb[0].mxu0
      %4176 = vmatprep.mubr.bf16.mxu0 0
      %4177 = vmatmul.mubr.bf16.gmra.mrb[0].mxu0 %v2376
      %v4178 = vpop.f32.mrb[0].mxu0
      %v4179 = vadd.f32 0.0, %v4178
      %v4180 = vpop.f32.mrb[0].mxu0
      %v4181 = vpop.f32.mrb[0].mxu0
      %v4182 = vadd.f32 0.0, %v4181
      %v4183 = vpop.f32.mrb[0].mxu0
      %4184 = vmatprep.mubr.bf16.mxu0 0
      %4185 = vmatmul.mubr.bf16.gmra.mrb[0].mxu0 %v2379
      %v4186 = vpop.f32.mrb[0].mxu0
      %v4187 = vadd.f32 0.0, %v4186
      %v4188 = vpop.f32.mrb[0].mxu0
      %v4189 = vpop.f32.mrb[0].mxu0
      %v4190 = vadd.f32 0.0, %v4189
      %v4191 = vpop.f32.mrb[0].mxu0
      %4192 = vmatprep.mubr.bf16.mxu0 0
      %4193 = vmatmul.mubr.bf16.gmra.mrb[0].mxu0 %v2382
      %v4194 = vpop.f32.mrb[0].mxu0
      %v4195 = vadd.f32 0.0, %v4194
      %v4196 = vpop.f32.mrb[0].mxu0
      %v4197 = vpop.f32.mrb[0].mxu0
      %v4198 = vadd.f32 0.0, %v4197
      %v4199 = vpop.f32.mrb[0].mxu0
      %4200 = vmatprep.mubr.bf16.mxu0 0
      %4201 = vmatmul.mubr.bf16.gmra.mrb[0].mxu0 %v2385
      %v4202 = vpop.f32.mrb[0].mxu0
      %v4203 = vadd.f32 0.0, %v4202
      %v4204 = vpop.f32.mrb[0].mxu0
      %v4205 = vpop.f32.mrb[0].mxu0
      %v4206 = vadd.f32 0.0, %v4205
      %v4207 = vpop.f32.mrb[0].mxu0
      %4208 = vmatprep.mubr.bf16.mxu0 0
      %4209 = vmatmul.mubr.bf16.gmra.mrb[0].mxu0 %v2388
      %v4210 = vpop.f32.mrb[0].mxu0
      %v4211 = vadd.f32 0.0, %v4210
      %v4212 = vpop.f32.mrb[0].mxu0
      %v4213 = vpop.f32.mrb[0].mxu0
      %v4214 = vadd.f32 0.0, %v4213
      %v4215 = vpop.f32.mrb[0].mxu0
      %4216 = vmatprep.mubr.bf16.mxu0 0
      %4217 = vmatmul.mubr.bf16.gmra.mrb[0].mxu0 %v2391
      %v4218 = vpop.f32.mrb[0].mxu0
      %v4219 = vadd.f32 0.0, %v4218
      %v4220 = vpop.f32.mrb[0].mxu0
      %v4221 = vpop.f32.mrb[0].mxu0
      %v4222 = vadd.f32 0.0, %v4221
      %v4223 = vpop.f32.mrb[0].mxu0
      %4224 = vmatprep.mubr.bf16.mxu0 0
      %4225 = vmatmul.mubr.bf16.gmra.mrb[0].mxu0 %v2394
      %v4226 = vpop.f32.mrb[0].mxu0
      %v4227 = vadd.f32 0.0, %v4226
      %v4228 = vpop.f32.mrb[0].mxu0
      %v4229 = vpop.f32.mrb[0].mxu0
      %v4230 = vadd.f32 0.0, %v4229
      %v4231 = vpop.f32.mrb[0].mxu0
      %4232 = vmatprep.mubr.bf16.mxu0 0
      %4233 = vmatmul.mubr.bf16.gmra.mrb[0].mxu0 %v2397
      %v4234 = vpop.f32.mrb[0].mxu0
      %v4235 = vadd.f32 0.0, %v4234
      %v4236 = vpop.f32.mrb[0].mxu0
      %v4237 = vpop.f32.mrb[0].mxu0
      %v4238 = vadd.f32 0.0, %v4237
      %v4239 = vpop.f32.mrb[0].mxu0
      %4240 = vmatprep.mubr.bf16.mxu0 0
      %4241 = vmatmul.mubr.bf16.gmra.mrb[0].mxu0 %v2400
      %v4242 = vpop.f32.mrb[0].mxu0
      %v4243 = vadd.f32 0.0, %v4242
      %v4244 = vpop.f32.mrb[0].mxu0
      %v4245 = vpop.f32.mrb[0].mxu0
      %v4246 = vadd.f32 0.0, %v4245
      %v4247 = vpop.f32.mrb[0].mxu0
      %4248 = vmatprep.mubr.bf16.mxu0 0
      %4249 = vmatmul.mubr.bf16.gmra.mrb[0].mxu0 %v2403
      %v4250 = vpop.f32.mrb[0].mxu0
      %v4251 = vadd.f32 0.0, %v4250
      %v4252 = vpop.f32.mrb[0].mxu0
      %v4253 = vpop.f32.mrb[0].mxu0
      %v4254 = vadd.f32 0.0, %v4253
      %v4255 = vpop.f32.mrb[0].mxu0
      %4256 = vmatprep.mubr.bf16.mxu0 0
      %4257 = vmatmul.mubr.bf16.gmra.mrb[0].mxu0 %v2406
      %v4258 = vpop.f32.mrb[0].mxu0
      %v4259 = vadd.f32 0.0, %v4258
      %v4260 = vpop.f32.mrb[0].mxu0
      %v4261 = vpop.f32.mrb[0].mxu0
      %v4262 = vadd.f32 0.0, %v4261
      %v4263 = vpop.f32.mrb[0].mxu0
      %4264 = vmatprep.mubr.bf16.mxu0 0
      %4265 = vmatmul.mubr.bf16.gmra.mrb[0].mxu0 %v2409
      %v4266 = vpop.f32.mrb[0].mxu0
      %v4267 = vadd.f32 0.0, %v4266
      %v4268 = vpop.f32.mrb[0].mxu0
      %v4269 = vpop.f32.mrb[0].mxu0
      %v4270 = vadd.f32 0.0, %v4269
      %v4271 = vpop.f32.mrb[0].mxu0
      %4272 = vmatprep.mubr.bf16.mxu0 0
      %4273 = vmatmul.mubr.bf16.gmra.mrb[0].mxu0 %v3270
      %v4274 = vpop.f32.mrb[0].mxu0
      %v4275 = vadd.f32 0.0, %v4274
      %v4276 = vpop.f32.mrb[0].mxu0
      %v4277 = vpop.f32.mrb[0].mxu0
      %v4278 = vadd.f32 0.0, %v4277
      %v4279 = vpop.f32.mrb[0].mxu0
      %4280 = vmatprep.mubr.bf16.mxu0 0
      %4281 = vmatmul.mubr.bf16.gmra.mrb[0].mxu0 %v4131
      %v4282 = vpop.f32.mrb[0].mxu0
      %v4283 = vadd.f32 0.0, %v4282
      %v4284 = vpop.f32.mrb[0].mxu0
      %v4285 = vpop.f32.mrb[0].mxu0
      %v4286 = vadd.f32 0.0, %v4285
      %v4287 = vpop.f32.mrb[0].mxu0
      %4288 = vmatprep.mubr.bf16.mxu0 0
      %4289 = vmatmul.mubr.bf16.gmra.mrb[0].mxu0 %v4134
      %v4290 = vpop.f32.mrb[0].mxu0
      %v4291 = vadd.f32 0.0, %v4290
      %v4292 = vpop.f32.mrb[0].mxu0
      %v4293 = vpop.f32.mrb[0].mxu0
      %v4294 = vadd.f32 0.0, %v4293
      %v4295 = vpop.f32.mrb[0].mxu0
      %4296 = vdwg.mxu0
      %v4297 = vld [vmem:[#allocation2] sm:$0xff]
      %v4298 = vld [vmem:[#allocation2 + $0x8] sm:$0xff]
      %v4299 = vld [vmem:[#allocation2 + $0x10] sm:$0xff]
      %v4300 = vld [vmem:[#allocation2 + $0x18] sm:$0xff]
      %v4301 = vld [vmem:[#allocation2 + $0x20] sm:$0xff]
      %v4302 = vld [vmem:[#allocation2 + $0x28] sm:$0xff]
      %v4303 = vld [vmem:[#allocation2 + $0x30] sm:$0xff]
      %v4304 = vld [vmem:[#allocation2 + $0x38] sm:$0xff]
      %v4305 = vld [vmem:[#allocation2 + $0x40] sm:$0xff]
      %v4306 = vld [vmem:[#allocation2 + $0x48] sm:$0xff]
      %v4307 = vld [vmem:[#allocation2 + $0x50] sm:$0xff]
      %v4308 = vld [vmem:[#allocation2 + $0x58] sm:$0xff]
      %v4309 = vld [vmem:[#allocation2 + $0x60] sm:$0xff]
      %v4310 = vld [vmem:[#allocation2 + $0x68] sm:$0xff]
      %v4311 = vld [vmem:[#allocation2 + $0x70] sm:$0xff]
      %v4312 = vld [vmem:[#allocation2 + $0x78] sm:$0xff]
      %v4313 = vld [vmem:[#allocation2 + $0x80] sm:$0xff]
      %v4314 = vld [vmem:[#allocation2 + $0x88] sm:$0xff]
      %v4315 = vld [vmem:[#allocation2 + $0x90] sm:$0xff]
      %v4316 = vld [vmem:[#allocation2 + $0x98] sm:$0xff]
      %v4317 = vld [vmem:[#allocation2 + $0xa0] sm:$0xff]
      %v4318 = vld [vmem:[#allocation2 + $0xa8] sm:$0xff]
      %v4319 = vld [vmem:[#allocation2 + $0xb0] sm:$0xff]
      %v4320 = vld [vmem:[#allocation2 + $0xb8] sm:$0xff]
      %v4321 = vld [vmem:[#allocation2 + $0xc0] sm:$0xff]
      %v4322 = vld [vmem:[#allocation2 + $0xc8] sm:$0xff]
      %v4323 = vld [vmem:[#allocation2 + $0xd0] sm:$0xff]
      %v4324 = vld [vmem:[#allocation2 + $0xd8] sm:$0xff]
      %v4325 = vld [vmem:[#allocation2 + $0xe0] sm:$0xff]
      %v4326 = vld [vmem:[#allocation2 + $0xe8] sm:$0xff]
      %v4327 = vld [vmem:[#allocation2 + $0xf0] sm:$0xff]
      %v4328 = vld [vmem:[#allocation2 + $0xf8] sm:$0xff]
      %v4329 = vadd.f32 %v4297, %v4171
      %v4330 = vadd.f32 %v4298, %v4174
      %v4331 = vadd.f32 %v4299, %v4179
      %v4332 = vadd.f32 %v4300, %v4182
      %v4333 = vadd.f32 %v4301, %v4187
      %v4334 = vadd.f32 %v4302, %v4190
      %v4335 = vadd.f32 %v4303, %v4195
      %v4336 = vadd.f32 %v4304, %v4198
      %v4337 = vadd.f32 %v4305, %v4203
      %v4338 = vadd.f32 %v4306, %v4206
      %v4339 = vadd.f32 %v4307, %v4211
      %v4340 = vadd.f32 %v4308, %v4214
      %v4341 = vadd.f32 %v4309, %v4219
      %v4342 = vadd.f32 %v4310, %v4222
      %v4343 = vadd.f32 %v4311, %v4227
      %v4344 = vadd.f32 %v4312, %v4230
      %v4345 = vadd.f32 %v4313, %v4235
      %v4346 = vadd.f32 %v4314, %v4238
      %v4347 = vadd.f32 %v4315, %v4243
      %v4348 = vadd.f32 %v4316, %v4246
      %v4349 = vadd.f32 %v4317, %v4251
      %v4350 = vadd.f32 %v4318, %v4254
      %v4351 = vadd.f32 %v4319, %v4259
      %v4352 = vadd.f32 %v4320, %v4262
      %v4353 = vadd.f32 %v4321, %v4267
      %v4354 = vadd.f32 %v4322, %v4270
      %v4355 = vadd.f32 %v4323, %v4275
      %v4356 = vadd.f32 %v4324, %v4278
      %v4357 = vadd.f32 %v4325, %v4283
      %v4358 = vadd.f32 %v4326, %v4286
      %v4359 = vadd.f32 %v4327, %v4291
      %v4360 = vadd.f32 %v4328, %v4294
      %4361 = vst.msk [vmem:[#allocation2] sm:$0xff] %vm1714, %v4329
      %4362 = vst.msk [vmem:[#allocation2 + $0x8] sm:$0xff] %vm1714, %v4330
      %4363 = vst.msk [vmem:[#allocation2 + $0x10] sm:$0xff] %vm1714, %v4331
      %4364 = vst.msk [vmem:[#allocation2 + $0x18] sm:$0xff] %vm1714, %v4332
      %4365 = vst.msk [vmem:[#allocation2 + $0x20] sm:$0xff] %vm1714, %v4333
      %4366 = vst.msk [vmem:[#allocation2 + $0x28] sm:$0xff] %vm1714, %v4334
      %4367 = vst.msk [vmem:[#allocation2 + $0x30] sm:$0xff] %vm1714, %v4335
      %4368 = vst.msk [vmem:[#allocation2 + $0x38] sm:$0xff] %vm1714, %v4336
      %4369 = vst.msk [vmem:[#allocation2 + $0x40] sm:$0xff] %vm1714, %v4337
      %4370 = vst.msk [vmem:[#allocation2 + $0x48] sm:$0xff] %vm1714, %v4338
      %4371 = vst.msk [vmem:[#allocation2 + $0x50] sm:$0xff] %vm1714, %v4339
      %4372 = vst.msk [vmem:[#allocation2 + $0x58] sm:$0xff] %vm1714, %v4340
      %4373 = vst.msk [vmem:[#allocation2 + $0x60] sm:$0xff] %vm1714, %v4341
      %4374 = vst.msk [vmem:[#allocation2 + $0x68] sm:$0xff] %vm1714, %v4342
      %4375 = vst.msk [vmem:[#allocation2 + $0x70] sm:$0xff] %vm1714, %v4343
      %4376 = vst.msk [vmem:[#allocation2 + $0x78] sm:$0xff] %vm1714, %v4344
      %4377 = vst.msk [vmem:[#allocation2 + $0x80] sm:$0xff] %vm1714, %v4345
      %4378 = vst.msk [vmem:[#allocation2 + $0x88] sm:$0xff] %vm1714, %v4346
      %4379 = vst.msk [vmem:[#allocation2 + $0x90] sm:$0xff] %vm1714, %v4347
      %4380 = vst.msk [vmem:[#allocation2 + $0x98] sm:$0xff] %vm1714, %v4348
      %4381 = vst.msk [vmem:[#allocation2 + $0xa0] sm:$0xff] %vm1714, %v4349
      %4382 = vst.msk [vmem:[#allocation2 + $0xa8] sm:$0xff] %vm1714, %v4350
      %4383 = vst.msk [vmem:[#allocation2 + $0xb0] sm:$0xff] %vm1714, %v4351
      %4384 = vst.msk [vmem:[#allocation2 + $0xb8] sm:$0xff] %vm1714, %v4352
      %4385 = vst.msk [vmem:[#allocation2 + $0xc0] sm:$0xff] %vm1714, %v4353
      %4386 = vst.msk [vmem:[#allocation2 + $0xc8] sm:$0xff] %vm1714, %v4354
      %4387 = vst.msk [vmem:[#allocation2 + $0xd0] sm:$0xff] %vm1714, %v4355
      %4388 = vst.msk [vmem:[#allocation2 + $0xd8] sm:$0xff] %vm1714, %v4356
      %4389 = vst.msk [vmem:[#allocation2 + $0xe0] sm:$0xff] %vm1714, %v4357
      %4390 = vst.msk [vmem:[#allocation2 + $0xe8] sm:$0xff] %vm1714, %v4358
      %4391 = vst.msk [vmem:[#allocation2 + $0xf0] sm:$0xff] %vm1714, %v4359
      %4392 = vst.msk [vmem:[#allocation2 + $0xf8] sm:$0xff] %vm1714, %v4360
      %v4393 = vld [vmem:[#allocation2] sm:$0xff]
      %v4394 = vld [vmem:[#allocation2 + $0x8] sm:$0xff]
      %v4395 = vld [vmem:[#allocation2 + $0x10] sm:$0xff]
      %v4396 = vld [vmem:[#allocation2 + $0x18] sm:$0xff]
      %v4397 = vld [vmem:[#allocation2 + $0x20] sm:$0xff]
      %v4398 = vld [vmem:[#allocation2 + $0x28] sm:$0xff]
      %v4399 = vld [vmem:[#allocation2 + $0x30] sm:$0xff]
      %v4400 = vld [vmem:[#allocation2 + $0x38] sm:$0xff]
      %v4401 = vld [vmem:[#allocation2 + $0x40] sm:$0xff]
      %v4402 = vld [vmem:[#allocation2 + $0x48] sm:$0xff]
      %v4403 = vld [vmem:[#allocation2 + $0x50] sm:$0xff]
      %v4404 = vld [vmem:[#allocation2 + $0x58] sm:$0xff]
      %v4405 = vld [vmem:[#allocation2 + $0x60] sm:$0xff]
      %v4406 = vld [vmem:[#allocation2 + $0x68] sm:$0xff]
      %v4407 = vld [vmem:[#allocation2 + $0x70] sm:$0xff]
      %v4408 = vld [vmem:[#allocation2 + $0x78] sm:$0xff]
      %v4409 = vld [vmem:[#allocation2 + $0x80] sm:$0xff]
      %v4410 = vld [vmem:[#allocation2 + $0x88] sm:$0xff]
      %v4411 = vld [vmem:[#allocation2 + $0x90] sm:$0xff]
      %v4412 = vld [vmem:[#allocation2 + $0x98] sm:$0xff]
      %v4413 = vld [vmem:[#allocation2 + $0xa0] sm:$0xff]
      %v4414 = vld [vmem:[#allocation2 + $0xa8] sm:$0xff]
      %v4415 = vld [vmem:[#allocation2 + $0xb0] sm:$0xff]
      %v4416 = vld [vmem:[#allocation2 + $0xb8] sm:$0xff]
      %v4417 = vld [vmem:[#allocation2 + $0xc0] sm:$0xff]
      %v4418 = vld [vmem:[#allocation2 + $0xc8] sm:$0xff]
      %v4419 = vld [vmem:[#allocation2 + $0xd0] sm:$0xff]
      %v4420 = vld [vmem:[#allocation2 + $0xd8] sm:$0xff]
      %v4421 = vld [vmem:[#allocation2 + $0xe0] sm:$0xff]
      %v4422 = vld [vmem:[#allocation2 + $0xe8] sm:$0xff]
      %v4423 = vld [vmem:[#allocation2 + $0xf0] sm:$0xff]
      %v4424 = vld [vmem:[#allocation2 + $0xf8] sm:$0xff]
      %v4425 = vld [vmem:[#allocation3] sm:$0x1]
      %v4426 = vsel %vm1714, %v4393, 0.0
      %v4427 = vsel %vm1714, %v4394, 0.0
      %v4428 = vadd.f32 %v4426, %v4427
      %v4429 = vsel %vm1714, %v4395, 0.0
      %v4430 = vadd.f32 %v4428, %v4429
      %v4431 = vsel %vm1714, %v4396, 0.0
      %v4432 = vadd.f32 %v4430, %v4431
      %v4433 = vsel %vm1714, %v4397, 0.0
      %v4434 = vadd.f32 %v4432, %v4433
      %v4435 = vsel %vm1714, %v4398, 0.0
      %v4436 = vadd.f32 %v4434, %v4435
      %v4437 = vsel %vm1714, %v4399, 0.0
      %v4438 = vadd.f32 %v4436, %v4437
      %v4439 = vsel %vm1714, %v4400, 0.0
      %v4440 = vadd.f32 %v4438, %v4439
      %v4441 = vsel %vm1714, %v4401, 0.0
      %v4442 = vadd.f32 %v4440, %v4441
      %v4443 = vsel %vm1714, %v4402, 0.0
      %v4444 = vadd.f32 %v4442, %v4443
      %v4445 = vsel %vm1714, %v4403, 0.0
      %v4446 = vadd.f32 %v4444, %v4445
      %v4447 = vsel %vm1714, %v4404, 0.0
      %v4448 = vadd.f32 %v4446, %v4447
      %v4449 = vsel %vm1714, %v4405, 0.0
      %v4450 = vadd.f32 %v4448, %v4449
      %v4451 = vsel %vm1714, %v4406, 0.0
      %v4452 = vadd.f32 %v4450, %v4451
      %v4453 = vsel %vm1714, %v4407, 0.0
      %v4454 = vadd.f32 %v4452, %v4453
      %v4455 = vsel %vm1714, %v4408, 0.0
      %v4456 = vadd.f32 %v4454, %v4455
      %v4457 = vsel %vm1714, %v4409, 0.0
      %v4458 = vadd.f32 %v4456, %v4457
      %v4459 = vsel %vm1714, %v4410, 0.0
      %v4460 = vadd.f32 %v4458, %v4459
      %v4461 = vsel %vm1714, %v4411, 0.0
      %v4462 = vadd.f32 %v4460, %v4461
      %v4463 = vsel %vm1714, %v4412, 0.0
      %v4464 = vadd.f32 %v4462, %v4463
      %v4465 = vsel %vm1714, %v4413, 0.0
      %v4466 = vadd.f32 %v4464, %v4465
      %v4467 = vsel %vm1714, %v4414, 0.0
      %v4468 = vadd.f32 %v4466, %v4467
      %v4469 = vsel %vm1714, %v4415, 0.0
      %v4470 = vadd.f32 %v4468, %v4469
      %v4471 = vsel %vm1714, %v4416, 0.0
      %v4472 = vadd.f32 %v4470, %v4471
      %v4473 = vsel %vm1714, %v4417, 0.0
      %v4474 = vadd.f32 %v4472, %v4473
      %v4475 = vsel %vm1714, %v4418, 0.0
      %v4476 = vadd.f32 %v4474, %v4475
      %v4477 = vsel %vm1714, %v4419, 0.0
      %v4478 = vadd.f32 %v4476, %v4477
      %v4479 = vsel %vm1714, %v4420, 0.0
      %v4480 = vadd.f32 %v4478, %v4479
      %v4481 = vsel %vm1714, %v4421, 0.0
      %v4482 = vadd.f32 %v4480, %v4481
      %v4483 = vsel %vm1714, %v4422, 0.0
      %v4484 = vadd.f32 %v4482, %v4483
      %v4485 = vsel %vm1714, %v4423, 0.0
      %v4486 = vadd.f32 %v4484, %v4485
      %v4487 = vsel %vm1714, %v4424, 0.0
      %v4488 = vadd.f32 %v4486, %v4487
      %v4489 = vrot.slane %v4488, 4
      %v4490 = vadd.f32 %v4488, %v4489
      %v4491 = vrot.slane %v4490, 2
      %v4492 = vadd.f32 %v4490, %v4491
      %v4493 = vrot.slane %v4492, 1
      %v4494 = vadd.f32 %v4492, %v4493
      %v4495 = vadd.f32 %v4425, %v4494
      %vm4496 = vcmask 253952
      %4497 = vst.msk [vmem:[#allocation3] sm:$0x1] %vm4496, %v4495
      %v4498 = vld [vmem:[#allocation3 + $0x1] sm:$0x1]
      %v4499 = vmul.f32 %v4393, %v4393
      %v4500 = vmul.f32 %v4394, %v4394
      %v4501 = vmul.f32 %v4395, %v4395
      %v4502 = vmul.f32 %v4396, %v4396
      %v4503 = vmul.f32 %v4397, %v4397
      %v4504 = vmul.f32 %v4398, %v4398
      %v4505 = vmul.f32 %v4399, %v4399
      %v4506 = vmul.f32 %v4400, %v4400
      %v4507 = vmul.f32 %v4401, %v4401
      %v4508 = vmul.f32 %v4402, %v4402
      %v4509 = vmul.f32 %v4403, %v4403
      %v4510 = vmul.f32 %v4404, %v4404
      %v4511 = vmul.f32 %v4405, %v4405
      %v4512 = vmul.f32 %v4406, %v4406
      %v4513 = vmul.f32 %v4407, %v4407
      %v4514 = vmul.f32 %v4408, %v4408
      %v4515 = vmul.f32 %v4409, %v4409
      %v4516 = vmul.f32 %v4410, %v4410
      %v4517 = vmul.f32 %v4411, %v4411
      %v4518 = vmul.f32 %v4412, %v4412
      %v4519 = vmul.f32 %v4413, %v4413
      %v4520 = vmul.f32 %v4414, %v4414
      %v4521 = vmul.f32 %v4415, %v4415
      %v4522 = vmul.f32 %v4416, %v4416
      %v4523 = vmul.f32 %v4417, %v4417
      %v4524 = vmul.f32 %v4418, %v4418
      %v4525 = vmul.f32 %v4419, %v4419
      %v4526 = vmul.f32 %v4420, %v4420
      %v4527 = vmul.f32 %v4421, %v4421
      %v4528 = vmul.f32 %v4422, %v4422
      %v4529 = vmul.f32 %v4423, %v4423
      %v4530 = vmul.f32 %v4424, %v4424
      %v4531 = vsel %vm1714, %v4499, 0.0
      %v4532 = vsel %vm1714, %v4500, 0.0
      %v4533 = vadd.f32 %v4531, %v4532
      %v4534 = vsel %vm1714, %v4501, 0.0
      %v4535 = vadd.f32 %v4533, %v4534
      %v4536 = vsel %vm1714, %v4502, 0.0
      %v4537 = vadd.f32 %v4535, %v4536
      %v4538 = vsel %vm1714, %v4503, 0.0
      %v4539 = vadd.f32 %v4537, %v4538
      %v4540 = vsel %vm1714, %v4504, 0.0
      %v4541 = vadd.f32 %v4539, %v4540
      %v4542 = vsel %vm1714, %v4505, 0.0
      %v4543 = vadd.f32 %v4541, %v4542
      %v4544 = vsel %vm1714, %v4506, 0.0
      %v4545 = vadd.f32 %v4543, %v4544
      %v4546 = vsel %vm1714, %v4507, 0.0
      %v4547 = vadd.f32 %v4545, %v4546
      %v4548 = vsel %vm1714, %v4508, 0.0
      %v4549 = vadd.f32 %v4547, %v4548
      %v4550 = vsel %vm1714, %v4509, 0.0
      %v4551 = vadd.f32 %v4549, %v4550
      %v4552 = vsel %vm1714, %v4510, 0.0
      %v4553 = vadd.f32 %v4551, %v4552
      %v4554 = vsel %vm1714, %v4511, 0.0
      %v4555 = vadd.f32 %v4553, %v4554
      %v4556 = vsel %vm1714, %v4512, 0.0
      %v4557 = vadd.f32 %v4555, %v4556
      %v4558 = vsel %vm1714, %v4513, 0.0
      %v4559 = vadd.f32 %v4557, %v4558
      %v4560 = vsel %vm1714, %v4514, 0.0
      %v4561 = vadd.f32 %v4559, %v4560
      %v4562 = vsel %vm1714, %v4515, 0.0
      %v4563 = vadd.f32 %v4561, %v4562
      %v4564 = vsel %vm1714, %v4516, 0.0
      %v4565 = vadd.f32 %v4563, %v4564
      %v4566 = vsel %vm1714, %v4517, 0.0
      %v4567 = vadd.f32 %v4565, %v4566
      %v4568 = vsel %vm1714, %v4518, 0.0
      %v4569 = vadd.f32 %v4567, %v4568
      %v4570 = vsel %vm1714, %v4519, 0.0
      %v4571 = vadd.f32 %v4569, %v4570
      %v4572 = vsel %vm1714, %v4520, 0.0
      %v4573 = vadd.f32 %v4571, %v4572
      %v4574 = vsel %vm1714, %v4521, 0.0
      %v4575 = vadd.f32 %v4573, %v4574
      %v4576 = vsel %vm1714, %v4522, 0.0
      %v4577 = vadd.f32 %v4575, %v4576
      %v4578 = vsel %vm1714, %v4523, 0.0
      %v4579 = vadd.f32 %v4577, %v4578
      %v4580 = vsel %vm1714, %v4524, 0.0
      %v4581 = vadd.f32 %v4579, %v4580
      %v4582 = vsel %vm1714, %v4525, 0.0
      %v4583 = vadd.f32 %v4581, %v4582
      %v4584 = vsel %vm1714, %v4526, 0.0
      %v4585 = vadd.f32 %v4583, %v4584
      %v4586 = vsel %vm1714, %v4527, 0.0
      %v4587 = vadd.f32 %v4585, %v4586
      %v4588 = vsel %vm1714, %v4528, 0.0
      %v4589 = vadd.f32 %v4587, %v4588
      %v4590 = vsel %vm1714, %v4529, 0.0
      %v4591 = vadd.f32 %v4589, %v4590
      %v4592 = vsel %vm1714, %v4530, 0.0
      %v4593 = vadd.f32 %v4591, %v4592
      %v4594 = vrot.slane %v4593, 4
      %v4595 = vadd.f32 %v4593, %v4594
      %v4596 = vrot.slane %v4595, 2
      %v4597 = vadd.f32 %v4595, %v4596
      %v4598 = vrot.slane %v4597, 1
      %v4599 = vadd.f32 %v4597, %v4598
      %v4600 = vadd.f32 %v4498, %v4599
      %4601 = vst.msk [vmem:[#allocation3 + $0x1] sm:$0x1] %vm4496, %v4600
      %s4602 = smul.u32 %s21, 256
      %v4603 = vpack.c.bf16 %v4394, %v4393
      %v4604 = vpack.c.bf16 %v4396, %v4395
      %v4605 = vpack.c.bf16 %v4398, %v4397
      %v4606 = vpack.c.bf16 %v4400, %v4399
      %v4607 = vpack.c.bf16 %v4402, %v4401
      %v4608 = vpack.c.bf16 %v4404, %v4403
      %v4609 = vpack.c.bf16 %v4406, %v4405
      %v4610 = vpack.c.bf16 %v4408, %v4407
      %v4611 = vpack.c.bf16 %v4410, %v4409
      %v4612 = vpack.c.bf16 %v4412, %v4411
      %v4613 = vpack.c.bf16 %v4414, %v4413
      %v4614 = vpack.c.bf16 %v4416, %v4415
      %v4615 = vpack.c.bf16 %v4418, %v4417
      %v4616 = vpack.c.bf16 %v4420, %v4419
      %v4617 = vpack.c.bf16 %v4422, %v4421
      %v4618 = vpack.c.bf16 %v4424, %v4423
      %v4635 = vunpack.c.l.b16 %v4603
      %v4636 = vunpack.c.h.b16 %v4603
      %v4637 = vunpack.c.l.b16 %v4604
      %v4638 = vunpack.c.h.b16 %v4604
      %v4639 = vunpack.c.l.b16 %v4605
      %v4640 = vunpack.c.h.b16 %v4605
      %v4641 = vunpack.c.l.b16 %v4606
      %v4642 = vunpack.c.h.b16 %v4606
      %v4643 = vunpack.c.l.b16 %v4607
      %v4644 = vunpack.c.h.b16 %v4607
      %v4645 = vunpack.c.l.b16 %v4608
      %v4646 = vunpack.c.h.b16 %v4608
      %v4647 = vunpack.c.l.b16 %v4609
      %v4648 = vunpack.c.h.b16 %v4609
      %v4649 = vunpack.c.l.b16 %v4610
      %v4650 = vunpack.c.h.b16 %v4610
      %v4651 = vunpack.c.l.b16 %v4611
      %v4652 = vunpack.c.h.b16 %v4611
      %v4653 = vunpack.c.l.b16 %v4612
      %v4654 = vunpack.c.h.b16 %v4612
      %v4655 = vunpack.c.l.b16 %v4613
      %v4656 = vunpack.c.h.b16 %v4613
      %v4657 = vunpack.c.l.b16 %v4614
      %v4658 = vunpack.c.h.b16 %v4614
      %v4659 = vunpack.c.l.b16 %v4615
      %v4660 = vunpack.c.h.b16 %v4615
      %v4661 = vunpack.c.l.b16 %v4616
      %v4662 = vunpack.c.h.b16 %v4616
      %v4663 = vunpack.c.l.b16 %v4617
      %v4664 = vunpack.c.h.b16 %v4617
      %v4665 = vunpack.c.l.b16 %v4618
      %v4666 = vunpack.c.h.b16 %v4618
      %v4667 = vpack.c.b16 %v4635, %v4635
      %v4668 = vpack.c.b16 %v4636, %v4636
      %v4669 = vpack.c.b16 %v4637, %v4637
      %v4670 = vpack.c.b16 %v4638, %v4638
      %v4671 = vpack.c.b16 %v4639, %v4639
      %v4672 = vpack.c.b16 %v4640, %v4640
      %v4673 = vpack.c.b16 %v4641, %v4641
      %v4674 = vpack.c.b16 %v4642, %v4642
      %v4675 = vpack.c.b16 %v4643, %v4643
      %v4676 = vpack.c.b16 %v4644, %v4644
      %v4677 = vpack.c.b16 %v4645, %v4645
      %v4678 = vpack.c.b16 %v4646, %v4646
      %v4679 = vpack.c.b16 %v4647, %v4647
      %v4680 = vpack.c.b16 %v4648, %v4648
      %v4681 = vpack.c.b16 %v4649, %v4649
      %v4682 = vpack.c.b16 %v4650, %v4650
      %v4683 = vpack.c.b16 %v4651, %v4651
      %v4684 = vpack.c.b16 %v4652, %v4652
      %v4685 = vpack.c.b16 %v4653, %v4653
      %v4686 = vpack.c.b16 %v4654, %v4654
      %v4687 = vpack.c.b16 %v4655, %v4655
      %v4688 = vpack.c.b16 %v4656, %v4656
      %v4689 = vpack.c.b16 %v4657, %v4657
      %v4690 = vpack.c.b16 %v4658, %v4658
      %v4691 = vpack.c.b16 %v4659, %v4659
      %v4692 = vpack.c.b16 %v4660, %v4660
      %v4693 = vpack.c.b16 %v4661, %v4661
      %v4694 = vpack.c.b16 %v4662, %v4662
      %v4695 = vpack.c.b16 %v4663, %v4663
      %v4696 = vpack.c.b16 %v4664, %v4664
      %v4697 = vpack.c.b16 %v4665, %v4665
      %v4698 = vpack.c.b16 %v4666, %v4666
      %s4731 = sshra.s32 %s4602, 3
      %s4732 = sand.u32 %s4602, 7
      %s4733 = smul.addr %s4731, 4
      %s4734 = scalar_lea.vmem %s250, %s4733
      %vm4735 = vcmask 257024
      %4736 = vst.msk [vmem:[%s4734] sm:$0xf] %vm4735, %v4667
      %4737 = vst.msk [vmem:[%s4734 + $0x4] sm:$0xf] %vm4735, %v4668
      %4738 = vst.msk [vmem:[%s4734 + $0x8] sm:$0xf] %vm4735, %v4669
      %4739 = vst.msk [vmem:[%s4734 + $0xc] sm:$0xf] %vm4735, %v4670
      %4740 = vst.msk [vmem:[%s4734 + $0x10] sm:$0xf] %vm4735, %v4671
      %4741 = vst.msk [vmem:[%s4734 + $0x14] sm:$0xf] %vm4735, %v4672
      %4742 = vst.msk [vmem:[%s4734 + $0x18] sm:$0xf] %vm4735, %v4673
      %4743 = vst.msk [vmem:[%s4734 + $0x1c] sm:$0xf] %vm4735, %v4674
      %4744 = vst.msk [vmem:[%s4734 + $0x20] sm:$0xf] %vm4735, %v4675
      %4745 = vst.msk [vmem:[%s4734 + $0x24] sm:$0xf] %vm4735, %v4676
      %4746 = vst.msk [vmem:[%s4734 + $0x28] sm:$0xf] %vm4735, %v4677
      %4747 = vst.msk [vmem:[%s4734 + $0x2c] sm:$0xf] %vm4735, %v4678
      %4748 = vst.msk [vmem:[%s4734 + $0x30] sm:$0xf] %vm4735, %v4679
      %4749 = vst.msk [vmem:[%s4734 + $0x34] sm:$0xf] %vm4735, %v4680
      %4750 = vst.msk [vmem:[%s4734 + $0x38] sm:$0xf] %vm4735, %v4681
      %4751 = vst.msk [vmem:[%s4734 + $0x3c] sm:$0xf] %vm4735, %v4682
      %4752 = vst.msk [vmem:[%s4734 + $0x40] sm:$0xf] %vm4735, %v4683
      %4753 = vst.msk [vmem:[%s4734 + $0x44] sm:$0xf] %vm4735, %v4684
      %4754 = vst.msk [vmem:[%s4734 + $0x48] sm:$0xf] %vm4735, %v4685
      %4755 = vst.msk [vmem:[%s4734 + $0x4c] sm:$0xf] %vm4735, %v4686
      %4756 = vst.msk [vmem:[%s4734 + $0x50] sm:$0xf] %vm4735, %v4687
      %4757 = vst.msk [vmem:[%s4734 + $0x54] sm:$0xf] %vm4735, %v4688
      %4758 = vst.msk [vmem:[%s4734 + $0x58] sm:$0xf] %vm4735, %v4689
      %4759 = vst.msk [vmem:[%s4734 + $0x5c] sm:$0xf] %vm4735, %v4690
      %4760 = vst.msk [vmem:[%s4734 + $0x60] sm:$0xf] %vm4735, %v4691
      %4761 = vst.msk [vmem:[%s4734 + $0x64] sm:$0xf] %vm4735, %v4692
      %4762 = vst.msk [vmem:[%s4734 + $0x68] sm:$0xf] %vm4735, %v4693
      %4763 = vst.msk [vmem:[%s4734 + $0x6c] sm:$0xf] %vm4735, %v4694
      %4764 = vst.msk [vmem:[%s4734 + $0x70] sm:$0xf] %vm4735, %v4695
      %4765 = vst.msk [vmem:[%s4734 + $0x74] sm:$0xf] %vm4735, %v4696
      %4766 = vst.msk [vmem:[%s4734 + $0x78] sm:$0xf] %vm4735, %v4697
      %4767 = vst.msk [vmem:[%s4734 + $0x7c] sm:$0xf] %vm4735, %v4698
      // Predicated region
      $region45: #{tpu_custom_call.1} parent=39 // pred_check
        %p4768 = pneg %p252
      $region46: #{tpu_custom_call.1} parent=39 // pred_check_branch
        %4770 = sbr.rel (%p4768) target = $region48
      $region47: #{tpu_custom_call.1} parent=39 // pred_region
        %v4771 = vld [vmem:[#allocation3] sm:$0x3]
        %v4772 = vld [vmem:[%s4] sm:$0xff]
        %v4773 = vld [vmem:[%s4 + $0x8] sm:$0xff]
        %v4774 = vld [vmem:[%s4 + $0x10] sm:$0xff]
        %v4775 = vld [vmem:[%s4 + $0x18] sm:$0xff]
        %v4777 = vsel %vm1714, %v4771, 0
        %4779 = vmatprep.subr.mxu0 0.0
        %4780 = vmatpush1.msra.mxu0 %v4772
        %4781 = vmatprep.subr.mxu0 0.0
        %4782 = vmatpush1.msra.mxu0 %v4773
        %4783 = vmatprep.subr.mxu0 0.0
        %4784 = vmatpush1.msra.mxu0 %v4774
        %4785 = vmatprep.subr.mxu0 0.0
        %4786 = vmatpush1.msra.mxu0 %v4775
        %4787 = vmatprep.subr.mxu0 0.0
        %4788 = vmatpush1.msra.mxu0 0.0
        %4789 = vmatprep.subr.mxu0 0.0
        %4790 = vmatpush1.msra.mxu0 0.0
        %4791 = vmatprep.subr.mxu0 0.0
        %4792 = vmatpush1.msra.mxu0 0.0
        %4793 = vmatprep.subr.mxu0 0.0
        %4794 = vmatpush1.msra.mxu0 0.0
        %4795 = vmatprep.subr.mxu0 0.0
        %4796 = vmatpush1.msra.mxu0 0.0
        %4797 = vmatprep.subr.mxu0 0.0
        %4798 = vmatpush1.msra.mxu0 0.0
        %4799 = vmatprep.subr.mxu0 0.0
        %4800 = vmatpush1.msra.mxu0 0.0
        %4801 = vmatprep.subr.mxu0 0.0
        %4802 = vmatpush1.msra.mxu0 0.0
        %4803 = vmatprep.subr.mxu0 0.0
        %4804 = vmatpush1.msra.mxu0 0.0
        %4805 = vmatprep.subr.mxu0 0.0
        %4806 = vmatpush1.msra.mxu0 0.0
        %4807 = vmatprep.subr.mxu0 0.0
        %4808 = vmatpush1.msra.mxu0 0.0
        %4809 = vmatprep.subr.mxu0 0.0
        %4810 = vmatpush1.msra.mxu0 0.0
        %4811 = vmatprep.subr.mxu0 0.0
        %4812 = vmatpush1.msra.mxu0 0.0
        %4813 = vmatprep.subr.mxu0 0.0
        %4814 = vmatpush1.msra.mxu0 0.0
        %4815 = vmatprep.subr.mxu0 0.0
        %4816 = vmatpush1.msra.mxu0 0.0
        %4817 = vmatprep.subr.mxu0 0.0
        %4818 = vmatpush1.msra.mxu0 0.0
        %4819 = vmatprep.subr.mxu0 0.0
        %4820 = vmatpush1.msra.mxu0 0.0
        %4821 = vmatprep.subr.mxu0 0.0
        %4822 = vmatpush1.msra.mxu0 0.0
        %4823 = vmatprep.subr.mxu0 0.0
        %4824 = vmatpush1.msra.mxu0 0.0
        %4825 = vmatprep.subr.mxu0 0.0
        %4826 = vmatpush1.msra.mxu0 0.0
        %4827 = vmatprep.subr.mxu0 0.0
        %4828 = vmatpush1.msra.mxu0 0.0
        %4829 = vmatprep.subr.mxu0 0.0
        %4830 = vmatpush1.msra.mxu0 0.0
        %4831 = vmatprep.subr.mxu0 0.0
        %4832 = vmatpush1.msra.mxu0 0.0
        %4833 = vmatprep.subr.mxu0 0.0
        %4834 = vmatpush1.msra.mxu0 0.0
        %4835 = vmatprep.subr.mxu0 0.0
        %4836 = vmatpush1.msra.mxu0 0.0
        %4837 = vmatprep.subr.mxu0 0.0
        %4838 = vmatpush1.msra.mxu0 0.0
        %4839 = vmatprep.subr.mxu0 0.0
        %4840 = vmatpush1.msra.mxu0 0.0
        %4841 = vmatprep.subr.mxu0 0.0
        %4842 = vmatpush1.msra.mxu0 0.0
        %4843 = vmatprep.mubr.f32.mxu0 0.0
        %4844 = vmatmul.mubr.f32.gmra.mrb[0].mxu0 %v4777
        %v4845 = vpop.f32.mrb[0].mxu0
        %v4846 = vadd.f32 0.0, %v4845
        %v4847 = vpop.f32.mrb[0].mxu0
        %4848 = vdwg.mxu0
        %v4849 = vrcp.pop 256.0
        %v4850 = vmul.f32 %v4846, %v4849
        %v4851 = vmul.f32 %v4850, %v4850
        %v4853 = vrot.slane %v4851, 7
        %v4855 = vsub.f32 %v4850, %v4853
        %v4856 = vadd.f32 %v4855, 1e-05
        %v4857 = vrsqrt.pop %v4856
        %v4858 = vld [vmem:[%s3] sm:$0x1]
        %v4860 = vrot.slane %v4857, 1
        %v4862 = vmul.f32 %v4858, %v4860
        %v4863 = vld [vmem:[%s3 + $0x1] sm:$0x1]
        %v4864 = vmul.f32 %v4850, %v4862
        %v4865 = vsub.f32 %v4863, %v4864
        %v4866 = vld [vmem:[%s250] sm:$0xf]
        %v4867 = vld [vmem:[%s250 + $0x4] sm:$0xf]
        %v4868 = vld [vmem:[%s250 + $0x8] sm:$0xf]
        %v4869 = vld [vmem:[%s250 + $0xc] sm:$0xf]
        %v4870 = vld [vmem:[%s250 + $0x10] sm:$0xf]
        %v4871 = vld [vmem:[%s250 + $0x14] sm:$0xf]
        %v4872 = vld [vmem:[%s250 + $0x18] sm:$0xf]
        %v4873 = vld [vmem:[%s250 + $0x1c] sm:$0xf]
        %v4874 = vld [vmem:[%s250 + $0x20] sm:$0xf]
        %v4875 = vld [vmem:[%s250 + $0x24] sm:$0xf]
        %v4876 = vld [vmem:[%s250 + $0x28] sm:$0xf]
        %v4877 = vld [vmem:[%s250 + $0x2c] sm:$0xf]
        %v4878 = vld [vmem:[%s250 + $0x30] sm:$0xf]
        %v4879 = vld [vmem:[%s250 + $0x34] sm:$0xf]
        %v4880 = vld [vmem:[%s250 + $0x38] sm:$0xf]
        %v4881 = vld [vmem:[%s250 + $0x3c] sm:$0xf]
        %v4882 = vld [vmem:[%s250 + $0x40] sm:$0xf]
        %v4883 = vld [vmem:[%s250 + $0x44] sm:$0xf]
        %v4884 = vld [vmem:[%s250 + $0x48] sm:$0xf]
        %v4885 = vld [vmem:[%s250 + $0x4c] sm:$0xf]
        %v4886 = vld [vmem:[%s250 + $0x50] sm:$0xf]
        %v4887 = vld [vmem:[%s250 + $0x54] sm:$0xf]
        %v4888 = vld [vmem:[%s250 + $0x58] sm:$0xf]
        %v4889 = vld [vmem:[%s250 + $0x5c] sm:$0xf]
        %v4890 = vld [vmem:[%s250 + $0x60] sm:$0xf]
        %v4891 = vld [vmem:[%s250 + $0x64] sm:$0xf]
        %v4892 = vld [vmem:[%s250 + $0x68] sm:$0xf]
        %v4893 = vld [vmem:[%s250 + $0x6c] sm:$0xf]
        %v4894 = vld [vmem:[%s250 + $0x70] sm:$0xf]
        %v4895 = vld [vmem:[%s250 + $0x74] sm:$0xf]
        %v4896 = vld [vmem:[%s250 + $0x78] sm:$0xf]
        %v4897 = vld [vmem:[%s250 + $0x7c] sm:$0xf]
        %v4898 = vunpack.c.l.bf16 %v4866
        %v4899 = vunpack.c.l.bf16 %v4867
        %v4900 = vunpack.c.l.bf16 %v4868
        %v4901 = vunpack.c.l.bf16 %v4869
        %v4902 = vunpack.c.l.bf16 %v4870
        %v4903 = vunpack.c.l.bf16 %v4871
        %v4904 = vunpack.c.l.bf16 %v4872
        %v4905 = vunpack.c.l.bf16 %v4873
        %v4906 = vunpack.c.l.bf16 %v4874
        %v4907 = vunpack.c.l.bf16 %v4875
        %v4908 = vunpack.c.l.bf16 %v4876
        %v4909 = vunpack.c.l.bf16 %v4877
        %v4910 = vunpack.c.l.bf16 %v4878
        %v4911 = vunpack.c.l.bf16 %v4879
        %v4912 = vunpack.c.l.bf16 %v4880
        %v4913 = vunpack.c.l.bf16 %v4881
        %v4914 = vunpack.c.l.bf16 %v4882
        %v4915 = vunpack.c.l.bf16 %v4883
        %v4916 = vunpack.c.l.bf16 %v4884
        %v4917 = vunpack.c.l.bf16 %v4885
        %v4918 = vunpack.c.l.bf16 %v4886
        %v4919 = vunpack.c.l.bf16 %v4887
        %v4920 = vunpack.c.l.bf16 %v4888
        %v4921 = vunpack.c.l.bf16 %v4889
        %v4922 = vunpack.c.l.bf16 %v4890
        %v4923 = vunpack.c.l.bf16 %v4891
        %v4924 = vunpack.c.l.bf16 %v4892
        %v4925 = vunpack.c.l.bf16 %v4893
        %v4926 = vunpack.c.l.bf16 %v4894
        %v4927 = vunpack.c.l.bf16 %v4895
        %v4928 = vunpack.c.l.bf16 %v4896
        %v4929 = vunpack.c.l.bf16 %v4897
        %v4930 = vlaneseq
        %v4931 = vshrl.u32 %v4930, 7
        %v4932 = vsub.s32 0, %v4931
        %v4933 = vrot.slane %v4862, %v4932
        %v4934 = vmul.f32 %v4898, %v4933
        %v4935 = vmul.f32 %v4899, %v4933
        %v4936 = vmul.f32 %v4900, %v4933
        %v4937 = vmul.f32 %v4901, %v4933
        %v4938 = vmul.f32 %v4902, %v4933
        %v4939 = vmul.f32 %v4903, %v4933
        %v4940 = vmul.f32 %v4904, %v4933
        %v4941 = vmul.f32 %v4905, %v4933
        %v4942 = vmul.f32 %v4906, %v4933
        %v4943 = vmul.f32 %v4907, %v4933
        %v4944 = vmul.f32 %v4908, %v4933
        %v4945 = vmul.f32 %v4909, %v4933
        %v4946 = vmul.f32 %v4910, %v4933
        %v4947 = vmul.f32 %v4911, %v4933
        %v4948 = vmul.f32 %v4912, %v4933
        %v4949 = vmul.f32 %v4913, %v4933
        %v4950 = vmul.f32 %v4914, %v4933
        %v4951 = vmul.f32 %v4915, %v4933
        %v4952 = vmul.f32 %v4916, %v4933
        %v4953 = vmul.f32 %v4917, %v4933
        %v4954 = vmul.f32 %v4918, %v4933
        %v4955 = vmul.f32 %v4919, %v4933
        %v4956 = vmul.f32 %v4920, %v4933
        %v4957 = vmul.f32 %v4921, %v4933
        %v4958 = vmul.f32 %v4922, %v4933
        %v4959 = vmul.f32 %v4923, %v4933
        %v4960 = vmul.f32 %v4924, %v4933
        %v4961 = vmul.f32 %v4925, %v4933
        %v4962 = vmul.f32 %v4926, %v4933
        %v4963 = vmul.f32 %v4927, %v4933
        %v4964 = vmul.f32 %v4928, %v4933
        %v4965 = vmul.f32 %v4929, %v4933
        %v4966 = vlaneseq
        %v4967 = vshrl.u32 %v4966, 7
        %v4968 = vsub.s32 0, %v4967
        %v4969 = vrot.slane %v4865, %v4968
        %v4970 = vadd.f32 %v4934, %v4969
        %v4971 = vadd.f32 %v4935, %v4969
        %v4972 = vadd.f32 %v4936, %v4969
        %v4973 = vadd.f32 %v4937, %v4969
        %v4974 = vadd.f32 %v4938, %v4969
        %v4975 = vadd.f32 %v4939, %v4969
        %v4976 = vadd.f32 %v4940, %v4969
        %v4977 = vadd.f32 %v4941, %v4969
        %v4978 = vadd.f32 %v4942, %v4969
        %v4979 = vadd.f32 %v4943, %v4969
        %v4980 = vadd.f32 %v4944, %v4969
        %v4981 = vadd.f32 %v4945, %v4969
        %v4982 = vadd.f32 %v4946, %v4969
        %v4983 = vadd.f32 %v4947, %v4969
        %v4984 = vadd.f32 %v4948, %v4969
        %v4985 = vadd.f32 %v4949, %v4969
        %v4986 = vadd.f32 %v4950, %v4969
        %v4987 = vadd.f32 %v4951, %v4969
        %v4988 = vadd.f32 %v4952, %v4969
        %v4989 = vadd.f32 %v4953, %v4969
        %v4990 = vadd.f32 %v4954, %v4969
        %v4991 = vadd.f32 %v4955, %v4969
        %v4992 = vadd.f32 %v4956, %v4969
        %v4993 = vadd.f32 %v4957, %v4969
        %v4994 = vadd.f32 %v4958, %v4969
        %v4995 = vadd.f32 %v4959, %v4969
        %v4996 = vadd.f32 %v4960, %v4969
        %v4997 = vadd.f32 %v4961, %v4969
        %v4998 = vadd.f32 %v4962, %v4969
        %v4999 = vadd.f32 %v4963, %v4969
        %v5000 = vadd.f32 %v4964, %v4969
        %v5001 = vadd.f32 %v4965, %v4969
        %v5002 = vmax.f32 %v4970, 0.0
        %v5003 = vmax.f32 %v4971, 0.0
        %v5004 = vmax.f32 %v4972, 0.0
        %v5005 = vmax.f32 %v4973, 0.0
        %v5006 = vmax.f32 %v4974, 0.0
        %v5007 = vmax.f32 %v4975, 0.0
        %v5008 = vmax.f32 %v4976, 0.0
        %v5009 = vmax.f32 %v4977, 0.0
        %v5010 = vmax.f32 %v4978, 0.0
        %v5011 = vmax.f32 %v4979, 0.0
        %v5012 = vmax.f32 %v4980, 0.0
        %v5013 = vmax.f32 %v4981, 0.0
        %v5014 = vmax.f32 %v4982, 0.0
        %v5015 = vmax.f32 %v4983, 0.0
        %v5016 = vmax.f32 %v4984, 0.0
        %v5017 = vmax.f32 %v4985, 0.0
        %v5018 = vmax.f32 %v4986, 0.0
        %v5019 = vmax.f32 %v4987, 0.0
        %v5020 = vmax.f32 %v4988, 0.0
        %v5021 = vmax.f32 %v4989, 0.0
        %v5022 = vmax.f32 %v4990, 0.0
        %v5023 = vmax.f32 %v4991, 0.0
        %v5024 = vmax.f32 %v4992, 0.0
        %v5025 = vmax.f32 %v4993, 0.0
        %v5026 = vmax.f32 %v4994, 0.0
        %v5027 = vmax.f32 %v4995, 0.0
        %v5028 = vmax.f32 %v4996, 0.0
        %v5029 = vmax.f32 %v4997, 0.0
        %v5030 = vmax.f32 %v4998, 0.0
        %v5031 = vmax.f32 %v4999, 0.0
        %v5032 = vmax.f32 %v5000, 0.0
        %v5033 = vmax.f32 %v5001, 0.0
        %v5034 = vpack.c.bf16 %v5003, %v5002
        %v5035 = vpack.c.bf16 %v5005, %v5004
        %v5036 = vpack.c.bf16 %v5007, %v5006
        %v5037 = vpack.c.bf16 %v5009, %v5008
        %v5038 = vpack.c.bf16 %v5011, %v5010
        %v5039 = vpack.c.bf16 %v5013, %v5012
        %v5040 = vpack.c.bf16 %v5015, %v5014
        %v5041 = vpack.c.bf16 %v5017, %v5016
        %v5042 = vpack.c.bf16 %v5019, %v5018
        %v5043 = vpack.c.bf16 %v5021, %v5020
        %v5044 = vpack.c.bf16 %v5023, %v5022
        %v5045 = vpack.c.bf16 %v5025, %v5024
        %v5046 = vpack.c.bf16 %v5027, %v5026
        %v5047 = vpack.c.bf16 %v5029, %v5028
        %v5048 = vpack.c.bf16 %v5031, %v5030
        %v5049 = vpack.c.bf16 %v5033, %v5032
        %v5066 = vunpack.c.l.b16 %v5034
        %v5067 = vunpack.c.h.b16 %v5034
        %v5068 = vunpack.c.l.b16 %v5035
        %v5069 = vunpack.c.h.b16 %v5035
        %v5070 = vunpack.c.l.b16 %v5036
        %v5071 = vunpack.c.h.b16 %v5036
        %v5072 = vunpack.c.l.b16 %v5037
        %v5073 = vunpack.c.h.b16 %v5037
        %v5074 = vunpack.c.l.b16 %v5038
        %v5075 = vunpack.c.h.b16 %v5038
        %v5076 = vunpack.c.l.b16 %v5039
        %v5077 = vunpack.c.h.b16 %v5039
        %v5078 = vunpack.c.l.b16 %v5040
        %v5079 = vunpack.c.h.b16 %v5040
        %v5080 = vunpack.c.l.b16 %v5041
        %v5081 = vunpack.c.h.b16 %v5041
        %v5082 = vunpack.c.l.b16 %v5042
        %v5083 = vunpack.c.h.b16 %v5042
        %v5084 = vunpack.c.l.b16 %v5043
        %v5085 = vunpack.c.h.b16 %v5043
        %v5086 = vunpack.c.l.b16 %v5044
        %v5087 = vunpack.c.h.b16 %v5044
        %v5088 = vunpack.c.l.b16 %v5045
        %v5089 = vunpack.c.h.b16 %v5045
        %v5090 = vunpack.c.l.b16 %v5046
        %v5091 = vunpack.c.h.b16 %v5046
        %v5092 = vunpack.c.l.b16 %v5047
        %v5093 = vunpack.c.h.b16 %v5047
        %v5094 = vunpack.c.l.b16 %v5048
        %v5095 = vunpack.c.h.b16 %v5048
        %v5096 = vunpack.c.l.b16 %v5049
        %v5097 = vunpack.c.h.b16 %v5049
        %v5098 = vpack.c.b16 %v5066, %v5066
        %v5099 = vpack.c.b16 %v5067, %v5067
        %v5100 = vpack.c.b16 %v5068, %v5068
        %v5101 = vpack.c.b16 %v5069, %v5069
        %v5102 = vpack.c.b16 %v5070, %v5070
        %v5103 = vpack.c.b16 %v5071, %v5071
        %v5104 = vpack.c.b16 %v5072, %v5072
        %v5105 = vpack.c.b16 %v5073, %v5073
        %v5106 = vpack.c.b16 %v5074, %v5074
        %v5107 = vpack.c.b16 %v5075, %v5075
        %v5108 = vpack.c.b16 %v5076, %v5076
        %v5109 = vpack.c.b16 %v5077, %v5077
        %v5110 = vpack.c.b16 %v5078, %v5078
        %v5111 = vpack.c.b16 %v5079, %v5079
        %v5112 = vpack.c.b16 %v5080, %v5080
        %v5113 = vpack.c.b16 %v5081, %v5081
        %v5114 = vpack.c.b16 %v5082, %v5082
        %v5115 = vpack.c.b16 %v5083, %v5083
        %v5116 = vpack.c.b16 %v5084, %v5084
        %v5117 = vpack.c.b16 %v5085, %v5085
        %v5118 = vpack.c.b16 %v5086, %v5086
        %v5119 = vpack.c.b16 %v5087, %v5087
        %v5120 = vpack.c.b16 %v5088, %v5088
        %v5121 = vpack.c.b16 %v5089, %v5089
        %v5122 = vpack.c.b16 %v5090, %v5090
        %v5123 = vpack.c.b16 %v5091, %v5091
        %v5124 = vpack.c.b16 %v5092, %v5092
        %v5125 = vpack.c.b16 %v5093, %v5093
        %v5126 = vpack.c.b16 %v5094, %v5094
        %v5127 = vpack.c.b16 %v5095, %v5095
        %v5128 = vpack.c.b16 %v5096, %v5096
        %v5129 = vpack.c.b16 %v5097, %v5097
        %5162 = vst.msk [vmem:[%s250] sm:$0xf] %vm4735, %v5098
        %5163 = vst.msk [vmem:[%s250 + $0x4] sm:$0xf] %vm4735, %v5099
        %5164 = vst.msk [vmem:[%s250 + $0x8] sm:$0xf] %vm4735, %v5100
        %5165 = vst.msk [vmem:[%s250 + $0xc] sm:$0xf] %vm4735, %v5101
        %5166 = vst.msk [vmem:[%s250 + $0x10] sm:$0xf] %vm4735, %v5102
        %5167 = vst.msk [vmem:[%s250 + $0x14] sm:$0xf] %vm4735, %v5103
        %5168 = vst.msk [vmem:[%s250 + $0x18] sm:$0xf] %vm4735, %v5104
        %5169 = vst.msk [vmem:[%s250 + $0x1c] sm:$0xf] %vm4735, %v5105
        %5170 = vst.msk [vmem:[%s250 + $0x20] sm:$0xf] %vm4735, %v5106
        %5171 = vst.msk [vmem:[%s250 + $0x24] sm:$0xf] %vm4735, %v5107
        %5172 = vst.msk [vmem:[%s250 + $0x28] sm:$0xf] %vm4735, %v5108
        %5173 = vst.msk [vmem:[%s250 + $0x2c] sm:$0xf] %vm4735, %v5109
        %5174 = vst.msk [vmem:[%s250 + $0x30] sm:$0xf] %vm4735, %v5110
        %5175 = vst.msk [vmem:[%s250 + $0x34] sm:$0xf] %vm4735, %v5111
        %5176 = vst.msk [vmem:[%s250 + $0x38] sm:$0xf] %vm4735, %v5112
        %5177 = vst.msk [vmem:[%s250 + $0x3c] sm:$0xf] %vm4735, %v5113
        %5178 = vst.msk [vmem:[%s250 + $0x40] sm:$0xf] %vm4735, %v5114
        %5179 = vst.msk [vmem:[%s250 + $0x44] sm:$0xf] %vm4735, %v5115
        %5180 = vst.msk [vmem:[%s250 + $0x48] sm:$0xf] %vm4735, %v5116
        %5181 = vst.msk [vmem:[%s250 + $0x4c] sm:$0xf] %vm4735, %v5117
        %5182 = vst.msk [vmem:[%s250 + $0x50] sm:$0xf] %vm4735, %v5118
        %5183 = vst.msk [vmem:[%s250 + $0x54] sm:$0xf] %vm4735, %v5119
        %5184 = vst.msk [vmem:[%s250 + $0x58] sm:$0xf] %vm4735, %v5120
        %5185 = vst.msk [vmem:[%s250 + $0x5c] sm:$0xf] %vm4735, %v5121
        %5186 = vst.msk [vmem:[%s250 + $0x60] sm:$0xf] %vm4735, %v5122
        %5187 = vst.msk [vmem:[%s250 + $0x64] sm:$0xf] %vm4735, %v5123
        %5188 = vst.msk [vmem:[%s250 + $0x68] sm:$0xf] %vm4735, %v5124
        %5189 = vst.msk [vmem:[%s250 + $0x6c] sm:$0xf] %vm4735, %v5125
        %5190 = vst.msk [vmem:[%s250 + $0x70] sm:$0xf] %vm4735, %v5126
        %5191 = vst.msk [vmem:[%s250 + $0x74] sm:$0xf] %vm4735, %v5127
        %5192 = vst.msk [vmem:[%s250 + $0x78] sm:$0xf] %vm4735, %v5128
        %5193 = vst.msk [vmem:[%s250 + $0x7c] sm:$0xf] %vm4735, %v5129
      $region48: #{tpu_custom_call.1} parent=39 // pred_fallthru
        _
      %p5194 = scmp.lt.s32.totalorder %s20, 1
      %s5195 = scalar_select %p5194, %s20, 1
      %s5196 = smul.addr %s5195, 32
      %s5197 = smul.addr %s5196, 4
      %s5198 = scalar_lea.vmem %s5, %s5197
      // Predicated region
      $region49: #{tpu_custom_call.1} parent=39 // pred_check
        %p5199 = pneg %p158
      $region50: #{tpu_custom_call.1} parent=39 // pred_check_branch
        %5201 = sbr.rel (%p5199) target = $region52
      $region51: #{tpu_custom_call.1} parent=39 // pred_region
        _
      $region52: #{tpu_custom_call.1} parent=39 // pred_fallthru
        _
    $region40: #{tpu_custom_call.1} parent=5 // pred_fallthru
      _
    %p5202 = scmp.le.s32.totalorder 2, %s11
    // Predicated region
    $region53: #{tpu_custom_call.1} parent=5 // pred_check
      %p5203 = pneg %p5202
    $region54: #{tpu_custom_call.1} parent=5 // pred_check_branch
      %5205 = sbr.rel (%p5203) target = $region56
    $region55: #{tpu_custom_call.1} parent=5 // pred_region
      %s5206 = ssub.s32 %s11, 2
      // Predicated region
      $region57: #{tpu_custom_call.1} parent=55 // pred_check
        %p5207 = pneg %p164
      $region58: #{tpu_custom_call.1} parent=55 // pred_check_branch
        %5209 = sbr.rel (%p5207) target = $region60
      $region59: #{tpu_custom_call.1} parent=55 // pred_region
        %p5210 = scmp.lt.s32.totalorder %s22, 1
        %s5211 = scalar_select %p5210, %s22, 1
        %s5212 = smul.addr %s5211, 32
        %s5213 = smul.addr %s5212, 4
        %s5214 = scalar_lea.vmem %s5, %s5213
      $region60: #{tpu_custom_call.1} parent=55 // pred_fallthru
        _
    $region56: #{tpu_custom_call.1} parent=5 // pred_fallthru
      _
  $region6: #{tpu_custom_call.1} parent=0 // loop_footer
    %s15 = sadd.s32 1, %s11
  $region7: #{tpu_custom_call.1} parent=0 // loop_footer_branch
    %10 = sbr.rel target = $region3
  $region8: #{tpu_custom_call.1} parent=0 // loop_exit
    _

</llo_original>
